<compile_context>
chip_gen: v5e
topology: v5e:2x2
jax: 0.10.0
libtpu: 0.0.40
codegen_flags: <defaults>
</compile_context>

<pallas_src>
import functools

import jax
import jax.numpy as jnp
from jax.experimental import pallas as pl
from jax.experimental.pallas import tpu as pltpu

LN_EPS = 1e-5  # torch.nn.TransformerEncoderLayer default layer_norm_eps

# Rows of the packed per-layer vector slab (L, 8, D):
#   0: b_attn   1: ln1 gamma   2: ln1 beta   3: ffn bias2
#   4: ln2 gamma  5: ln2 beta  6,7: zero padding (sublane alignment)
_VEC_ROWS = 8


def _encoder_kernel(x_ref, wattn_ref, vec_ref, w1_ref, bf1_ref, w2_ref,
                    out_ref, h_ref, *, layers_per_step):
    lstep = pl.program_id(1)

    @pl.when(lstep == 0)
    def _():
        h_ref[...] = x_ref[...]

    h = h_ref[...]

    # Static unroll over the layers handled by this grid step.
    for j in range(layers_per_step):
        w_attn = wattn_ref[j].astype(jnp.float32)     # (D, D)
        w1 = w1_ref[j].astype(jnp.float32)            # (D, F)
        w2 = w2_ref[j].astype(jnp.float32)            # (F, D)
        vec = vec_ref[j]                              # (8, D) f32
        b_attn = vec[0:1, :]
        g1 = vec[1:2, :]
        be1 = vec[2:3, :]
        bf2 = vec[3:4, :]
        g2 = vec[4:5, :]
        be2 = vec[5:6, :]
        bf1 = bf1_ref[j]                              # (1, F) f32

        # --- self-attention (nhead=1, seq_len=1 => softmax == 1), fused ---
        attn = jnp.dot(h, w_attn, preferred_element_type=jnp.float32) + b_attn
        y = h + attn  # dropout1 identity in eval mode

        # --- LayerNorm 1 (post-norm, norm_first=False) ---
        mu = jnp.mean(y, axis=-1, keepdims=True)
        var = jnp.mean((y - mu) ** 2, axis=-1, keepdims=True)
        x1 = (y - mu) * jax.lax.rsqrt(var + LN_EPS) * g1 + be1

        # --- feed-forward: relu(x1 @ W1 + b1) @ W2 + b2 ---
        hdn = jnp.dot(x1, w1, preferred_element_type=jnp.float32) + bf1
        hdn = jnp.maximum(hdn, 0.0)
        ff = jnp.dot(hdn, w2, preferred_element_type=jnp.float32) + bf2
        y2 = x1 + ff  # dropout2 identity in eval mode

        # --- LayerNorm 2 ---
        mu2 = jnp.mean(y2, axis=-1, keepdims=True)
        var2 = jnp.mean((y2 - mu2) ** 2, axis=-1, keepdims=True)
        h = (y2 - mu2) * jax.lax.rsqrt(var2 + LN_EPS) * g2 + be2

    h_ref[...] = h

    # Only the final layer step produces the kernel output.
    @pl.when(lstep == pl.num_programs(1) - 1)
    def _():
        out_ref[...] = h


def transformer_forward(x, packed, *, layers_per_step=None, batch_tile=None):
    """x: (B, d_model) float32.  packed: output of pack_params()."""
    B, D = x.shape
    L, _, F = packed["w1"].shape

    if layers_per_step is None:
        layers_per_step = 2 if (L % 2 == 0 and L >= 2) else 1
    assert L % layers_per_step == 0
    n_lsteps = L // layers_per_step

    if batch_tile is None:
        batch_tile = B
    assert B % batch_tile == 0
    n_btiles = B // batch_tile
    lps, tb = layers_per_step, batch_tile

    def w_spec(d0, d1):
        # per-layer-step weight slab (lps layers per grid step).
        return pl.BlockSpec((lps, d0, d1), lambda b, l: (l, 0, 0))

    in_specs = [
        pl.BlockSpec((tb, D), lambda b, l: (b, 0)),  # x (resident over layers)
        w_spec(D, D),          # fused attention weight  (bf16)
        w_spec(_VEC_ROWS, D),  # packed bias / LN vector slab (f32)
        w_spec(D, F),          # FFN W1 (bf16)
        w_spec(1, F),          # FFN bias1 (f32)
        w_spec(F, D),          # FFN W2 (bf16)
    ]

    grid_spec = pltpu.PrefetchScalarGridSpec(
        num_scalar_prefetch=0,
        grid=(n_btiles, n_lsteps),
        in_specs=in_specs,
        out_specs=pl.BlockSpec((tb, D), lambda b, l: (b, 0)),
        scratch_shapes=[pltpu.VMEM((tb, D), jnp.float32)],
    )

    # Advisory cost estimate (fused attn + two FFN matmuls per layer).
    flops = 2 * B * L * (D * D + 2 * D * F)
    weight_bytes = L * (D * D * 2 + 2 * D * F * 2 + _VEC_ROWS * D * 4 + F * 4)
    cost = pl.CostEstimate(flops=flops,
                           transcendentals=4 * B * L,
                           bytes_accessed=weight_bytes + 2 * B * D * 4)

    # VMEM budget: double-buffered per-step inputs/outputs + activation scratch.
    # TODO(synk): tile the F (d_ff) axis of w1/w2 with an extra reduction grid
    # axis if d_model grows enough that the double-buffered FFN weights
    # approach the VMEM limit (notably v7x's 64 MiB).
    per_step_in = lps * (D * D * 2 + 2 * D * F * 2 + _VEC_ROWS * D * 4 + F * 4) \
        + tb * D * 4
    need = 2 * (per_step_in + tb * D * 4) + tb * D * 4
    vmem_limit = int(min(max(4 * need, 32 * 1024 * 1024), 100 * 1024 * 1024))

    return pl.pallas_call(
        functools.partial(_encoder_kernel, layers_per_step=lps),
        out_shape=jax.ShapeDtypeStruct((B, D), jnp.float32),
        grid_spec=grid_spec,
        compiler_params=pltpu.CompilerParams(
            dimension_semantics=("parallel", "arbitrary"),
            vmem_limit_bytes=vmem_limit),
        cost_estimate=cost,
    )(x, packed["w_attn"], packed["vec"], packed["w1"], packed["bf1"],
      packed["w2"])


def init_raw_params(key, num_layers, d_model, d_ff):
    """Deterministic synthetic per-layer parameters (weights pre-transposed
    for x @ W, i.e. shape (in_features, out_features)), stacked over layers."""
    ks = jax.random.split(key, 8)
    f32 = jnp.float32

    def w(k, shape, scale=0.05):
        return (scale * jax.random.normal(k, shape)).astype(f32)

    return {
        "wv": w(ks[0], (num_layers, d_model, d_model)),
        "bv": w(ks[1], (num_layers, 1, d_model), 0.01),
        "wo": w(ks[2], (num_layers, d_model, d_model)),
        "bo": w(ks[3], (num_layers, 1, d_model), 0.01),
        "g1": jnp.ones((num_layers, 1, d_model), f32),
        "be1": jnp.zeros((num_layers, 1, d_model), f32),
        "w1": w(ks[4], (num_layers, d_model, d_ff)),
        "bf1": w(ks[5], (num_layers, 1, d_ff), 0.01),
        "w2": w(ks[6], (num_layers, d_ff, d_model)),
        "bf2": w(ks[7], (num_layers, 1, d_model), 0.01),
        "g2": jnp.ones((num_layers, 1, d_model), f32),
        "be2": jnp.zeros((num_layers, 1, d_model), f32),
    }


def pack_params(raw):
    """Host-side preprocessing: fuse Wv@Wo, pack small vectors, bf16 weights."""
    L, D, _ = raw["wv"].shape
    # Fused attention projection: softmax==1 for seq_len=1, so
    #   out_proj(V(x)) == x @ (Wv @ Wo) + (bv @ Wo + bo)
    w_attn = jnp.einsum("lij,ljk->lik", raw["wv"], raw["wo"])
    b_attn = jnp.einsum("lij,ljk->lik", raw["bv"], raw["wo"]) + raw["bo"]
    # Packed (L, 8, D) slab of all D-sized per-layer vectors.
    vec = jnp.concatenate(
        [b_attn, raw["g1"], raw["be1"], raw["bf2"], raw["g2"], raw["be2"],
         jnp.zeros((L, _VEC_ROWS - 6, D), jnp.float32)], axis=1)
    return {
        "w_attn": w_attn.astype(jnp.bfloat16),
        "vec": vec.astype(jnp.float32),
        "w1": raw["w1"].astype(jnp.bfloat16),
        "bf1": raw["bf1"].astype(jnp.float32),
        "w2": raw["w2"].astype(jnp.bfloat16),
    }


def ref_forward_packed(x, p):
    """Pure-JAX reference using the exact packed (fused, bf16-rounded)
    parameters fed to the kernel — validates the kernel math tightly."""
    h = x
    L = p["w_attn"].shape[0]
    for l in range(L):
        w_attn = p["w_attn"][l].astype(jnp.float32)
        w1 = p["w1"][l].astype(jnp.float32)
        w2 = p["w2"][l].astype(jnp.float32)
        vec = p["vec"][l]
        b_attn, g1, be1, bf2, g2, be2 = (vec[i:i + 1, :] for i in range(6))
        bf1 = p["bf1"][l]
        y = h + (h @ w_attn + b_attn)
        mu = y.mean(-1, keepdims=True)
        var = ((y - mu) ** 2).mean(-1, keepdims=True)
        x1 = (y - mu) * jax.lax.rsqrt(var + LN_EPS) * g1 + be1
        hdn = jnp.maximum(x1 @ w1 + bf1, 0.0)
        y2 = x1 + hdn @ w2 + bf2
        mu2 = y2.mean(-1, keepdims=True)
        var2 = ((y2 - mu2) ** 2).mean(-1, keepdims=True)
        h = (y2 - mu2) * jax.lax.rsqrt(var2 + LN_EPS) * g2 + be2
    return h


def ref_forward_raw(x, p):
    """Unfused full-f32 reference of the eval-mode encoder stack (checks that
    the Wv@Wo fusion + bf16 weight storage stay numerically close)."""
    h = x
    L = p["wv"].shape[0]
    for l in range(L):
        v = h @ p["wv"][l] + p["bv"][l]
        attn = v @ p["wo"][l] + p["bo"][l]
        y = h + attn
        mu = y.mean(-1, keepdims=True)
        var = ((y - mu) ** 2).mean(-1, keepdims=True)
        x1 = (y - mu) / jnp.sqrt(var + LN_EPS) * p["g1"][l] + p["be1"][l]
        hdn = jnp.maximum(x1 @ p["w1"][l] + p["bf1"][l], 0.0)
        y2 = x1 + hdn @ p["w2"][l] + p["bf2"][l]
        mu2 = y2.mean(-1, keepdims=True)
        var2 = ((y2 - mu2) ** 2).mean(-1, keepdims=True)
        h = (y2 - mu2) / jnp.sqrt(var2 + LN_EPS) * p["g2"][l] + p["be2"][l]
    return h


if __name__ == "__main__":
    # Small shapes consistent with the module: input_size (=d_model)=32,
    # batch=2, num_layers=2, dim_feedforward=2048 (torch default).
    B, D, F, L = 2, 32, 2048, 2

    key = jax.random.PRNGKey(0)
    kx, kp = jax.random.split(key)
    x = jax.random.normal(kx, (B, D), dtype=jnp.float32)

    raw = init_raw_params(kp, L, D, F)
    packed = pack_params(raw)

    out = transformer_forward(x, packed)
    out = jax.block_until_ready(out)

    assert out.shape == (B, D) and out.dtype == jnp.float32

    ref_p = ref_forward_packed(x, packed)
    err_p = jnp.max(jnp.abs(out - ref_p))
    assert jnp.allclose(out, ref_p, rtol=1e-4, atol=1e-4), (
        f"packed-ref max abs err {err_p}")

    ref_r = ref_forward_raw(x, raw)
    err_r = jnp.max(jnp.abs(out - ref_r))
    assert jnp.allclose(out, ref_r, rtol=5e-2, atol=5e-2), (
        f"raw-ref (fusion+bf16) max abs err {err_r}")

    print("KERNEL_OK")
</pallas_src>

<mosaic_0001>
module attributes {stable_mosaic.version = 11 : i64} {
  func.func @_encoder_kernel(%arg0: i32, %arg1: i32, %arg2: memref<2x32xf32, #tpu.memory_space<vmem>>, %arg3: memref<2x32x32xbf16, #tpu.memory_space<vmem>>, %arg4: memref<2x8x32xf32, #tpu.memory_space<vmem>>, %arg5: memref<2x32x2048xbf16, #tpu.memory_space<vmem>>, %arg6: memref<2x1x2048xf32, #tpu.memory_space<vmem>>, %arg7: memref<2x2048x32xbf16, #tpu.memory_space<vmem>>, %arg8: memref<2x32xf32, #tpu.memory_space<vmem>>, %arg9: memref<2x32xf32, #tpu.memory_space<vmem>>) attributes {dimension_semantics = [#tpu.dimension_semantics<parallel>, #tpu.dimension_semantics<arbitrary>], iteration_bounds = array<i64: 1, 1>, scalar_prefetch = 0 : i64, scratch_operands = 1 : i64, tpu.core_type = #tpu.core_type<tc>, window_params = [{transform_indices = @transform_0, window_bounds = array<i64: 2, 32>}, {transform_indices = @transform_1, window_bounds = array<i64: 2, 32, 32>}, {transform_indices = @transform_2, window_bounds = array<i64: 2, 8, 32>}, {transform_indices = @transform_3, window_bounds = array<i64: 2, 32, 2048>}, {transform_indices = @transform_4, window_bounds = array<i64: 2, 1, 2048>}, {transform_indices = @transform_5, window_bounds = array<i64: 2, 2048, 32>}, {transform_indices = @transform_6, window_bounds = array<i64: 2, 32>}]} {
    %c0_i32 = arith.constant 0 : i32
    %0 = arith.cmpi eq, %arg1, %c0_i32 : i32
    %1 = arith.extui %0 : i1 to i32
    %c0_i32_0 = arith.constant 0 : i32
    %2 = arith.cmpi ne, %1, %c0_i32_0 : i32
    scf.if %2 {
      %c0_62 = arith.constant 0 : index
      %c0_63 = arith.constant 0 : index
      %160 = vector.load %arg2[%c0_62, %c0_63] : memref<2x32xf32, #tpu.memory_space<vmem>>, vector<2x32xf32>
      %c0_64 = arith.constant 0 : index
      %c0_65 = arith.constant 0 : index
      %161 = vector.load %arg9[%c0_64, %c0_65] : memref<2x32xf32, #tpu.memory_space<vmem>>, vector<2x32xf32>
      tpu.vector_store %arg9[%c0_64, %c0_65], %160 {strides = array<i32>} : memref<2x32xf32, #tpu.memory_space<vmem>>, vector<2x32xf32>,
    } else {
    }
    %c0 = arith.constant 0 : index
    %c0_1 = arith.constant 0 : index
    %3 = vector.load %arg9[%c0, %c0_1] : memref<2x32xf32, #tpu.memory_space<vmem>>, vector<2x32xf32>
    %c0_2 = arith.constant 0 : index
    %c0_3 = arith.constant 0 : index
    %c0_4 = arith.constant 0 : index
    %4 = vector.load %arg3[%c0_2, %c0_3, %c0_4] : memref<2x32x32xbf16, #tpu.memory_space<vmem>>, vector<1x32x32xbf16>
    %5 = vector.shape_cast %4 : vector<1x32x32xbf16> to vector<32x32xbf16>
    %6 = arith.extf %5 : vector<32x32xbf16> to vector<32x32xf32>
    %c0_5 = arith.constant 0 : index
    %c0_6 = arith.constant 0 : index
    %c0_7 = arith.constant 0 : index
    %7 = vector.load %arg5[%c0_5, %c0_6, %c0_7] : memref<2x32x2048xbf16, #tpu.memory_space<vmem>>, vector<1x32x2048xbf16>
    %8 = vector.shape_cast %7 : vector<1x32x2048xbf16> to vector<32x2048xbf16>
    %9 = arith.extf %8 : vector<32x2048xbf16> to vector<32x2048xf32>
    %c0_8 = arith.constant 0 : index
    %c0_9 = arith.constant 0 : index
    %c0_10 = arith.constant 0 : index
    %10 = vector.load %arg7[%c0_8, %c0_9, %c0_10] : memref<2x2048x32xbf16, #tpu.memory_space<vmem>>, vector<1x2048x32xbf16>
    %11 = vector.shape_cast %10 : vector<1x2048x32xbf16> to vector<2048x32xbf16>
    %12 = arith.extf %11 : vector<2048x32xbf16> to vector<2048x32xf32>
    %c0_11 = arith.constant 0 : index
    %c0_12 = arith.constant 0 : index
    %c0_13 = arith.constant 0 : index
    %13 = vector.load %arg4[%c0_11, %c0_12, %c0_13] : memref<2x8x32xf32, #tpu.memory_space<vmem>>, vector<1x8x32xf32>
    %14 = vector.shape_cast %13 : vector<1x8x32xf32> to vector<8x32xf32>
    %15 = vector.extract_strided_slice %14 {offsets = [0, 0], sizes = [1, 32], strides = [1, 1]} : vector<8x32xf32> to vector<1x32xf32>
    %16 = vector.extract_strided_slice %14 {offsets = [1, 0], sizes = [1, 32], strides = [1, 1]} : vector<8x32xf32> to vector<1x32xf32>
    %17 = vector.extract_strided_slice %14 {offsets = [2, 0], sizes = [1, 32], strides = [1, 1]} : vector<8x32xf32> to vector<1x32xf32>
    %18 = vector.extract_strided_slice %14 {offsets = [3, 0], sizes = [1, 32], strides = [1, 1]} : vector<8x32xf32> to vector<1x32xf32>
    %19 = vector.extract_strided_slice %14 {offsets = [4, 0], sizes = [1, 32], strides = [1, 1]} : vector<8x32xf32> to vector<1x32xf32>
    %20 = vector.extract_strided_slice %14 {offsets = [5, 0], sizes = [1, 32], strides = [1, 1]} : vector<8x32xf32> to vector<1x32xf32>
    %c0_14 = arith.constant 0 : index
    %c0_15 = arith.constant 0 : index
    %c0_16 = arith.constant 0 : index
    %21 = vector.load %arg6[%c0_14, %c0_15, %c0_16] : memref<2x1x2048xf32, #tpu.memory_space<vmem>>, vector<1x1x2048xf32>
    %22 = vector.shape_cast %21 : vector<1x1x2048xf32> to vector<1x2048xf32>
    %cst = arith.constant dense<0.000000e+00> : vector<2x32xf32>
    %23 = tpu.matmul %3, %6, %cst {dimension_numbers = #tpu.dot_dimension_numbers<[1], [0], [0], [1], [0, 0, 1, 1], [], []>} : vector<2x32xf32>, vector<32x32xf32>, vector<2x32xf32> -> vector<2x32xf32>
    %24 = vector.broadcast %15 : vector<1x32xf32> to vector<2x32xf32>
    %25 = arith.addf %23, %24 : vector<2x32xf32>
    %26 = arith.addf %3, %25 : vector<2x32xf32>
    %cst_17 = arith.constant dense<0.000000e+00> : vector<2xf32>
    %27 = vector.multi_reduction <add>, %26, %cst_17 [1] : vector<2x32xf32> to vector<2xf32>
    %28 = vector.shape_cast %27 : vector<2xf32> to vector<2x1xf32>
    %cst_18 = arith.constant 3.200000e+01 : f32
    %29 = vector.broadcast %cst_18 : f32 to vector<2x1xf32>
    %30 = arith.divf %28, %29 : vector<2x1xf32>
    %31 = vector.broadcast %30 : vector<2x1xf32> to vector<2x32xf32>
    %32 = arith.subf %26, %31 : vector<2x32xf32>
    %33 = arith.mulf %32, %32 : vector<2x32xf32>
    %cst_19 = arith.constant dense<0.000000e+00> : vector<2xf32>
    %34 = vector.multi_reduction <add>, %33, %cst_19 [1] : vector<2x32xf32> to vector<2xf32>
    %35 = vector.shape_cast %34 : vector<2xf32> to vector<2x1xf32>
    %cst_20 = arith.constant 3.200000e+01 : f32
    %36 = vector.broadcast %cst_20 : f32 to vector<2x1xf32>
    %37 = arith.divf %35, %36 : vector<2x1xf32>
    %38 = vector.broadcast %30 : vector<2x1xf32> to vector<2x32xf32>
    %39 = arith.subf %26, %38 : vector<2x32xf32>
    %cst_21 = arith.constant 9.99999974E-6 : f32
    %40 = vector.broadcast %cst_21 : f32 to vector<2x1xf32>
    %41 = arith.addf %37, %40 : vector<2x1xf32>
    %42 = math.rsqrt %41 : vector<2x1xf32>
    %43 = vector.broadcast %42 : vector<2x1xf32> to vector<2x32xf32>
    %44 = arith.mulf %39, %43 : vector<2x32xf32>
    %45 = vector.broadcast %16 : vector<1x32xf32> to vector<2x32xf32>
    %46 = arith.mulf %44, %45 : vector<2x32xf32>
    %47 = vector.broadcast %17 : vector<1x32xf32> to vector<2x32xf32>
    %48 = arith.addf %46, %47 : vector<2x32xf32>
    %cst_22 = arith.constant dense<0.000000e+00> : vector<2x2048xf32>
    %49 = tpu.matmul %48, %9, %cst_22 {dimension_numbers = #tpu.dot_dimension_numbers<[1], [0], [0], [1], [0, 0, 1, 1], [], []>} : vector<2x32xf32>, vector<32x2048xf32>, vector<2x2048xf32> -> vector<2x2048xf32>
    %50 = vector.broadcast %22 : vector<1x2048xf32> to vector<2x2048xf32>
    %51 = arith.addf %49, %50 : vector<2x2048xf32>
    %cst_23 = arith.constant 0.000000e+00 : f32
    %52 = vector.broadcast %cst_23 : f32 to vector<2x2048xf32>
    %53 = arith.maximumf %51, %52 : vector<2x2048xf32>
    %cst_24 = arith.constant dense<0.000000e+00> : vector<2x32xf32>
    %54 = tpu.matmul %53, %12, %cst_24 {dimension_numbers = #tpu.dot_dimension_numbers<[1], [0], [0], [1], [0, 0, 1, 1], [], []>} : vector<2x2048xf32>, vector<2048x32xf32>, vector<2x32xf32> -> vector<2x32xf32>
    %55 = vector.broadcast %18 : vector<1x32xf32> to vector<2x32xf32>
    %56 = arith.addf %54, %55 : vector<2x32xf32>
    %57 = arith.addf %48, %56 : vector<2x32xf32>
    %cst_25 = arith.constant dense<0.000000e+00> : vector<2xf32>
    %58 = vector.multi_reduction <add>, %57, %cst_25 [1] : vector<2x32xf32> to vector<2xf32>
    %59 = vector.shape_cast %58 : vector<2xf32> to vector<2x1xf32>
    %cst_26 = arith.constant 3.200000e+01 : f32
    %60 = vector.broadcast %cst_26 : f32 to vector<2x1xf32>
    %61 = arith.divf %59, %60 : vector<2x1xf32>
    %62 = vector.broadcast %61 : vector<2x1xf32> to vector<2x32xf32>
    %63 = arith.subf %57, %62 : vector<2x32xf32>
    %64 = arith.mulf %63, %63 : vector<2x32xf32>
    %cst_27 = arith.constant dense<0.000000e+00> : vector<2xf32>
    %65 = vector.multi_reduction <add>, %64, %cst_27 [1] : vector<2x32xf32> to vector<2xf32>
    %66 = vector.shape_cast %65 : vector<2xf32> to vector<2x1xf32>
    %cst_28 = arith.constant 3.200000e+01 : f32
    %67 = vector.broadcast %cst_28 : f32 to vector<2x1xf32>
    %68 = arith.divf %66, %67 : vector<2x1xf32>
    %69 = vector.broadcast %61 : vector<2x1xf32> to vector<2x32xf32>
    %70 = arith.subf %57, %69 : vector<2x32xf32>
    %cst_29 = arith.constant 9.99999974E-6 : f32
    %71 = vector.broadcast %cst_29 : f32 to vector<2x1xf32>
    %72 = arith.addf %68, %71 : vector<2x1xf32>
    %73 = math.rsqrt %72 : vector<2x1xf32>
    %74 = vector.broadcast %73 : vector<2x1xf32> to vector<2x32xf32>
    %75 = arith.mulf %70, %74 : vector<2x32xf32>
    %76 = vector.broadcast %19 : vector<1x32xf32> to vector<2x32xf32>
    %77 = arith.mulf %75, %76 : vector<2x32xf32>
    %78 = vector.broadcast %20 : vector<1x32xf32> to vector<2x32xf32>
    %79 = arith.addf %77, %78 : vector<2x32xf32>
    %c1 = arith.constant 1 : index
    %c0_30 = arith.constant 0 : index
    %c0_31 = arith.constant 0 : index
    %80 = vector.load %arg3[%c1, %c0_30, %c0_31] : memref<2x32x32xbf16, #tpu.memory_space<vmem>>, vector<1x32x32xbf16>
    %81 = vector.shape_cast %80 : vector<1x32x32xbf16> to vector<32x32xbf16>
    %82 = arith.extf %81 : vector<32x32xbf16> to vector<32x32xf32>
    %c1_32 = arith.constant 1 : index
    %c0_33 = arith.constant 0 : index
    %c0_34 = arith.constant 0 : index
    %83 = vector.load %arg5[%c1_32, %c0_33, %c0_34] : memref<2x32x2048xbf16, #tpu.memory_space<vmem>>, vector<1x32x2048xbf16>
    %84 = vector.shape_cast %83 : vector<1x32x2048xbf16> to vector<32x2048xbf16>
    %85 = arith.extf %84 : vector<32x2048xbf16> to vector<32x2048xf32>
    %c1_35 = arith.constant 1 : index
    %c0_36 = arith.constant 0 : index
    %c0_37 = arith.constant 0 : index
    %86 = vector.load %arg7[%c1_35, %c0_36, %c0_37] : memref<2x2048x32xbf16, #tpu.memory_space<vmem>>, vector<1x2048x32xbf16>
    %87 = vector.shape_cast %86 : vector<1x2048x32xbf16> to vector<2048x32xbf16>
    %88 = arith.extf %87 : vector<2048x32xbf16> to vector<2048x32xf32>
    %c1_38 = arith.constant 1 : index
    %c0_39 = arith.constant 0 : index
    %c0_40 = arith.constant 0 : index
    %89 = vector.load %arg4[%c1_38, %c0_39, %c0_40] : memref<2x8x32xf32, #tpu.memory_space<vmem>>, vector<1x8x32xf32>
    %90 = vector.shape_cast %89 : vector<1x8x32xf32> to vector<8x32xf32>
    %91 = vector.extract_strided_slice %90 {offsets = [0, 0], sizes = [1, 32], strides = [1, 1]} : vector<8x32xf32> to vector<1x32xf32>
    %92 = vector.extract_strided_slice %90 {offsets = [1, 0], sizes = [1, 32], strides = [1, 1]} : vector<8x32xf32> to vector<1x32xf32>
    %93 = vector.extract_strided_slice %90 {offsets = [2, 0], sizes = [1, 32], strides = [1, 1]} : vector<8x32xf32> to vector<1x32xf32>
    %94 = vector.extract_strided_slice %90 {offsets = [3, 0], sizes = [1, 32], strides = [1, 1]} : vector<8x32xf32> to vector<1x32xf32>
    %95 = vector.extract_strided_slice %90 {offsets = [4, 0], sizes = [1, 32], strides = [1, 1]} : vector<8x32xf32> to vector<1x32xf32>
    %96 = vector.extract_strided_slice %90 {offsets = [5, 0], sizes = [1, 32], strides = [1, 1]} : vector<8x32xf32> to vector<1x32xf32>
    %c1_41 = arith.constant 1 : index
    %c0_42 = arith.constant 0 : index
    %c0_43 = arith.constant 0 : index
    %97 = vector.load %arg6[%c1_41, %c0_42, %c0_43] : memref<2x1x2048xf32, #tpu.memory_space<vmem>>, vector<1x1x2048xf32>
    %98 = vector.shape_cast %97 : vector<1x1x2048xf32> to vector<1x2048xf32>
    %cst_44 = arith.constant dense<0.000000e+00> : vector<2x32xf32>
    %99 = tpu.matmul %79, %82, %cst_44 {dimension_numbers = #tpu.dot_dimension_numbers<[1], [0], [0], [1], [0, 0, 1, 1], [], []>} : vector<2x32xf32>, vector<32x32xf32>, vector<2x32xf32> -> vector<2x32xf32>
    %100 = vector.broadcast %91 : vector<1x32xf32> to vector<2x32xf32>
    %101 = arith.addf %99, %100 : vector<2x32xf32>
    %102 = arith.addf %79, %101 : vector<2x32xf32>
    %cst_45 = arith.constant dense<0.000000e+00> : vector<2xf32>
    %103 = vector.multi_reduction <add>, %102, %cst_45 [1] : vector<2x32xf32> to vector<2xf32>
    %104 = vector.shape_cast %103 : vector<2xf32> to vector<2x1xf32>
    %cst_46 = arith.constant 3.200000e+01 : f32
    %105 = vector.broadcast %cst_46 : f32 to vector<2x1xf32>
    %106 = arith.divf %104, %105 : vector<2x1xf32>
    %107 = vector.broadcast %106 : vector<2x1xf32> to vector<2x32xf32>
    %108 = arith.subf %102, %107 : vector<2x32xf32>
    %109 = arith.mulf %108, %108 : vector<2x32xf32>
    %cst_47 = arith.constant dense<0.000000e+00> : vector<2xf32>
    %110 = vector.multi_reduction <add>, %109, %cst_47 [1] : vector<2x32xf32> to vector<2xf32>
    %111 = vector.shape_cast %110 : vector<2xf32> to vector<2x1xf32>
    %cst_48 = arith.constant 3.200000e+01 : f32
    %112 = vector.broadcast %cst_48 : f32 to vector<2x1xf32>
    %113 = arith.divf %111, %112 : vector<2x1xf32>
    %114 = vector.broadcast %106 : vector<2x1xf32> to vector<2x32xf32>
    %115 = arith.subf %102, %114 : vector<2x32xf32>
    %cst_49 = arith.constant 9.99999974E-6 : f32
    %116 = vector.broadcast %cst_49 : f32 to vector<2x1xf32>
    %117 = arith.addf %113, %116 : vector<2x1xf32>
    %118 = math.rsqrt %117 : vector<2x1xf32>
    %119 = vector.broadcast %118 : vector<2x1xf32> to vector<2x32xf32>
    %120 = arith.mulf %115, %119 : vector<2x32xf32>
    %121 = vector.broadcast %92 : vector<1x32xf32> to vector<2x32xf32>
    %122 = arith.mulf %120, %121 : vector<2x32xf32>
    %123 = vector.broadcast %93 : vector<1x32xf32> to vector<2x32xf32>
    %124 = arith.addf %122, %123 : vector<2x32xf32>
    %cst_50 = arith.constant dense<0.000000e+00> : vector<2x2048xf32>
    %125 = tpu.matmul %124, %85, %cst_50 {dimension_numbers = #tpu.dot_dimension_numbers<[1], [0], [0], [1], [0, 0, 1, 1], [], []>} : vector<2x32xf32>, vector<32x2048xf32>, vector<2x2048xf32> -> vector<2x2048xf32>
    %126 = vector.broadcast %98 : vector<1x2048xf32> to vector<2x2048xf32>
    %127 = arith.addf %125, %126 : vector<2x2048xf32>
    %cst_51 = arith.constant 0.000000e+00 : f32
    %128 = vector.broadcast %cst_51 : f32 to vector<2x2048xf32>
    %129 = arith.maximumf %127, %128 : vector<2x2048xf32>
    %cst_52 = arith.constant dense<0.000000e+00> : vector<2x32xf32>
    %130 = tpu.matmul %129, %88, %cst_52 {dimension_numbers = #tpu.dot_dimension_numbers<[1], [0], [0], [1], [0, 0, 1, 1], [], []>} : vector<2x2048xf32>, vector<2048x32xf32>, vector<2x32xf32> -> vector<2x32xf32>
    %131 = vector.broadcast %94 : vector<1x32xf32> to vector<2x32xf32>
    %132 = arith.addf %130, %131 : vector<2x32xf32>
    %133 = arith.addf %124, %132 : vector<2x32xf32>
    %cst_53 = arith.constant dense<0.000000e+00> : vector<2xf32>
    %134 = vector.multi_reduction <add>, %133, %cst_53 [1] : vector<2x32xf32> to vector<2xf32>
    %135 = vector.shape_cast %134 : vector<2xf32> to vector<2x1xf32>
    %cst_54 = arith.constant 3.200000e+01 : f32
    %136 = vector.broadcast %cst_54 : f32 to vector<2x1xf32>
    %137 = arith.divf %135, %136 : vector<2x1xf32>
    %138 = vector.broadcast %137 : vector<2x1xf32> to vector<2x32xf32>
    %139 = arith.subf %133, %138 : vector<2x32xf32>
    %140 = arith.mulf %139, %139 : vector<2x32xf32>
    %cst_55 = arith.constant dense<0.000000e+00> : vector<2xf32>
    %141 = vector.multi_reduction <add>, %140, %cst_55 [1] : vector<2x32xf32> to vector<2xf32>
    %142 = vector.shape_cast %141 : vector<2xf32> to vector<2x1xf32>
    %cst_56 = arith.constant 3.200000e+01 : f32
    %143 = vector.broadcast %cst_56 : f32 to vector<2x1xf32>
    %144 = arith.divf %142, %143 : vector<2x1xf32>
    %145 = vector.broadcast %137 : vector<2x1xf32> to vector<2x32xf32>
    %146 = arith.subf %133, %145 : vector<2x32xf32>
    %cst_57 = arith.constant 9.99999974E-6 : f32
    %147 = vector.broadcast %cst_57 : f32 to vector<2x1xf32>
    %148 = arith.addf %144, %147 : vector<2x1xf32>
    %149 = math.rsqrt %148 : vector<2x1xf32>
    %150 = vector.broadcast %149 : vector<2x1xf32> to vector<2x32xf32>
    %151 = arith.mulf %146, %150 : vector<2x32xf32>
    %152 = vector.broadcast %95 : vector<1x32xf32> to vector<2x32xf32>
    %153 = arith.mulf %151, %152 : vector<2x32xf32>
    %154 = vector.broadcast %96 : vector<1x32xf32> to vector<2x32xf32>
    %155 = arith.addf %153, %154 : vector<2x32xf32>
    %c0_58 = arith.constant 0 : index
    %c0_59 = arith.constant 0 : index
    %156 = vector.load %arg9[%c0_58, %c0_59] : memref<2x32xf32, #tpu.memory_space<vmem>>, vector<2x32xf32>
    tpu.vector_store %arg9[%c0_58, %c0_59], %155 {strides = array<i32>} : memref<2x32xf32, #tpu.memory_space<vmem>>, vector<2x32xf32>,
    %c0_i32_60 = arith.constant 0 : i32
    %157 = arith.cmpi eq, %arg1, %c0_i32_60 : i32
    %158 = arith.extui %157 : i1 to i32
    %c0_i32_61 = arith.constant 0 : i32
    %159 = arith.cmpi ne, %158, %c0_i32_61 : i32
    scf.if %159 {
      %c0_62 = arith.constant 0 : index
      %c0_63 = arith.constant 0 : index
      %160 = vector.load %arg8[%c0_62, %c0_63] : memref<2x32xf32, #tpu.memory_space<vmem>>, vector<2x32xf32>
      tpu.vector_store %arg8[%c0_62, %c0_63], %155 {strides = array<i32>} : memref<2x32xf32, #tpu.memory_space<vmem>>, vector<2x32xf32>,
    } else {
    }
    return
  }
  func.func @transform_0(%arg0: i32, %arg1: i32) -> (i32, i32) {
    %c0_i32 = arith.constant 0 : i32
    %c0_i32_0 = arith.constant 0 : i32
    return %arg0, %c0_i32 : i32, i32
  }
  func.func @transform_1(%arg0: i32, %arg1: i32) -> (i32, i32, i32) {
    %c0_i32 = arith.constant 0 : i32
    %c0_i32_0 = arith.constant 0 : i32
    %c0_i32_1 = arith.constant 0 : i32
    return %arg1, %c0_i32, %c0_i32_0 : i32, i32, i32
  }
  func.func @transform_2(%arg0: i32, %arg1: i32) -> (i32, i32, i32) {
    %c0_i32 = arith.constant 0 : i32
    %c0_i32_0 = arith.constant 0 : i32
    %c0_i32_1 = arith.constant 0 : i32
    return %arg1, %c0_i32, %c0_i32_0 : i32, i32, i32
  }
  func.func @transform_3(%arg0: i32, %arg1: i32) -> (i32, i32, i32) {
    %c0_i32 = arith.constant 0 : i32
    %c0_i32_0 = arith.constant 0 : i32
    %c0_i32_1 = arith.constant 0 : i32
    return %arg1, %c0_i32, %c0_i32_0 : i32, i32, i32
  }
  func.func @transform_4(%arg0: i32, %arg1: i32) -> (i32, i32, i32) {
    %c0_i32 = arith.constant 0 : i32
    %c0_i32_0 = arith.constant 0 : i32
    %c0_i32_1 = arith.constant 0 : i32
    return %arg1, %c0_i32, %c0_i32_0 : i32, i32, i32
  }
  func.func @transform_5(%arg0: i32, %arg1: i32) -> (i32, i32, i32) {
    %c0_i32 = arith.constant 0 : i32
    %c0_i32_0 = arith.constant 0 : i32
    %c0_i32_1 = arith.constant 0 : i32
    return %arg1, %c0_i32, %c0_i32_0 : i32, i32, i32
  }
  func.func @transform_6(%arg0: i32, %arg1: i32) -> (i32, i32) {
    %c0_i32 = arith.constant 0 : i32
    %c0_i32_0 = arith.constant 0 : i32
    return %arg0, %c0_i32 : i32, i32
  }
}

</mosaic_0001>

<llo_original>
// kernel: tpu_custom_call.1
$region0: #{tpu_custom_call.1}
  #allocation0 [shape = 'u32[]', space=smem, size = 0x4, offset = 0x4, fixed_abs, tag = 'smem constant byte address 0x4 - core index']
  #allocation1 [shape = 'u32[72,128]{1,0:T(1,128)}', space=vmem, size = 0x9000, scoped, tag = 'internal scratch']
  #allocation2 [shape = 'f32[2,32]{1,0:T(2,128)}', space=vmem, size = 0x400, scoped, tag = 'scratch operand']
  %s0 = inlined_call_operand.vmem [shape: f32[2,32], index: 0, kind: input, shape index: {}]
  %s1 = inlined_call_operand.vmem [shape: bf16[2,32,32], index: 1, kind: input, shape index: {}]
  %s2 = inlined_call_operand.vmem [shape: f32[2,8,32], index: 2, kind: input, shape index: {}]
  %s3 = inlined_call_operand.vmem [shape: bf16[2,32,2048], index: 3, kind: input, shape index: {}]
  %s4 = inlined_call_operand.vmem [shape: f32[2,1,2048], index: 4, kind: input, shape index: {}]
  %s5 = inlined_call_operand.vmem [shape: bf16[2,2048,32], index: 5, kind: input, shape index: {}]
  %s6 = inlined_call_operand.hbm [shape: f32[2,32], index: 6, kind: output, shape index: {}]
  %s7 = sld [smem:[#allocation0]]
  $region42: #{tpu_custom_call.1} parent=0
    _
  %s9 = ssub.s32 1, %s7
  %s10 = scalar_select 0, %s9, %s7
  $region1: #{tpu_custom_call.1} parent=0
    #allocation3 [shape = 'u8[1024]{0}', space=vmem, size = 0x400, scoped, tag = 'output window, operand 0, single buffered']
    #allocation4 [shape = 's32[1]{0}', space=sflag, size = 0x4, scoped, tag = 'scoped memory for tpu_custom_call.1']
    %11 = vsyncpa [#allocation4], 0
    // Predicated region
    $region2: #{tpu_custom_call.1} parent=1 // pred_check
      _
    $region3: #{tpu_custom_call.1} parent=1 // pred_check_branch
      %13 = sbr.rel (0) target = $region5
    $region4: #{tpu_custom_call.1} parent=1 // pred_region
      _
    $region5: #{tpu_custom_call.1} parent=1 // pred_fallthru
      _
    // Predicated region
    $region6: #{tpu_custom_call.1} parent=1 // pred_check
      _
    $region7: #{tpu_custom_call.1} parent=1 // pred_check_branch
      %15 = sbr.rel (0) target = $region9
    $region8: #{tpu_custom_call.1} parent=1 // pred_region
      _
    $region9: #{tpu_custom_call.1} parent=1 // pred_fallthru
      _
    // Predicated region
    $region10: #{tpu_custom_call.1} parent=1 // pred_check
      _
    $region11: #{tpu_custom_call.1} parent=1 // pred_check_branch
      %17 = sbr.rel (0) target = $region13
    $region12: #{tpu_custom_call.1} parent=1 // pred_region
      _
    $region13: #{tpu_custom_call.1} parent=1 // pred_fallthru
      _
    // Predicated region
    $region14: #{tpu_custom_call.1} parent=1 // pred_check
      _
    $region15: #{tpu_custom_call.1} parent=1 // pred_check_branch
      %19 = sbr.rel (0) target = $region17
    $region16: #{tpu_custom_call.1} parent=1 // pred_region
      _
    $region17: #{tpu_custom_call.1} parent=1 // pred_fallthru
      _
    // Predicated region
    $region18: #{tpu_custom_call.1} parent=1 // pred_check
      _
    $region19: #{tpu_custom_call.1} parent=1 // pred_check_branch
      %21 = sbr.rel (0) target = $region21
    $region20: #{tpu_custom_call.1} parent=1 // pred_region
      _
    $region21: #{tpu_custom_call.1} parent=1 // pred_fallthru
      _
    // Predicated region
    $region22: #{tpu_custom_call.1} parent=1 // pred_check
      _
    $region23: #{tpu_custom_call.1} parent=1 // pred_check_branch
      %23 = sbr.rel (0) target = $region25
    $region24: #{tpu_custom_call.1} parent=1 // pred_region
      _
    $region25: #{tpu_custom_call.1} parent=1 // pred_fallthru
      _
    %p24 = scmp.eq.s32.totalorder 0, 0
    // Predicated region
    $region26: #{tpu_custom_call.1} parent=1 // pred_check
      %p25 = pneg %p24
    $region27: #{tpu_custom_call.1} parent=1 // pred_check_branch
      %27 = sbr.rel (%p25) target = $region29
    $region28: #{tpu_custom_call.1} parent=1 // pred_region
      %v28 = vld [vmem:[%s0] sm:$0x3]
      %vm29 = vcmask 254976
      %30 = vst.msk [vmem:[#allocation2] sm:$0x3] %vm29, %v28
    $region29: #{tpu_custom_call.1} parent=1 // pred_fallthru
      _
    %v31 = vld [vmem:[#allocation2] sm:$0x3]
    %v32 = vld [vmem:[%s1] sm:$0xf]
    %v33 = vld [vmem:[%s1 + $0x4] sm:$0xf]
    %v34 = vld [vmem:[%s1 + $0x8] sm:$0xf]
    %v35 = vld [vmem:[%s1 + $0xc] sm:$0xf]
    %v36 = vunpack.c.l.bf16 %v32
    %v37 = vunpack.c.l.bf16 %v33
    %v38 = vunpack.c.l.bf16 %v34
    %v39 = vunpack.c.l.bf16 %v35
    %v40 = vld [vmem:[%s3] sm:$0xff]
    %v41 = vld [vmem:[%s3 + $0x8] sm:$0xff]
    %v42 = vld [vmem:[%s3 + $0x10] sm:$0xff]
    %v43 = vld [vmem:[%s3 + $0x18] sm:$0xff]
    %v44 = vld [vmem:[%s3 + $0x20] sm:$0xff]
    %v45 = vld [vmem:[%s3 + $0x28] sm:$0xff]
    %v46 = vld [vmem:[%s3 + $0x30] sm:$0xff]
    %v47 = vld [vmem:[%s3 + $0x38] sm:$0xff]
    %v48 = vld [vmem:[%s3 + $0x40] sm:$0xff]
    %v49 = vld [vmem:[%s3 + $0x48] sm:$0xff]
    %v50 = vld [vmem:[%s3 + $0x50] sm:$0xff]
    %v51 = vld [vmem:[%s3 + $0x58] sm:$0xff]
    %v52 = vld [vmem:[%s3 + $0x60] sm:$0xff]
    %v53 = vld [vmem:[%s3 + $0x68] sm:$0xff]
    %v54 = vld [vmem:[%s3 + $0x70] sm:$0xff]
    %v55 = vld [vmem:[%s3 + $0x78] sm:$0xff]
    %v56 = vld [vmem:[%s3 + $0x80] sm:$0xff]
    %v57 = vld [vmem:[%s3 + $0x88] sm:$0xff]
    %v58 = vld [vmem:[%s3 + $0x90] sm:$0xff]
    %v59 = vld [vmem:[%s3 + $0x98] sm:$0xff]
    %v60 = vld [vmem:[%s3 + $0xa0] sm:$0xff]
    %v61 = vld [vmem:[%s3 + $0xa8] sm:$0xff]
    %v62 = vld [vmem:[%s3 + $0xb0] sm:$0xff]
    %v63 = vld [vmem:[%s3 + $0xb8] sm:$0xff]
    %v64 = vld [vmem:[%s3 + $0xc0] sm:$0xff]
    %v65 = vld [vmem:[%s3 + $0xc8] sm:$0xff]
    %v66 = vld [vmem:[%s3 + $0xd0] sm:$0xff]
    %v67 = vld [vmem:[%s3 + $0xd8] sm:$0xff]
    %v68 = vld [vmem:[%s3 + $0xe0] sm:$0xff]
    %v69 = vld [vmem:[%s3 + $0xe8] sm:$0xff]
    %v70 = vld [vmem:[%s3 + $0xf0] sm:$0xff]
    %v71 = vld [vmem:[%s3 + $0xf8] sm:$0xff]
    %v72 = vunpack.c.l.bf16 %v40
    %v73 = vunpack.c.h.bf16 %v40
    %v74 = vunpack.c.l.bf16 %v41
    %v75 = vunpack.c.h.bf16 %v41
    %v76 = vunpack.c.l.bf16 %v42
    %v77 = vunpack.c.h.bf16 %v42
    %v78 = vunpack.c.l.bf16 %v43
    %v79 = vunpack.c.h.bf16 %v43
    %v80 = vunpack.c.l.bf16 %v44
    %v81 = vunpack.c.h.bf16 %v44
    %v82 = vunpack.c.l.bf16 %v45
    %v83 = vunpack.c.h.bf16 %v45
    %v84 = vunpack.c.l.bf16 %v46
    %v85 = vunpack.c.h.bf16 %v46
    %v86 = vunpack.c.l.bf16 %v47
    %v87 = vunpack.c.h.bf16 %v47
    %v88 = vunpack.c.l.bf16 %v48
    %v89 = vunpack.c.h.bf16 %v48
    %v90 = vunpack.c.l.bf16 %v49
    %v91 = vunpack.c.h.bf16 %v49
    %v92 = vunpack.c.l.bf16 %v50
    %v93 = vunpack.c.h.bf16 %v50
    %v94 = vunpack.c.l.bf16 %v51
    %v95 = vunpack.c.h.bf16 %v51
    %v96 = vunpack.c.l.bf16 %v52
    %v97 = vunpack.c.h.bf16 %v52
    %v98 = vunpack.c.l.bf16 %v53
    %v99 = vunpack.c.h.bf16 %v53
    %v100 = vunpack.c.l.bf16 %v54
    %v101 = vunpack.c.h.bf16 %v54
    %v102 = vunpack.c.l.bf16 %v55
    %v103 = vunpack.c.h.bf16 %v55
    %v104 = vunpack.c.l.bf16 %v56
    %v105 = vunpack.c.h.bf16 %v56
    %v106 = vunpack.c.l.bf16 %v57
    %v107 = vunpack.c.h.bf16 %v57
    %v108 = vunpack.c.l.bf16 %v58
    %v109 = vunpack.c.h.bf16 %v58
    %v110 = vunpack.c.l.bf16 %v59
    %v111 = vunpack.c.h.bf16 %v59
    %v112 = vunpack.c.l.bf16 %v60
    %v113 = vunpack.c.h.bf16 %v60
    %v114 = vunpack.c.l.bf16 %v61
    %v115 = vunpack.c.h.bf16 %v61
    %v116 = vunpack.c.l.bf16 %v62
    %v117 = vunpack.c.h.bf16 %v62
    %v118 = vunpack.c.l.bf16 %v63
    %v119 = vunpack.c.h.bf16 %v63
    %v120 = vunpack.c.l.bf16 %v64
    %v121 = vunpack.c.h.bf16 %v64
    %v122 = vunpack.c.l.bf16 %v65
    %v123 = vunpack.c.h.bf16 %v65
    %v124 = vunpack.c.l.bf16 %v66
    %v125 = vunpack.c.h.bf16 %v66
    %v126 = vunpack.c.l.bf16 %v67
    %v127 = vunpack.c.h.bf16 %v67
    %v128 = vunpack.c.l.bf16 %v68
    %v129 = vunpack.c.h.bf16 %v68
    %v130 = vunpack.c.l.bf16 %v69
    %v131 = vunpack.c.h.bf16 %v69
    %v132 = vunpack.c.l.bf16 %v70
    %v133 = vunpack.c.h.bf16 %v70
    %v134 = vunpack.c.l.bf16 %v71
    %v135 = vunpack.c.h.bf16 %v71
    %v136 = vld [vmem:[%s5] sm:$0xf]
    %v137 = vld [vmem:[%s5 + $0x4] sm:$0xf]
    %v138 = vld [vmem:[%s5 + $0x8] sm:$0xf]
    %v139 = vld [vmem:[%s5 + $0xc] sm:$0xf]
    %v140 = vld [vmem:[%s5 + $0x10] sm:$0xf]
    %v141 = vld [vmem:[%s5 + $0x14] sm:$0xf]
    %v142 = vld [vmem:[%s5 + $0x18] sm:$0xf]
    %v143 = vld [vmem:[%s5 + $0x1c] sm:$0xf]
    %v144 = vld [vmem:[%s5 + $0x20] sm:$0xf]
    %v145 = vld [vmem:[%s5 + $0x24] sm:$0xf]
    %v146 = vld [vmem:[%s5 + $0x28] sm:$0xf]
    %v147 = vld [vmem:[%s5 + $0x2c] sm:$0xf]
    %v148 = vld [vmem:[%s5 + $0x30] sm:$0xf]
    %v149 = vld [vmem:[%s5 + $0x34] sm:$0xf]
    %v150 = vld [vmem:[%s5 + $0x38] sm:$0xf]
    %v151 = vld [vmem:[%s5 + $0x3c] sm:$0xf]
    %v152 = vld [vmem:[%s5 + $0x40] sm:$0xf]
    %v153 = vld [vmem:[%s5 + $0x44] sm:$0xf]
    %v154 = vld [vmem:[%s5 + $0x48] sm:$0xf]
    %v155 = vld [vmem:[%s5 + $0x4c] sm:$0xf]
    %v156 = vld [vmem:[%s5 + $0x50] sm:$0xf]
    %v157 = vld [vmem:[%s5 + $0x54] sm:$0xf]
    %v158 = vld [vmem:[%s5 + $0x58] sm:$0xf]
    %v159 = vld [vmem:[%s5 + $0x5c] sm:$0xf]
    %v160 = vld [vmem:[%s5 + $0x60] sm:$0xf]
    %v161 = vld [vmem:[%s5 + $0x64] sm:$0xf]
    %v162 = vld [vmem:[%s5 + $0x68] sm:$0xf]
    %v163 = vld [vmem:[%s5 + $0x6c] sm:$0xf]
    %v164 = vld [vmem:[%s5 + $0x70] sm:$0xf]
    %v165 = vld [vmem:[%s5 + $0x74] sm:$0xf]
    %v166 = vld [vmem:[%s5 + $0x78] sm:$0xf]
    %v167 = vld [vmem:[%s5 + $0x7c] sm:$0xf]
    %v168 = vld [vmem:[%s5 + $0x80] sm:$0xf]
    %v169 = vld [vmem:[%s5 + $0x84] sm:$0xf]
    %v170 = vld [vmem:[%s5 + $0x88] sm:$0xf]
    %v171 = vld [vmem:[%s5 + $0x8c] sm:$0xf]
    %v172 = vld [vmem:[%s5 + $0x90] sm:$0xf]
    %v173 = vld [vmem:[%s5 + $0x94] sm:$0xf]
    %v174 = vld [vmem:[%s5 + $0x98] sm:$0xf]
    %v175 = vld [vmem:[%s5 + $0x9c] sm:$0xf]
    %v176 = vld [vmem:[%s5 + $0xa0] sm:$0xf]
    %v177 = vld [vmem:[%s5 + $0xa4] sm:$0xf]
    %v178 = vld [vmem:[%s5 + $0xa8] sm:$0xf]
    %v179 = vld [vmem:[%s5 + $0xac] sm:$0xf]
    %v180 = vld [vmem:[%s5 + $0xb0] sm:$0xf]
    %v181 = vld [vmem:[%s5 + $0xb4] sm:$0xf]
    %v182 = vld [vmem:[%s5 + $0xb8] sm:$0xf]
    %v183 = vld [vmem:[%s5 + $0xbc] sm:$0xf]
    %v184 = vld [vmem:[%s5 + $0xc0] sm:$0xf]
    %v185 = vld [vmem:[%s5 + $0xc4] sm:$0xf]
    %v186 = vld [vmem:[%s5 + $0xc8] sm:$0xf]
    %v187 = vld [vmem:[%s5 + $0xcc] sm:$0xf]
    %v188 = vld [vmem:[%s5 + $0xd0] sm:$0xf]
    %v189 = vld [vmem:[%s5 + $0xd4] sm:$0xf]
    %v190 = vld [vmem:[%s5 + $0xd8] sm:$0xf]
    %v191 = vld [vmem:[%s5 + $0xdc] sm:$0xf]
    %v192 = vld [vmem:[%s5 + $0xe0] sm:$0xf]
    %v193 = vld [vmem:[%s5 + $0xe4] sm:$0xf]
    %v194 = vld [vmem:[%s5 + $0xe8] sm:$0xf]
    %v195 = vld [vmem:[%s5 + $0xec] sm:$0xf]
    %v196 = vld [vmem:[%s5 + $0xf0] sm:$0xf]
    %v197 = vld [vmem:[%s5 + $0xf4] sm:$0xf]
    %v198 = vld [vmem:[%s5 + $0xf8] sm:$0xf]
    %v199 = vld [vmem:[%s5 + $0xfc] sm:$0xf]
    %v200 = vld [vmem:[%s5 + $0x100] sm:$0xf]
    %v201 = vld [vmem:[%s5 + $0x104] sm:$0xf]
    %v202 = vld [vmem:[%s5 + $0x108] sm:$0xf]
    %v203 = vld [vmem:[%s5 + $0x10c] sm:$0xf]
    %v204 = vld [vmem:[%s5 + $0x110] sm:$0xf]
    %v205 = vld [vmem:[%s5 + $0x114] sm:$0xf]
    %v206 = vld [vmem:[%s5 + $0x118] sm:$0xf]
    %v207 = vld [vmem:[%s5 + $0x11c] sm:$0xf]
    %v208 = vld [vmem:[%s5 + $0x120] sm:$0xf]
    %v209 = vld [vmem:[%s5 + $0x124] sm:$0xf]
    %v210 = vld [vmem:[%s5 + $0x128] sm:$0xf]
    %v211 = vld [vmem:[%s5 + $0x12c] sm:$0xf]
    %v212 = vld [vmem:[%s5 + $0x130] sm:$0xf]
    %v213 = vld [vmem:[%s5 + $0x134] sm:$0xf]
    %v214 = vld [vmem:[%s5 + $0x138] sm:$0xf]
    %v215 = vld [vmem:[%s5 + $0x13c] sm:$0xf]
    %v216 = vld [vmem:[%s5 + $0x140] sm:$0xf]
    %v217 = vld [vmem:[%s5 + $0x144] sm:$0xf]
    %v218 = vld [vmem:[%s5 + $0x148] sm:$0xf]
    %v219 = vld [vmem:[%s5 + $0x14c] sm:$0xf]
    %v220 = vld [vmem:[%s5 + $0x150] sm:$0xf]
    %v221 = vld [vmem:[%s5 + $0x154] sm:$0xf]
    %v222 = vld [vmem:[%s5 + $0x158] sm:$0xf]
    %v223 = vld [vmem:[%s5 + $0x15c] sm:$0xf]
    %v224 = vld [vmem:[%s5 + $0x160] sm:$0xf]
    %v225 = vld [vmem:[%s5 + $0x164] sm:$0xf]
    %v226 = vld [vmem:[%s5 + $0x168] sm:$0xf]
    %v227 = vld [vmem:[%s5 + $0x16c] sm:$0xf]
    %v228 = vld [vmem:[%s5 + $0x170] sm:$0xf]
    %v229 = vld [vmem:[%s5 + $0x174] sm:$0xf]
    %v230 = vld [vmem:[%s5 + $0x178] sm:$0xf]
    %v231 = vld [vmem:[%s5 + $0x17c] sm:$0xf]
    %v232 = vld [vmem:[%s5 + $0x180] sm:$0xf]
    %v233 = vld [vmem:[%s5 + $0x184] sm:$0xf]
    %v234 = vld [vmem:[%s5 + $0x188] sm:$0xf]
    %v235 = vld [vmem:[%s5 + $0x18c] sm:$0xf]
    %v236 = vld [vmem:[%s5 + $0x190] sm:$0xf]
    %v237 = vld [vmem:[%s5 + $0x194] sm:$0xf]
    %v238 = vld [vmem:[%s5 + $0x198] sm:$0xf]
    %v239 = vld [vmem:[%s5 + $0x19c] sm:$0xf]
    %v240 = vld [vmem:[%s5 + $0x1a0] sm:$0xf]
    %v241 = vld [vmem:[%s5 + $0x1a4] sm:$0xf]
    %v242 = vld [vmem:[%s5 + $0x1a8] sm:$0xf]
    %v243 = vld [vmem:[%s5 + $0x1ac] sm:$0xf]
    %v244 = vld [vmem:[%s5 + $0x1b0] sm:$0xf]
    %v245 = vld [vmem:[%s5 + $0x1b4] sm:$0xf]
    %v246 = vld [vmem:[%s5 + $0x1b8] sm:$0xf]
    %v247 = vld [vmem:[%s5 + $0x1bc] sm:$0xf]
    %v248 = vld [vmem:[%s5 + $0x1c0] sm:$0xf]
    %v249 = vld [vmem:[%s5 + $0x1c4] sm:$0xf]
    %v250 = vld [vmem:[%s5 + $0x1c8] sm:$0xf]
    %v251 = vld [vmem:[%s5 + $0x1cc] sm:$0xf]
    %v252 = vld [vmem:[%s5 + $0x1d0] sm:$0xf]
    %v253 = vld [vmem:[%s5 + $0x1d4] sm:$0xf]
    %v254 = vld [vmem:[%s5 + $0x1d8] sm:$0xf]
    %v255 = vld [vmem:[%s5 + $0x1dc] sm:$0xf]
    %v256 = vld [vmem:[%s5 + $0x1e0] sm:$0xf]
    %v257 = vld [vmem:[%s5 + $0x1e4] sm:$0xf]
    %v258 = vld [vmem:[%s5 + $0x1e8] sm:$0xf]
    %v259 = vld [vmem:[%s5 + $0x1ec] sm:$0xf]
    %v260 = vld [vmem:[%s5 + $0x1f0] sm:$0xf]
    %v261 = vld [vmem:[%s5 + $0x1f4] sm:$0xf]
    %v262 = vld [vmem:[%s5 + $0x1f8] sm:$0xf]
    %v263 = vld [vmem:[%s5 + $0x1fc] sm:$0xf]
    %v264 = vld [vmem:[%s5 + $0x200] sm:$0xf]
    %v265 = vld [vmem:[%s5 + $0x204] sm:$0xf]
    %v266 = vld [vmem:[%s5 + $0x208] sm:$0xf]
    %v267 = vld [vmem:[%s5 + $0x20c] sm:$0xf]
    %v268 = vld [vmem:[%s5 + $0x210] sm:$0xf]
    %v269 = vld [vmem:[%s5 + $0x214] sm:$0xf]
    %v270 = vld [vmem:[%s5 + $0x218] sm:$0xf]
    %v271 = vld [vmem:[%s5 + $0x21c] sm:$0xf]
    %v272 = vld [vmem:[%s5 + $0x220] sm:$0xf]
    %v273 = vld [vmem:[%s5 + $0x224] sm:$0xf]
    %v274 = vld [vmem:[%s5 + $0x228] sm:$0xf]
    %v275 = vld [vmem:[%s5 + $0x22c] sm:$0xf]
    %v276 = vld [vmem:[%s5 + $0x230] sm:$0xf]
    %v277 = vld [vmem:[%s5 + $0x234] sm:$0xf]
    %v278 = vld [vmem:[%s5 + $0x238] sm:$0xf]
    %v279 = vld [vmem:[%s5 + $0x23c] sm:$0xf]
    %v280 = vld [vmem:[%s5 + $0x240] sm:$0xf]
    %v281 = vld [vmem:[%s5 + $0x244] sm:$0xf]
    %v282 = vld [vmem:[%s5 + $0x248] sm:$0xf]
    %v283 = vld [vmem:[%s5 + $0x24c] sm:$0xf]
    %v284 = vld [vmem:[%s5 + $0x250] sm:$0xf]
    %v285 = vld [vmem:[%s5 + $0x254] sm:$0xf]
    %v286 = vld [vmem:[%s5 + $0x258] sm:$0xf]
    %v287 = vld [vmem:[%s5 + $0x25c] sm:$0xf]
    %v288 = vld [vmem:[%s5 + $0x260] sm:$0xf]
    %v289 = vld [vmem:[%s5 + $0x264] sm:$0xf]
    %v290 = vld [vmem:[%s5 + $0x268] sm:$0xf]
    %v291 = vld [vmem:[%s5 + $0x26c] sm:$0xf]
    %v292 = vld [vmem:[%s5 + $0x270] sm:$0xf]
    %v293 = vld [vmem:[%s5 + $0x274] sm:$0xf]
    %v294 = vld [vmem:[%s5 + $0x278] sm:$0xf]
    %v295 = vld [vmem:[%s5 + $0x27c] sm:$0xf]
    %v296 = vld [vmem:[%s5 + $0x280] sm:$0xf]
    %v297 = vld [vmem:[%s5 + $0x284] sm:$0xf]
    %v298 = vld [vmem:[%s5 + $0x288] sm:$0xf]
    %v299 = vld [vmem:[%s5 + $0x28c] sm:$0xf]
    %v300 = vld [vmem:[%s5 + $0x290] sm:$0xf]
    %v301 = vld [vmem:[%s5 + $0x294] sm:$0xf]
    %v302 = vld [vmem:[%s5 + $0x298] sm:$0xf]
    %v303 = vld [vmem:[%s5 + $0x29c] sm:$0xf]
    %v304 = vld [vmem:[%s5 + $0x2a0] sm:$0xf]
    %v305 = vld [vmem:[%s5 + $0x2a4] sm:$0xf]
    %v306 = vld [vmem:[%s5 + $0x2a8] sm:$0xf]
    %v307 = vld [vmem:[%s5 + $0x2ac] sm:$0xf]
    %v308 = vld [vmem:[%s5 + $0x2b0] sm:$0xf]
    %v309 = vld [vmem:[%s5 + $0x2b4] sm:$0xf]
    %v310 = vld [vmem:[%s5 + $0x2b8] sm:$0xf]
    %v311 = vld [vmem:[%s5 + $0x2bc] sm:$0xf]
    %v312 = vld [vmem:[%s5 + $0x2c0] sm:$0xf]
    %v313 = vld [vmem:[%s5 + $0x2c4] sm:$0xf]
    %v314 = vld [vmem:[%s5 + $0x2c8] sm:$0xf]
    %v315 = vld [vmem:[%s5 + $0x2cc] sm:$0xf]
    %v316 = vld [vmem:[%s5 + $0x2d0] sm:$0xf]
    %v317 = vld [vmem:[%s5 + $0x2d4] sm:$0xf]
    %v318 = vld [vmem:[%s5 + $0x2d8] sm:$0xf]
    %v319 = vld [vmem:[%s5 + $0x2dc] sm:$0xf]
    %v320 = vld [vmem:[%s5 + $0x2e0] sm:$0xf]
    %v321 = vld [vmem:[%s5 + $0x2e4] sm:$0xf]
    %v322 = vld [vmem:[%s5 + $0x2e8] sm:$0xf]
    %v323 = vld [vmem:[%s5 + $0x2ec] sm:$0xf]
    %v324 = vld [vmem:[%s5 + $0x2f0] sm:$0xf]
    %v325 = vld [vmem:[%s5 + $0x2f4] sm:$0xf]
    %v326 = vld [vmem:[%s5 + $0x2f8] sm:$0xf]
    %v327 = vld [vmem:[%s5 + $0x2fc] sm:$0xf]
    %v328 = vld [vmem:[%s5 + $0x300] sm:$0xf]
    %v329 = vld [vmem:[%s5 + $0x304] sm:$0xf]
    %v330 = vld [vmem:[%s5 + $0x308] sm:$0xf]
    %v331 = vld [vmem:[%s5 + $0x30c] sm:$0xf]
    %v332 = vld [vmem:[%s5 + $0x310] sm:$0xf]
    %v333 = vld [vmem:[%s5 + $0x314] sm:$0xf]
    %v334 = vld [vmem:[%s5 + $0x318] sm:$0xf]
    %v335 = vld [vmem:[%s5 + $0x31c] sm:$0xf]
    %v336 = vld [vmem:[%s5 + $0x320] sm:$0xf]
    %v337 = vld [vmem:[%s5 + $0x324] sm:$0xf]
    %v338 = vld [vmem:[%s5 + $0x328] sm:$0xf]
    %v339 = vld [vmem:[%s5 + $0x32c] sm:$0xf]
    %v340 = vld [vmem:[%s5 + $0x330] sm:$0xf]
    %v341 = vld [vmem:[%s5 + $0x334] sm:$0xf]
    %v342 = vld [vmem:[%s5 + $0x338] sm:$0xf]
    %v343 = vld [vmem:[%s5 + $0x33c] sm:$0xf]
    %v344 = vld [vmem:[%s5 + $0x340] sm:$0xf]
    %v345 = vld [vmem:[%s5 + $0x344] sm:$0xf]
    %v346 = vld [vmem:[%s5 + $0x348] sm:$0xf]
    %v347 = vld [vmem:[%s5 + $0x34c] sm:$0xf]
    %v348 = vld [vmem:[%s5 + $0x350] sm:$0xf]
    %v349 = vld [vmem:[%s5 + $0x354] sm:$0xf]
    %v350 = vld [vmem:[%s5 + $0x358] sm:$0xf]
    %v351 = vld [vmem:[%s5 + $0x35c] sm:$0xf]
    %v352 = vld [vmem:[%s5 + $0x360] sm:$0xf]
    %v353 = vld [vmem:[%s5 + $0x364] sm:$0xf]
    %v354 = vld [vmem:[%s5 + $0x368] sm:$0xf]
    %v355 = vld [vmem:[%s5 + $0x36c] sm:$0xf]
    %v356 = vld [vmem:[%s5 + $0x370] sm:$0xf]
    %v357 = vld [vmem:[%s5 + $0x374] sm:$0xf]
    %v358 = vld [vmem:[%s5 + $0x378] sm:$0xf]
    %v359 = vld [vmem:[%s5 + $0x37c] sm:$0xf]
    %v360 = vld [vmem:[%s5 + $0x380] sm:$0xf]
    %v361 = vld [vmem:[%s5 + $0x384] sm:$0xf]
    %v362 = vld [vmem:[%s5 + $0x388] sm:$0xf]
    %v363 = vld [vmem:[%s5 + $0x38c] sm:$0xf]
    %v364 = vld [vmem:[%s5 + $0x390] sm:$0xf]
    %v365 = vld [vmem:[%s5 + $0x394] sm:$0xf]
    %v366 = vld [vmem:[%s5 + $0x398] sm:$0xf]
    %v367 = vld [vmem:[%s5 + $0x39c] sm:$0xf]
    %v368 = vld [vmem:[%s5 + $0x3a0] sm:$0xf]
    %v369 = vld [vmem:[%s5 + $0x3a4] sm:$0xf]
    %v370 = vld [vmem:[%s5 + $0x3a8] sm:$0xf]
    %v371 = vld [vmem:[%s5 + $0x3ac] sm:$0xf]
    %v372 = vld [vmem:[%s5 + $0x3b0] sm:$0xf]
    %v373 = vld [vmem:[%s5 + $0x3b4] sm:$0xf]
    %v374 = vld [vmem:[%s5 + $0x3b8] sm:$0xf]
    %v375 = vld [vmem:[%s5 + $0x3bc] sm:$0xf]
    %v376 = vld [vmem:[%s5 + $0x3c0] sm:$0xf]
    %v377 = vld [vmem:[%s5 + $0x3c4] sm:$0xf]
    %v378 = vld [vmem:[%s5 + $0x3c8] sm:$0xf]
    %v379 = vld [vmem:[%s5 + $0x3cc] sm:$0xf]
    %v380 = vld [vmem:[%s5 + $0x3d0] sm:$0xf]
    %v381 = vld [vmem:[%s5 + $0x3d4] sm:$0xf]
    %v382 = vld [vmem:[%s5 + $0x3d8] sm:$0xf]
    %v383 = vld [vmem:[%s5 + $0x3dc] sm:$0xf]
    %v384 = vld [vmem:[%s5 + $0x3e0] sm:$0xf]
    %v385 = vld [vmem:[%s5 + $0x3e4] sm:$0xf]
    %v386 = vld [vmem:[%s5 + $0x3e8] sm:$0xf]
    %v387 = vld [vmem:[%s5 + $0x3ec] sm:$0xf]
    %v388 = vld [vmem:[%s5 + $0x3f0] sm:$0xf]
    %v389 = vld [vmem:[%s5 + $0x3f4] sm:$0xf]
    %v390 = vld [vmem:[%s5 + $0x3f8] sm:$0xf]
    %v391 = vld [vmem:[%s5 + $0x3fc] sm:$0xf]
    %v392 = vunpack.c.l.bf16 %v136
    %v393 = vunpack.c.l.bf16 %v137
    %v394 = vunpack.c.l.bf16 %v138
    %v395 = vunpack.c.l.bf16 %v139
    %v396 = vunpack.c.l.bf16 %v140
    %v397 = vunpack.c.l.bf16 %v141
    %v398 = vunpack.c.l.bf16 %v142
    %v399 = vunpack.c.l.bf16 %v143
    %v400 = vunpack.c.l.bf16 %v144
    %v401 = vunpack.c.l.bf16 %v145
    %v402 = vunpack.c.l.bf16 %v146
    %v403 = vunpack.c.l.bf16 %v147
    %v404 = vunpack.c.l.bf16 %v148
    %v405 = vunpack.c.l.bf16 %v149
    %v406 = vunpack.c.l.bf16 %v150
    %v407 = vunpack.c.l.bf16 %v151
    %v408 = vunpack.c.l.bf16 %v152
    %v409 = vunpack.c.l.bf16 %v153
    %v410 = vunpack.c.l.bf16 %v154
    %v411 = vunpack.c.l.bf16 %v155
    %v412 = vunpack.c.l.bf16 %v156
    %v413 = vunpack.c.l.bf16 %v157
    %v414 = vunpack.c.l.bf16 %v158
    %v415 = vunpack.c.l.bf16 %v159
    %v416 = vunpack.c.l.bf16 %v160
    %v417 = vunpack.c.l.bf16 %v161
    %v418 = vunpack.c.l.bf16 %v162
    %v419 = vunpack.c.l.bf16 %v163
    %v420 = vunpack.c.l.bf16 %v164
    %v421 = vunpack.c.l.bf16 %v165
    %v422 = vunpack.c.l.bf16 %v166
    %v423 = vunpack.c.l.bf16 %v167
    %v424 = vunpack.c.l.bf16 %v168
    %v425 = vunpack.c.l.bf16 %v169
    %v426 = vunpack.c.l.bf16 %v170
    %v427 = vunpack.c.l.bf16 %v171
    %v428 = vunpack.c.l.bf16 %v172
    %v429 = vunpack.c.l.bf16 %v173
    %v430 = vunpack.c.l.bf16 %v174
    %v431 = vunpack.c.l.bf16 %v175
    %v432 = vunpack.c.l.bf16 %v176
    %v433 = vunpack.c.l.bf16 %v177
    %v434 = vunpack.c.l.bf16 %v178
    %v435 = vunpack.c.l.bf16 %v179
    %v436 = vunpack.c.l.bf16 %v180
    %v437 = vunpack.c.l.bf16 %v181
    %v438 = vunpack.c.l.bf16 %v182
    %v439 = vunpack.c.l.bf16 %v183
    %v440 = vunpack.c.l.bf16 %v184
    %v441 = vunpack.c.l.bf16 %v185
    %v442 = vunpack.c.l.bf16 %v186
    %v443 = vunpack.c.l.bf16 %v187
    %v444 = vunpack.c.l.bf16 %v188
    %v445 = vunpack.c.l.bf16 %v189
    %v446 = vunpack.c.l.bf16 %v190
    %v447 = vunpack.c.l.bf16 %v191
    %v448 = vunpack.c.l.bf16 %v192
    %v449 = vunpack.c.l.bf16 %v193
    %v450 = vunpack.c.l.bf16 %v194
    %v451 = vunpack.c.l.bf16 %v195
    %v452 = vunpack.c.l.bf16 %v196
    %v453 = vunpack.c.l.bf16 %v197
    %v454 = vunpack.c.l.bf16 %v198
    %v455 = vunpack.c.l.bf16 %v199
    %v456 = vunpack.c.l.bf16 %v200
    %v457 = vunpack.c.l.bf16 %v201
    %v458 = vunpack.c.l.bf16 %v202
    %v459 = vunpack.c.l.bf16 %v203
    %v460 = vunpack.c.l.bf16 %v204
    %v461 = vunpack.c.l.bf16 %v205
    %v462 = vunpack.c.l.bf16 %v206
    %v463 = vunpack.c.l.bf16 %v207
    %v464 = vunpack.c.l.bf16 %v208
    %v465 = vunpack.c.l.bf16 %v209
    %v466 = vunpack.c.l.bf16 %v210
    %v467 = vunpack.c.l.bf16 %v211
    %v468 = vunpack.c.l.bf16 %v212
    %v469 = vunpack.c.l.bf16 %v213
    %v470 = vunpack.c.l.bf16 %v214
    %v471 = vunpack.c.l.bf16 %v215
    %v472 = vunpack.c.l.bf16 %v216
    %v473 = vunpack.c.l.bf16 %v217
    %v474 = vunpack.c.l.bf16 %v218
    %v475 = vunpack.c.l.bf16 %v219
    %v476 = vunpack.c.l.bf16 %v220
    %v477 = vunpack.c.l.bf16 %v221
    %v478 = vunpack.c.l.bf16 %v222
    %v479 = vunpack.c.l.bf16 %v223
    %v480 = vunpack.c.l.bf16 %v224
    %v481 = vunpack.c.l.bf16 %v225
    %v482 = vunpack.c.l.bf16 %v226
    %v483 = vunpack.c.l.bf16 %v227
    %v484 = vunpack.c.l.bf16 %v228
    %v485 = vunpack.c.l.bf16 %v229
    %v486 = vunpack.c.l.bf16 %v230
    %v487 = vunpack.c.l.bf16 %v231
    %v488 = vunpack.c.l.bf16 %v232
    %v489 = vunpack.c.l.bf16 %v233
    %v490 = vunpack.c.l.bf16 %v234
    %v491 = vunpack.c.l.bf16 %v235
    %v492 = vunpack.c.l.bf16 %v236
    %v493 = vunpack.c.l.bf16 %v237
    %v494 = vunpack.c.l.bf16 %v238
    %v495 = vunpack.c.l.bf16 %v239
    %v496 = vunpack.c.l.bf16 %v240
    %v497 = vunpack.c.l.bf16 %v241
    %v498 = vunpack.c.l.bf16 %v242
    %v499 = vunpack.c.l.bf16 %v243
    %v500 = vunpack.c.l.bf16 %v244
    %v501 = vunpack.c.l.bf16 %v245
    %v502 = vunpack.c.l.bf16 %v246
    %v503 = vunpack.c.l.bf16 %v247
    %v504 = vunpack.c.l.bf16 %v248
    %v505 = vunpack.c.l.bf16 %v249
    %v506 = vunpack.c.l.bf16 %v250
    %v507 = vunpack.c.l.bf16 %v251
    %v508 = vunpack.c.l.bf16 %v252
    %v509 = vunpack.c.l.bf16 %v253
    %v510 = vunpack.c.l.bf16 %v254
    %v511 = vunpack.c.l.bf16 %v255
    %v512 = vunpack.c.l.bf16 %v256
    %v513 = vunpack.c.l.bf16 %v257
    %v514 = vunpack.c.l.bf16 %v258
    %v515 = vunpack.c.l.bf16 %v259
    %v516 = vunpack.c.l.bf16 %v260
    %v517 = vunpack.c.l.bf16 %v261
    %v518 = vunpack.c.l.bf16 %v262
    %v519 = vunpack.c.l.bf16 %v263
    %v520 = vunpack.c.l.bf16 %v264
    %v521 = vunpack.c.l.bf16 %v265
    %v522 = vunpack.c.l.bf16 %v266
    %v523 = vunpack.c.l.bf16 %v267
    %v524 = vunpack.c.l.bf16 %v268
    %v525 = vunpack.c.l.bf16 %v269
    %v526 = vunpack.c.l.bf16 %v270
    %v527 = vunpack.c.l.bf16 %v271
    %v528 = vunpack.c.l.bf16 %v272
    %v529 = vunpack.c.l.bf16 %v273
    %v530 = vunpack.c.l.bf16 %v274
    %v531 = vunpack.c.l.bf16 %v275
    %v532 = vunpack.c.l.bf16 %v276
    %v533 = vunpack.c.l.bf16 %v277
    %v534 = vunpack.c.l.bf16 %v278
    %v535 = vunpack.c.l.bf16 %v279
    %v536 = vunpack.c.l.bf16 %v280
    %v537 = vunpack.c.l.bf16 %v281
    %v538 = vunpack.c.l.bf16 %v282
    %v539 = vunpack.c.l.bf16 %v283
    %v540 = vunpack.c.l.bf16 %v284
    %v541 = vunpack.c.l.bf16 %v285
    %v542 = vunpack.c.l.bf16 %v286
    %v543 = vunpack.c.l.bf16 %v287
    %v544 = vunpack.c.l.bf16 %v288
    %v545 = vunpack.c.l.bf16 %v289
    %v546 = vunpack.c.l.bf16 %v290
    %v547 = vunpack.c.l.bf16 %v291
    %v548 = vunpack.c.l.bf16 %v292
    %v549 = vunpack.c.l.bf16 %v293
    %v550 = vunpack.c.l.bf16 %v294
    %v551 = vunpack.c.l.bf16 %v295
    %v552 = vunpack.c.l.bf16 %v296
    %v553 = vunpack.c.l.bf16 %v297
    %v554 = vunpack.c.l.bf16 %v298
    %v555 = vunpack.c.l.bf16 %v299
    %v556 = vunpack.c.l.bf16 %v300
    %v557 = vunpack.c.l.bf16 %v301
    %v558 = vunpack.c.l.bf16 %v302
    %v559 = vunpack.c.l.bf16 %v303
    %v560 = vunpack.c.l.bf16 %v304
    %v561 = vunpack.c.l.bf16 %v305
    %v562 = vunpack.c.l.bf16 %v306
    %v563 = vunpack.c.l.bf16 %v307
    %v564 = vunpack.c.l.bf16 %v308
    %v565 = vunpack.c.l.bf16 %v309
    %v566 = vunpack.c.l.bf16 %v310
    %v567 = vunpack.c.l.bf16 %v311
    %v568 = vunpack.c.l.bf16 %v312
    %v569 = vunpack.c.l.bf16 %v313
    %v570 = vunpack.c.l.bf16 %v314
    %v571 = vunpack.c.l.bf16 %v315
    %v572 = vunpack.c.l.bf16 %v316
    %v573 = vunpack.c.l.bf16 %v317
    %v574 = vunpack.c.l.bf16 %v318
    %v575 = vunpack.c.l.bf16 %v319
    %v576 = vunpack.c.l.bf16 %v320
    %v577 = vunpack.c.l.bf16 %v321
    %v578 = vunpack.c.l.bf16 %v322
    %v579 = vunpack.c.l.bf16 %v323
    %v580 = vunpack.c.l.bf16 %v324
    %v581 = vunpack.c.l.bf16 %v325
    %v582 = vunpack.c.l.bf16 %v326
    %v583 = vunpack.c.l.bf16 %v327
    %v584 = vunpack.c.l.bf16 %v328
    %v585 = vunpack.c.l.bf16 %v329
    %v586 = vunpack.c.l.bf16 %v330
    %v587 = vunpack.c.l.bf16 %v331
    %v588 = vunpack.c.l.bf16 %v332
    %v589 = vunpack.c.l.bf16 %v333
    %v590 = vunpack.c.l.bf16 %v334
    %v591 = vunpack.c.l.bf16 %v335
    %v592 = vunpack.c.l.bf16 %v336
    %v593 = vunpack.c.l.bf16 %v337
    %v594 = vunpack.c.l.bf16 %v338
    %v595 = vunpack.c.l.bf16 %v339
    %v596 = vunpack.c.l.bf16 %v340
    %v597 = vunpack.c.l.bf16 %v341
    %v598 = vunpack.c.l.bf16 %v342
    %v599 = vunpack.c.l.bf16 %v343
    %v600 = vunpack.c.l.bf16 %v344
    %v601 = vunpack.c.l.bf16 %v345
    %v602 = vunpack.c.l.bf16 %v346
    %v603 = vunpack.c.l.bf16 %v347
    %v604 = vunpack.c.l.bf16 %v348
    %v605 = vunpack.c.l.bf16 %v349
    %v606 = vunpack.c.l.bf16 %v350
    %v607 = vunpack.c.l.bf16 %v351
    %v608 = vunpack.c.l.bf16 %v352
    %v609 = vunpack.c.l.bf16 %v353
    %v610 = vunpack.c.l.bf16 %v354
    %v611 = vunpack.c.l.bf16 %v355
    %v612 = vunpack.c.l.bf16 %v356
    %v613 = vunpack.c.l.bf16 %v357
    %v614 = vunpack.c.l.bf16 %v358
    %v615 = vunpack.c.l.bf16 %v359
    %v616 = vunpack.c.l.bf16 %v360
    %v617 = vunpack.c.l.bf16 %v361
    %v618 = vunpack.c.l.bf16 %v362
    %v619 = vunpack.c.l.bf16 %v363
    %v620 = vunpack.c.l.bf16 %v364
    %v621 = vunpack.c.l.bf16 %v365
    %v622 = vunpack.c.l.bf16 %v366
    %v623 = vunpack.c.l.bf16 %v367
    %v624 = vunpack.c.l.bf16 %v368
    %v625 = vunpack.c.l.bf16 %v369
    %v626 = vunpack.c.l.bf16 %v370
    %v627 = vunpack.c.l.bf16 %v371
    %v628 = vunpack.c.l.bf16 %v372
    %v629 = vunpack.c.l.bf16 %v373
    %v630 = vunpack.c.l.bf16 %v374
    %v631 = vunpack.c.l.bf16 %v375
    %v632 = vunpack.c.l.bf16 %v376
    %v633 = vunpack.c.l.bf16 %v377
    %v634 = vunpack.c.l.bf16 %v378
    %v635 = vunpack.c.l.bf16 %v379
    %v636 = vunpack.c.l.bf16 %v380
    %v637 = vunpack.c.l.bf16 %v381
    %v638 = vunpack.c.l.bf16 %v382
    %v639 = vunpack.c.l.bf16 %v383
    %v640 = vunpack.c.l.bf16 %v384
    %v641 = vunpack.c.l.bf16 %v385
    %v642 = vunpack.c.l.bf16 %v386
    %v643 = vunpack.c.l.bf16 %v387
    %v644 = vunpack.c.l.bf16 %v388
    %v645 = vunpack.c.l.bf16 %v389
    %v646 = vunpack.c.l.bf16 %v390
    %v647 = vunpack.c.l.bf16 %v391
    %v648 = vld [vmem:[%s2] sm:$0xff]
    %v649 = vld [vmem:[%s4] sm:$0xff]
    %v650 = vld [vmem:[%s4 + $0x8] sm:$0xff]
    %v651 = vperm.slane %v648, 0
    %vm652 = vcmask 261120
    %v654 = vsel %vm652, %v31, 0
    %656 = vmatpush.msra.mxu0 0.0
    %657 = vmatpush.msra.mxu0 0.0
    %658 = vmatpush.msra.mxu0 0.0
    %659 = vmatpush.msra.mxu0 0.0
    %660 = vmatpush.msra.mxu0 0.0
    %661 = vmatpush.msra.mxu0 0.0
    %662 = vmatpush.msra.mxu0 0.0
    %663 = vmatpush.msra.mxu0 0.0
    %664 = vmatpush.msra.mxu0 0.0
    %665 = vmatpush.msra.mxu0 0.0
    %666 = vmatpush.msra.mxu0 0.0
    %667 = vmatpush.msra.mxu0 0.0
    %668 = vmatpush.msra.mxu0 %v39
    %669 = vmatpush.msra.mxu0 %v38
    %670 = vmatpush.msra.mxu0 %v37
    %671 = vmatpush.msra.mxu0 %v36
    %672 = vmatmul.f32.gmra.mxu0 %v654
    %v673 = vpop.f32.mrf.mxu0
    %v674 = vadd.f32 %v651, %v673
    %675 = vdwg.mxu0
    %v676 = vadd.f32 %v31, %v674
    %vm677 = vcmask 254976
    %v678 = vsel %vm677, %v676, 0.0
    %679 = vadd.xlane.f32.xlu0 %v678
    %v680 = vpop.xlane.xlu0 %679
    %v681 = vrcp.pop 32.0
    %v682 = vmul.f32 32.0, %v681
    %v683 = vsub.f32 1.0, %v682
    %v684 = vmul.f32 %v681, %v683
    %v685 = vadd.f32 %v681, %v684
    %vm686 = vweird.f32 %v681
    %v687 = vsel %vm686, %v681, %v685
    %v688 = vmul.f32 %v680, %v687
    %v689 = vsub.f32 %v676, %v688
    %v690 = vmul.f32 %v689, %v689
    %v691 = vsel %vm677, %v690, 0.0
    %692 = vadd.xlane.f32.xlu0 %v691
    %v693 = vpop.xlane.xlu0 %692
    %v694 = vmul.f32 %v693, %v687
    %v695 = vadd.f32 %v694, 1e-05
    %v696 = vrsqrt.pop %v695
    %v697 = vmul.f32 %v696, %v695
    %v698 = vmul.f32 %v697, %v696
    %v699 = vmul.f32 0.5, %v698
    %v700 = vsub.f32 1.5, %v699
    %v701 = vmul.f32 %v696, %v700
    %vm702 = vweird.f32 %v695
    %vm703 = vweird.f32 %v696
    %vm704 = vmor %vm702, %vm703
    %v705 = vsel %vm704, %v696, %v701
    %v706 = vmul.f32 %v689, %v705
    %v707 = vperm.slane %v648, 1
    %v708 = vmul.f32 %v706, %v707
    %v709 = vperm.slane %v648, 2
    %v710 = vadd.f32 %v708, %v709
    %v713 = vperm.slane %v649, 0
    %v714 = vperm.slane %v649, 1
    %v715 = vperm.slane %v649, 2
    %v716 = vperm.slane %v649, 3
    %v717 = vperm.slane %v649, 4
    %v718 = vperm.slane %v649, 5
    %v719 = vperm.slane %v649, 6
    %v720 = vperm.slane %v649, 7
    %v721 = vperm.slane %v650, 0
    %v722 = vperm.slane %v650, 1
    %v723 = vperm.slane %v650, 2
    %v724 = vperm.slane %v650, 3
    %v725 = vperm.slane %v650, 4
    %v726 = vperm.slane %v650, 5
    %v727 = vperm.slane %v650, 6
    %v728 = vperm.slane %v650, 7
    %v746 = vsel %vm652, %v710, 0
    %748 = vmatpush.msra.mxu0 0.0
    %749 = vmatpush.msra.mxu0 0.0
    %750 = vmatpush.msra.mxu0 0.0
    %751 = vmatpush.msra.mxu0 0.0
    %752 = vmatpush.msra.mxu0 0.0
    %753 = vmatpush.msra.mxu0 0.0
    %754 = vmatpush.msra.mxu0 0.0
    %755 = vmatpush.msra.mxu0 0.0
    %756 = vmatpush.msra.mxu0 0.0
    %757 = vmatpush.msra.mxu0 0.0
    %758 = vmatpush.msra.mxu0 0.0
    %759 = vmatpush.msra.mxu0 0.0
    %760 = vmatpush.msra.mxu0 %v120
    %761 = vmatpush.msra.mxu0 %v104
    %762 = vmatpush.msra.mxu0 %v88
    %763 = vmatpush.msra.mxu0 %v72
    %764 = vmatmul.f32.gmra.mxu0 %v746
    %v765 = vpop.f32.mrf.mxu0
    %v766 = vadd.f32 %v713, %v765
    %767 = vdwg.mxu0
    %768 = vmatpush.msra.mxu0 0.0
    %769 = vmatpush.msra.mxu0 0.0
    %770 = vmatpush.msra.mxu0 0.0
    %771 = vmatpush.msra.mxu0 0.0
    %772 = vmatpush.msra.mxu0 0.0
    %773 = vmatpush.msra.mxu0 0.0
    %774 = vmatpush.msra.mxu0 0.0
    %775 = vmatpush.msra.mxu0 0.0
    %776 = vmatpush.msra.mxu0 0.0
    %777 = vmatpush.msra.mxu0 0.0
    %778 = vmatpush.msra.mxu0 0.0
    %779 = vmatpush.msra.mxu0 0.0
    %780 = vmatpush.msra.mxu0 %v121
    %781 = vmatpush.msra.mxu0 %v105
    %782 = vmatpush.msra.mxu0 %v89
    %783 = vmatpush.msra.mxu0 %v73
    %784 = vmatmul.f32.gmra.mxu0 %v746
    %v785 = vpop.f32.mrf.mxu0
    %v786 = vadd.f32 %v714, %v785
    %787 = vdwg.mxu0
    %788 = vmatpush.msra.mxu0 0.0
    %789 = vmatpush.msra.mxu0 0.0
    %790 = vmatpush.msra.mxu0 0.0
    %791 = vmatpush.msra.mxu0 0.0
    %792 = vmatpush.msra.mxu0 0.0
    %793 = vmatpush.msra.mxu0 0.0
    %794 = vmatpush.msra.mxu0 0.0
    %795 = vmatpush.msra.mxu0 0.0
    %796 = vmatpush.msra.mxu0 0.0
    %797 = vmatpush.msra.mxu0 0.0
    %798 = vmatpush.msra.mxu0 0.0
    %799 = vmatpush.msra.mxu0 0.0
    %800 = vmatpush.msra.mxu0 %v122
    %801 = vmatpush.msra.mxu0 %v106
    %802 = vmatpush.msra.mxu0 %v90
    %803 = vmatpush.msra.mxu0 %v74
    %804 = vmatmul.f32.gmra.mxu0 %v746
    %v805 = vpop.f32.mrf.mxu0
    %v806 = vadd.f32 %v715, %v805
    %807 = vdwg.mxu0
    %808 = vmatpush.msra.mxu0 0.0
    %809 = vmatpush.msra.mxu0 0.0
    %810 = vmatpush.msra.mxu0 0.0
    %811 = vmatpush.msra.mxu0 0.0
    %812 = vmatpush.msra.mxu0 0.0
    %813 = vmatpush.msra.mxu0 0.0
    %814 = vmatpush.msra.mxu0 0.0
    %815 = vmatpush.msra.mxu0 0.0
    %816 = vmatpush.msra.mxu0 0.0
    %817 = vmatpush.msra.mxu0 0.0
    %818 = vmatpush.msra.mxu0 0.0
    %819 = vmatpush.msra.mxu0 0.0
    %820 = vmatpush.msra.mxu0 %v123
    %821 = vmatpush.msra.mxu0 %v107
    %822 = vmatpush.msra.mxu0 %v91
    %823 = vmatpush.msra.mxu0 %v75
    %824 = vmatmul.f32.gmra.mxu0 %v746
    %v825 = vpop.f32.mrf.mxu0
    %v826 = vadd.f32 %v716, %v825
    %827 = vdwg.mxu0
    %828 = vmatpush.msra.mxu0 0.0
    %829 = vmatpush.msra.mxu0 0.0
    %830 = vmatpush.msra.mxu0 0.0
    %831 = vmatpush.msra.mxu0 0.0
    %832 = vmatpush.msra.mxu0 0.0
    %833 = vmatpush.msra.mxu0 0.0
    %834 = vmatpush.msra.mxu0 0.0
    %835 = vmatpush.msra.mxu0 0.0
    %836 = vmatpush.msra.mxu0 0.0
    %837 = vmatpush.msra.mxu0 0.0
    %838 = vmatpush.msra.mxu0 0.0
    %839 = vmatpush.msra.mxu0 0.0
    %840 = vmatpush.msra.mxu0 %v124
    %841 = vmatpush.msra.mxu0 %v108
    %842 = vmatpush.msra.mxu0 %v92
    %843 = vmatpush.msra.mxu0 %v76
    %844 = vmatmul.f32.gmra.mxu0 %v746
    %v845 = vpop.f32.mrf.mxu0
    %v846 = vadd.f32 %v717, %v845
    %847 = vdwg.mxu0
    %848 = vmatpush.msra.mxu0 0.0
    %849 = vmatpush.msra.mxu0 0.0
    %850 = vmatpush.msra.mxu0 0.0
    %851 = vmatpush.msra.mxu0 0.0
    %852 = vmatpush.msra.mxu0 0.0
    %853 = vmatpush.msra.mxu0 0.0
    %854 = vmatpush.msra.mxu0 0.0
    %855 = vmatpush.msra.mxu0 0.0
    %856 = vmatpush.msra.mxu0 0.0
    %857 = vmatpush.msra.mxu0 0.0
    %858 = vmatpush.msra.mxu0 0.0
    %859 = vmatpush.msra.mxu0 0.0
    %860 = vmatpush.msra.mxu0 %v125
    %861 = vmatpush.msra.mxu0 %v109
    %862 = vmatpush.msra.mxu0 %v93
    %863 = vmatpush.msra.mxu0 %v77
    %864 = vmatmul.f32.gmra.mxu0 %v746
    %v865 = vpop.f32.mrf.mxu0
    %v866 = vadd.f32 %v718, %v865
    %867 = vdwg.mxu0
    %868 = vmatpush.msra.mxu0 0.0
    %869 = vmatpush.msra.mxu0 0.0
    %870 = vmatpush.msra.mxu0 0.0
    %871 = vmatpush.msra.mxu0 0.0
    %872 = vmatpush.msra.mxu0 0.0
    %873 = vmatpush.msra.mxu0 0.0
    %874 = vmatpush.msra.mxu0 0.0
    %875 = vmatpush.msra.mxu0 0.0
    %876 = vmatpush.msra.mxu0 0.0
    %877 = vmatpush.msra.mxu0 0.0
    %878 = vmatpush.msra.mxu0 0.0
    %879 = vmatpush.msra.mxu0 0.0
    %880 = vmatpush.msra.mxu0 %v126
    %881 = vmatpush.msra.mxu0 %v110
    %882 = vmatpush.msra.mxu0 %v94
    %883 = vmatpush.msra.mxu0 %v78
    %884 = vmatmul.f32.gmra.mxu0 %v746
    %v885 = vpop.f32.mrf.mxu0
    %v886 = vadd.f32 %v719, %v885
    %887 = vdwg.mxu0
    %888 = vmatpush.msra.mxu0 0.0
    %889 = vmatpush.msra.mxu0 0.0
    %890 = vmatpush.msra.mxu0 0.0
    %891 = vmatpush.msra.mxu0 0.0
    %892 = vmatpush.msra.mxu0 0.0
    %893 = vmatpush.msra.mxu0 0.0
    %894 = vmatpush.msra.mxu0 0.0
    %895 = vmatpush.msra.mxu0 0.0
    %896 = vmatpush.msra.mxu0 0.0
    %897 = vmatpush.msra.mxu0 0.0
    %898 = vmatpush.msra.mxu0 0.0
    %899 = vmatpush.msra.mxu0 0.0
    %900 = vmatpush.msra.mxu0 %v127
    %901 = vmatpush.msra.mxu0 %v111
    %902 = vmatpush.msra.mxu0 %v95
    %903 = vmatpush.msra.mxu0 %v79
    %904 = vmatmul.f32.gmra.mxu0 %v746
    %v905 = vpop.f32.mrf.mxu0
    %v906 = vadd.f32 %v720, %v905
    %907 = vdwg.mxu0
    %908 = vmatpush.msra.mxu0 0.0
    %909 = vmatpush.msra.mxu0 0.0
    %910 = vmatpush.msra.mxu0 0.0
    %911 = vmatpush.msra.mxu0 0.0
    %912 = vmatpush.msra.mxu0 0.0
    %913 = vmatpush.msra.mxu0 0.0
    %914 = vmatpush.msra.mxu0 0.0
    %915 = vmatpush.msra.mxu0 0.0
    %916 = vmatpush.msra.mxu0 0.0
    %917 = vmatpush.msra.mxu0 0.0
    %918 = vmatpush.msra.mxu0 0.0
    %919 = vmatpush.msra.mxu0 0.0
    %920 = vmatpush.msra.mxu0 %v128
    %921 = vmatpush.msra.mxu0 %v112
    %922 = vmatpush.msra.mxu0 %v96
    %923 = vmatpush.msra.mxu0 %v80
    %924 = vmatmul.f32.gmra.mxu0 %v746
    %v925 = vpop.f32.mrf.mxu0
    %v926 = vadd.f32 %v721, %v925
    %927 = vdwg.mxu0
    %928 = vmatpush.msra.mxu0 0.0
    %929 = vmatpush.msra.mxu0 0.0
    %930 = vmatpush.msra.mxu0 0.0
    %931 = vmatpush.msra.mxu0 0.0
    %932 = vmatpush.msra.mxu0 0.0
    %933 = vmatpush.msra.mxu0 0.0
    %934 = vmatpush.msra.mxu0 0.0
    %935 = vmatpush.msra.mxu0 0.0
    %936 = vmatpush.msra.mxu0 0.0
    %937 = vmatpush.msra.mxu0 0.0
    %938 = vmatpush.msra.mxu0 0.0
    %939 = vmatpush.msra.mxu0 0.0
    %940 = vmatpush.msra.mxu0 %v129
    %941 = vmatpush.msra.mxu0 %v113
    %942 = vmatpush.msra.mxu0 %v97
    %943 = vmatpush.msra.mxu0 %v81
    %944 = vmatmul.f32.gmra.mxu0 %v746
    %v945 = vpop.f32.mrf.mxu0
    %v946 = vadd.f32 %v722, %v945
    %947 = vdwg.mxu0
    %948 = vmatpush.msra.mxu0 0.0
    %949 = vmatpush.msra.mxu0 0.0
    %950 = vmatpush.msra.mxu0 0.0
    %951 = vmatpush.msra.mxu0 0.0
    %952 = vmatpush.msra.mxu0 0.0
    %953 = vmatpush.msra.mxu0 0.0
    %954 = vmatpush.msra.mxu0 0.0
    %955 = vmatpush.msra.mxu0 0.0
    %956 = vmatpush.msra.mxu0 0.0
    %957 = vmatpush.msra.mxu0 0.0
    %958 = vmatpush.msra.mxu0 0.0
    %959 = vmatpush.msra.mxu0 0.0
    %960 = vmatpush.msra.mxu0 %v130
    %961 = vmatpush.msra.mxu0 %v114
    %962 = vmatpush.msra.mxu0 %v98
    %963 = vmatpush.msra.mxu0 %v82
    %964 = vmatmul.f32.gmra.mxu0 %v746
    %v965 = vpop.f32.mrf.mxu0
    %v966 = vadd.f32 %v723, %v965
    %967 = vdwg.mxu0
    %968 = vmatpush.msra.mxu0 0.0
    %969 = vmatpush.msra.mxu0 0.0
    %970 = vmatpush.msra.mxu0 0.0
    %971 = vmatpush.msra.mxu0 0.0
    %972 = vmatpush.msra.mxu0 0.0
    %973 = vmatpush.msra.mxu0 0.0
    %974 = vmatpush.msra.mxu0 0.0
    %975 = vmatpush.msra.mxu0 0.0
    %976 = vmatpush.msra.mxu0 0.0
    %977 = vmatpush.msra.mxu0 0.0
    %978 = vmatpush.msra.mxu0 0.0
    %979 = vmatpush.msra.mxu0 0.0
    %980 = vmatpush.msra.mxu0 %v131
    %981 = vmatpush.msra.mxu0 %v115
    %982 = vmatpush.msra.mxu0 %v99
    %983 = vmatpush.msra.mxu0 %v83
    %984 = vmatmul.f32.gmra.mxu0 %v746
    %v985 = vpop.f32.mrf.mxu0
    %v986 = vadd.f32 %v724, %v985
    %987 = vdwg.mxu0
    %988 = vmatpush.msra.mxu0 0.0
    %989 = vmatpush.msra.mxu0 0.0
    %990 = vmatpush.msra.mxu0 0.0
    %991 = vmatpush.msra.mxu0 0.0
    %992 = vmatpush.msra.mxu0 0.0
    %993 = vmatpush.msra.mxu0 0.0
    %994 = vmatpush.msra.mxu0 0.0
    %995 = vmatpush.msra.mxu0 0.0
    %996 = vmatpush.msra.mxu0 0.0
    %997 = vmatpush.msra.mxu0 0.0
    %998 = vmatpush.msra.mxu0 0.0
    %999 = vmatpush.msra.mxu0 0.0
    %1000 = vmatpush.msra.mxu0 %v132
    %1001 = vmatpush.msra.mxu0 %v116
    %1002 = vmatpush.msra.mxu0 %v100
    %1003 = vmatpush.msra.mxu0 %v84
    %1004 = vmatmul.f32.gmra.mxu0 %v746
    %v1005 = vpop.f32.mrf.mxu0
    %v1006 = vadd.f32 %v725, %v1005
    %1007 = vdwg.mxu0
    %1008 = vmatpush.msra.mxu0 0.0
    %1009 = vmatpush.msra.mxu0 0.0
    %1010 = vmatpush.msra.mxu0 0.0
    %1011 = vmatpush.msra.mxu0 0.0
    %1012 = vmatpush.msra.mxu0 0.0
    %1013 = vmatpush.msra.mxu0 0.0
    %1014 = vmatpush.msra.mxu0 0.0
    %1015 = vmatpush.msra.mxu0 0.0
    %1016 = vmatpush.msra.mxu0 0.0
    %1017 = vmatpush.msra.mxu0 0.0
    %1018 = vmatpush.msra.mxu0 0.0
    %1019 = vmatpush.msra.mxu0 0.0
    %1020 = vmatpush.msra.mxu0 %v133
    %1021 = vmatpush.msra.mxu0 %v117
    %1022 = vmatpush.msra.mxu0 %v101
    %1023 = vmatpush.msra.mxu0 %v85
    %1024 = vmatmul.f32.gmra.mxu0 %v746
    %v1025 = vpop.f32.mrf.mxu0
    %v1026 = vadd.f32 %v726, %v1025
    %1027 = vdwg.mxu0
    %1028 = vmatpush.msra.mxu0 0.0
    %1029 = vmatpush.msra.mxu0 0.0
    %1030 = vmatpush.msra.mxu0 0.0
    %1031 = vmatpush.msra.mxu0 0.0
    %1032 = vmatpush.msra.mxu0 0.0
    %1033 = vmatpush.msra.mxu0 0.0
    %1034 = vmatpush.msra.mxu0 0.0
    %1035 = vmatpush.msra.mxu0 0.0
    %1036 = vmatpush.msra.mxu0 0.0
    %1037 = vmatpush.msra.mxu0 0.0
    %1038 = vmatpush.msra.mxu0 0.0
    %1039 = vmatpush.msra.mxu0 0.0
    %1040 = vmatpush.msra.mxu0 %v134
    %1041 = vmatpush.msra.mxu0 %v118
    %1042 = vmatpush.msra.mxu0 %v102
    %1043 = vmatpush.msra.mxu0 %v86
    %1044 = vmatmul.f32.gmra.mxu0 %v746
    %v1045 = vpop.f32.mrf.mxu0
    %v1046 = vadd.f32 %v727, %v1045
    %1047 = vdwg.mxu0
    %1048 = vmatpush.msra.mxu0 0.0
    %1049 = vmatpush.msra.mxu0 0.0
    %1050 = vmatpush.msra.mxu0 0.0
    %1051 = vmatpush.msra.mxu0 0.0
    %1052 = vmatpush.msra.mxu0 0.0
    %1053 = vmatpush.msra.mxu0 0.0
    %1054 = vmatpush.msra.mxu0 0.0
    %1055 = vmatpush.msra.mxu0 0.0
    %1056 = vmatpush.msra.mxu0 0.0
    %1057 = vmatpush.msra.mxu0 0.0
    %1058 = vmatpush.msra.mxu0 0.0
    %1059 = vmatpush.msra.mxu0 0.0
    %1060 = vmatpush.msra.mxu0 %v135
    %1061 = vmatpush.msra.mxu0 %v119
    %1062 = vmatpush.msra.mxu0 %v103
    %1063 = vmatpush.msra.mxu0 %v87
    %1064 = vmatmul.f32.gmra.mxu0 %v746
    %v1065 = vpop.f32.mrf.mxu0
    %v1066 = vadd.f32 %v728, %v1065
    %1067 = vdwg.mxu0
    %v1068 = vmax.f32 %v766, 0.0
    %v1069 = vmax.f32 %v786, 0.0
    %v1070 = vmax.f32 %v806, 0.0
    %v1071 = vmax.f32 %v826, 0.0
    %v1072 = vmax.f32 %v846, 0.0
    %v1073 = vmax.f32 %v866, 0.0
    %v1074 = vmax.f32 %v886, 0.0
    %v1075 = vmax.f32 %v906, 0.0
    %v1076 = vmax.f32 %v926, 0.0
    %v1077 = vmax.f32 %v946, 0.0
    %v1078 = vmax.f32 %v966, 0.0
    %v1079 = vmax.f32 %v986, 0.0
    %v1080 = vmax.f32 %v1006, 0.0
    %v1081 = vmax.f32 %v1026, 0.0
    %v1082 = vmax.f32 %v1046, 0.0
    %v1083 = vmax.f32 %v1066, 0.0
    %v1084 = vperm.slane %v648, 3
    %1085 = vmatpush.msra.mxu0 %v407
    %1086 = vmatpush.msra.mxu0 %v406
    %1087 = vmatpush.msra.mxu0 %v405
    %1088 = vmatpush.msra.mxu0 %v404
    %1089 = vmatpush.msra.mxu0 %v403
    %1090 = vmatpush.msra.mxu0 %v402
    %1091 = vmatpush.msra.mxu0 %v401
    %1092 = vmatpush.msra.mxu0 %v400
    %1093 = vmatpush.msra.mxu0 %v399
    %1094 = vmatpush.msra.mxu0 %v398
    %1095 = vmatpush.msra.mxu0 %v397
    %1096 = vmatpush.msra.mxu0 %v396
    %1097 = vmatpush.msra.mxu0 %v395
    %1098 = vmatpush.msra.mxu0 %v394
    %1099 = vmatpush.msra.mxu0 %v393
    %1100 = vmatpush.msra.mxu0 %v392
    %1101 = vmatmul.f32.gmra.mxu0 %v1068
    %v1102 = vpop.f32.mrf.mxu0
    %v1103 = vadd.f32 %v1084, %v1102
    %1104 = vdwg.mxu0
    %1105 = vmatpush.msra.mxu0 %v423
    %1106 = vmatpush.msra.mxu0 %v422
    %1107 = vmatpush.msra.mxu0 %v421
    %1108 = vmatpush.msra.mxu0 %v420
    %1109 = vmatpush.msra.mxu0 %v419
    %1110 = vmatpush.msra.mxu0 %v418
    %1111 = vmatpush.msra.mxu0 %v417
    %1112 = vmatpush.msra.mxu0 %v416
    %1113 = vmatpush.msra.mxu0 %v415
    %1114 = vmatpush.msra.mxu0 %v414
    %1115 = vmatpush.msra.mxu0 %v413
    %1116 = vmatpush.msra.mxu0 %v412
    %1117 = vmatpush.msra.mxu0 %v411
    %1118 = vmatpush.msra.mxu0 %v410
    %1119 = vmatpush.msra.mxu0 %v409
    %1120 = vmatpush.msra.mxu0 %v408
    %1121 = vmatmul.f32.gmra.mxu0 %v1069
    %v1122 = vpop.f32.mrf.mxu0
    %v1123 = vadd.f32 %v1103, %v1122
    %1124 = vdwg.mxu0
    %1125 = vmatpush.msra.mxu0 %v439
    %1126 = vmatpush.msra.mxu0 %v438
    %1127 = vmatpush.msra.mxu0 %v437
    %1128 = vmatpush.msra.mxu0 %v436
    %1129 = vmatpush.msra.mxu0 %v435
    %1130 = vmatpush.msra.mxu0 %v434
    %1131 = vmatpush.msra.mxu0 %v433
    %1132 = vmatpush.msra.mxu0 %v432
    %1133 = vmatpush.msra.mxu0 %v431
    %1134 = vmatpush.msra.mxu0 %v430
    %1135 = vmatpush.msra.mxu0 %v429
    %1136 = vmatpush.msra.mxu0 %v428
    %1137 = vmatpush.msra.mxu0 %v427
    %1138 = vmatpush.msra.mxu0 %v426
    %1139 = vmatpush.msra.mxu0 %v425
    %1140 = vmatpush.msra.mxu0 %v424
    %1141 = vmatmul.f32.gmra.mxu0 %v1070
    %v1142 = vpop.f32.mrf.mxu0
    %v1143 = vadd.f32 %v1123, %v1142
    %1144 = vdwg.mxu0
    %1145 = vmatpush.msra.mxu0 %v455
    %1146 = vmatpush.msra.mxu0 %v454
    %1147 = vmatpush.msra.mxu0 %v453
    %1148 = vmatpush.msra.mxu0 %v452
    %1149 = vmatpush.msra.mxu0 %v451
    %1150 = vmatpush.msra.mxu0 %v450
    %1151 = vmatpush.msra.mxu0 %v449
    %1152 = vmatpush.msra.mxu0 %v448
    %1153 = vmatpush.msra.mxu0 %v447
    %1154 = vmatpush.msra.mxu0 %v446
    %1155 = vmatpush.msra.mxu0 %v445
    %1156 = vmatpush.msra.mxu0 %v444
    %1157 = vmatpush.msra.mxu0 %v443
    %1158 = vmatpush.msra.mxu0 %v442
    %1159 = vmatpush.msra.mxu0 %v441
    %1160 = vmatpush.msra.mxu0 %v440
    %1161 = vmatmul.f32.gmra.mxu0 %v1071
    %v1162 = vpop.f32.mrf.mxu0
    %v1163 = vadd.f32 %v1143, %v1162
    %1164 = vdwg.mxu0
    %1165 = vmatpush.msra.mxu0 %v471
    %1166 = vmatpush.msra.mxu0 %v470
    %1167 = vmatpush.msra.mxu0 %v469
    %1168 = vmatpush.msra.mxu0 %v468
    %1169 = vmatpush.msra.mxu0 %v467
    %1170 = vmatpush.msra.mxu0 %v466
    %1171 = vmatpush.msra.mxu0 %v465
    %1172 = vmatpush.msra.mxu0 %v464
    %1173 = vmatpush.msra.mxu0 %v463
    %1174 = vmatpush.msra.mxu0 %v462
    %1175 = vmatpush.msra.mxu0 %v461
    %1176 = vmatpush.msra.mxu0 %v460
    %1177 = vmatpush.msra.mxu0 %v459
    %1178 = vmatpush.msra.mxu0 %v458
    %1179 = vmatpush.msra.mxu0 %v457
    %1180 = vmatpush.msra.mxu0 %v456
    %1181 = vmatmul.f32.gmra.mxu0 %v1072
    %v1182 = vpop.f32.mrf.mxu0
    %v1183 = vadd.f32 %v1163, %v1182
    %1184 = vdwg.mxu0
    %1185 = vmatpush.msra.mxu0 %v487
    %1186 = vmatpush.msra.mxu0 %v486
    %1187 = vmatpush.msra.mxu0 %v485
    %1188 = vmatpush.msra.mxu0 %v484
    %1189 = vmatpush.msra.mxu0 %v483
    %1190 = vmatpush.msra.mxu0 %v482
    %1191 = vmatpush.msra.mxu0 %v481
    %1192 = vmatpush.msra.mxu0 %v480
    %1193 = vmatpush.msra.mxu0 %v479
    %1194 = vmatpush.msra.mxu0 %v478
    %1195 = vmatpush.msra.mxu0 %v477
    %1196 = vmatpush.msra.mxu0 %v476
    %1197 = vmatpush.msra.mxu0 %v475
    %1198 = vmatpush.msra.mxu0 %v474
    %1199 = vmatpush.msra.mxu0 %v473
    %1200 = vmatpush.msra.mxu0 %v472
    %1201 = vmatmul.f32.gmra.mxu0 %v1073
    %v1202 = vpop.f32.mrf.mxu0
    %v1203 = vadd.f32 %v1183, %v1202
    %1204 = vdwg.mxu0
    %1205 = vmatpush.msra.mxu0 %v503
    %1206 = vmatpush.msra.mxu0 %v502
    %1207 = vmatpush.msra.mxu0 %v501
    %1208 = vmatpush.msra.mxu0 %v500
    %1209 = vmatpush.msra.mxu0 %v499
    %1210 = vmatpush.msra.mxu0 %v498
    %1211 = vmatpush.msra.mxu0 %v497
    %1212 = vmatpush.msra.mxu0 %v496
    %1213 = vmatpush.msra.mxu0 %v495
    %1214 = vmatpush.msra.mxu0 %v494
    %1215 = vmatpush.msra.mxu0 %v493
    %1216 = vmatpush.msra.mxu0 %v492
    %1217 = vmatpush.msra.mxu0 %v491
    %1218 = vmatpush.msra.mxu0 %v490
    %1219 = vmatpush.msra.mxu0 %v489
    %1220 = vmatpush.msra.mxu0 %v488
    %1221 = vmatmul.f32.gmra.mxu0 %v1074
    %v1222 = vpop.f32.mrf.mxu0
    %v1223 = vadd.f32 %v1203, %v1222
    %1224 = vdwg.mxu0
    %1225 = vmatpush.msra.mxu0 %v519
    %1226 = vmatpush.msra.mxu0 %v518
    %1227 = vmatpush.msra.mxu0 %v517
    %1228 = vmatpush.msra.mxu0 %v516
    %1229 = vmatpush.msra.mxu0 %v515
    %1230 = vmatpush.msra.mxu0 %v514
    %1231 = vmatpush.msra.mxu0 %v513
    %1232 = vmatpush.msra.mxu0 %v512
    %1233 = vmatpush.msra.mxu0 %v511
    %1234 = vmatpush.msra.mxu0 %v510
    %1235 = vmatpush.msra.mxu0 %v509
    %1236 = vmatpush.msra.mxu0 %v508
    %1237 = vmatpush.msra.mxu0 %v507
    %1238 = vmatpush.msra.mxu0 %v506
    %1239 = vmatpush.msra.mxu0 %v505
    %1240 = vmatpush.msra.mxu0 %v504
    %1241 = vmatmul.f32.gmra.mxu0 %v1075
    %v1242 = vpop.f32.mrf.mxu0
    %v1243 = vadd.f32 %v1223, %v1242
    %1244 = vdwg.mxu0
    %1245 = vmatpush.msra.mxu0 %v535
    %1246 = vmatpush.msra.mxu0 %v534
    %1247 = vmatpush.msra.mxu0 %v533
    %1248 = vmatpush.msra.mxu0 %v532
    %1249 = vmatpush.msra.mxu0 %v531
    %1250 = vmatpush.msra.mxu0 %v530
    %1251 = vmatpush.msra.mxu0 %v529
    %1252 = vmatpush.msra.mxu0 %v528
    %1253 = vmatpush.msra.mxu0 %v527
    %1254 = vmatpush.msra.mxu0 %v526
    %1255 = vmatpush.msra.mxu0 %v525
    %1256 = vmatpush.msra.mxu0 %v524
    %1257 = vmatpush.msra.mxu0 %v523
    %1258 = vmatpush.msra.mxu0 %v522
    %1259 = vmatpush.msra.mxu0 %v521
    %1260 = vmatpush.msra.mxu0 %v520
    %1261 = vmatmul.f32.gmra.mxu0 %v1076
    %v1262 = vpop.f32.mrf.mxu0
    %v1263 = vadd.f32 %v1243, %v1262
    %1264 = vdwg.mxu0
    %1265 = vmatpush.msra.mxu0 %v551
    %1266 = vmatpush.msra.mxu0 %v550
    %1267 = vmatpush.msra.mxu0 %v549
    %1268 = vmatpush.msra.mxu0 %v548
    %1269 = vmatpush.msra.mxu0 %v547
    %1270 = vmatpush.msra.mxu0 %v546
    %1271 = vmatpush.msra.mxu0 %v545
    %1272 = vmatpush.msra.mxu0 %v544
    %1273 = vmatpush.msra.mxu0 %v543
    %1274 = vmatpush.msra.mxu0 %v542
    %1275 = vmatpush.msra.mxu0 %v541
    %1276 = vmatpush.msra.mxu0 %v540
    %1277 = vmatpush.msra.mxu0 %v539
    %1278 = vmatpush.msra.mxu0 %v538
    %1279 = vmatpush.msra.mxu0 %v537
    %1280 = vmatpush.msra.mxu0 %v536
    %1281 = vmatmul.f32.gmra.mxu0 %v1077
    %v1282 = vpop.f32.mrf.mxu0
    %v1283 = vadd.f32 %v1263, %v1282
    %1284 = vdwg.mxu0
    %1285 = vmatpush.msra.mxu0 %v567
    %1286 = vmatpush.msra.mxu0 %v566
    %1287 = vmatpush.msra.mxu0 %v565
    %1288 = vmatpush.msra.mxu0 %v564
    %1289 = vmatpush.msra.mxu0 %v563
    %1290 = vmatpush.msra.mxu0 %v562
    %1291 = vmatpush.msra.mxu0 %v561
    %1292 = vmatpush.msra.mxu0 %v560
    %1293 = vmatpush.msra.mxu0 %v559
    %1294 = vmatpush.msra.mxu0 %v558
    %1295 = vmatpush.msra.mxu0 %v557
    %1296 = vmatpush.msra.mxu0 %v556
    %1297 = vmatpush.msra.mxu0 %v555
    %1298 = vmatpush.msra.mxu0 %v554
    %1299 = vmatpush.msra.mxu0 %v553
    %1300 = vmatpush.msra.mxu0 %v552
    %1301 = vmatmul.f32.gmra.mxu0 %v1078
    %v1302 = vpop.f32.mrf.mxu0
    %v1303 = vadd.f32 %v1283, %v1302
    %1304 = vdwg.mxu0
    %1305 = vmatpush.msra.mxu0 %v583
    %1306 = vmatpush.msra.mxu0 %v582
    %1307 = vmatpush.msra.mxu0 %v581
    %1308 = vmatpush.msra.mxu0 %v580
    %1309 = vmatpush.msra.mxu0 %v579
    %1310 = vmatpush.msra.mxu0 %v578
    %1311 = vmatpush.msra.mxu0 %v577
    %1312 = vmatpush.msra.mxu0 %v576
    %1313 = vmatpush.msra.mxu0 %v575
    %1314 = vmatpush.msra.mxu0 %v574
    %1315 = vmatpush.msra.mxu0 %v573
    %1316 = vmatpush.msra.mxu0 %v572
    %1317 = vmatpush.msra.mxu0 %v571
    %1318 = vmatpush.msra.mxu0 %v570
    %1319 = vmatpush.msra.mxu0 %v569
    %1320 = vmatpush.msra.mxu0 %v568
    %1321 = vmatmul.f32.gmra.mxu0 %v1079
    %v1322 = vpop.f32.mrf.mxu0
    %v1323 = vadd.f32 %v1303, %v1322
    %1324 = vdwg.mxu0
    %1325 = vmatpush.msra.mxu0 %v599
    %1326 = vmatpush.msra.mxu0 %v598
    %1327 = vmatpush.msra.mxu0 %v597
    %1328 = vmatpush.msra.mxu0 %v596
    %1329 = vmatpush.msra.mxu0 %v595
    %1330 = vmatpush.msra.mxu0 %v594
    %1331 = vmatpush.msra.mxu0 %v593
    %1332 = vmatpush.msra.mxu0 %v592
    %1333 = vmatpush.msra.mxu0 %v591
    %1334 = vmatpush.msra.mxu0 %v590
    %1335 = vmatpush.msra.mxu0 %v589
    %1336 = vmatpush.msra.mxu0 %v588
    %1337 = vmatpush.msra.mxu0 %v587
    %1338 = vmatpush.msra.mxu0 %v586
    %1339 = vmatpush.msra.mxu0 %v585
    %1340 = vmatpush.msra.mxu0 %v584
    %1341 = vmatmul.f32.gmra.mxu0 %v1080
    %v1342 = vpop.f32.mrf.mxu0
    %v1343 = vadd.f32 %v1323, %v1342
    %1344 = vdwg.mxu0
    %1345 = vmatpush.msra.mxu0 %v615
    %1346 = vmatpush.msra.mxu0 %v614
    %1347 = vmatpush.msra.mxu0 %v613
    %1348 = vmatpush.msra.mxu0 %v612
    %1349 = vmatpush.msra.mxu0 %v611
    %1350 = vmatpush.msra.mxu0 %v610
    %1351 = vmatpush.msra.mxu0 %v609
    %1352 = vmatpush.msra.mxu0 %v608
    %1353 = vmatpush.msra.mxu0 %v607
    %1354 = vmatpush.msra.mxu0 %v606
    %1355 = vmatpush.msra.mxu0 %v605
    %1356 = vmatpush.msra.mxu0 %v604
    %1357 = vmatpush.msra.mxu0 %v603
    %1358 = vmatpush.msra.mxu0 %v602
    %1359 = vmatpush.msra.mxu0 %v601
    %1360 = vmatpush.msra.mxu0 %v600
    %1361 = vmatmul.f32.gmra.mxu0 %v1081
    %v1362 = vpop.f32.mrf.mxu0
    %v1363 = vadd.f32 %v1343, %v1362
    %1364 = vdwg.mxu0
    %1365 = vmatpush.msra.mxu0 %v631
    %1366 = vmatpush.msra.mxu0 %v630
    %1367 = vmatpush.msra.mxu0 %v629
    %1368 = vmatpush.msra.mxu0 %v628
    %1369 = vmatpush.msra.mxu0 %v627
    %1370 = vmatpush.msra.mxu0 %v626
    %1371 = vmatpush.msra.mxu0 %v625
    %1372 = vmatpush.msra.mxu0 %v624
    %1373 = vmatpush.msra.mxu0 %v623
    %1374 = vmatpush.msra.mxu0 %v622
    %1375 = vmatpush.msra.mxu0 %v621
    %1376 = vmatpush.msra.mxu0 %v620
    %1377 = vmatpush.msra.mxu0 %v619
    %1378 = vmatpush.msra.mxu0 %v618
    %1379 = vmatpush.msra.mxu0 %v617
    %1380 = vmatpush.msra.mxu0 %v616
    %1381 = vmatmul.f32.gmra.mxu0 %v1082
    %v1382 = vpop.f32.mrf.mxu0
    %v1383 = vadd.f32 %v1363, %v1382
    %1384 = vdwg.mxu0
    %1385 = vmatpush.msra.mxu0 %v647
    %1386 = vmatpush.msra.mxu0 %v646
    %1387 = vmatpush.msra.mxu0 %v645
    %1388 = vmatpush.msra.mxu0 %v644
    %1389 = vmatpush.msra.mxu0 %v643
    %1390 = vmatpush.msra.mxu0 %v642
    %1391 = vmatpush.msra.mxu0 %v641
    %1392 = vmatpush.msra.mxu0 %v640
    %1393 = vmatpush.msra.mxu0 %v639
    %1394 = vmatpush.msra.mxu0 %v638
    %1395 = vmatpush.msra.mxu0 %v637
    %1396 = vmatpush.msra.mxu0 %v636
    %1397 = vmatpush.msra.mxu0 %v635
    %1398 = vmatpush.msra.mxu0 %v634
    %1399 = vmatpush.msra.mxu0 %v633
    %1400 = vmatpush.msra.mxu0 %v632
    %1401 = vmatmul.f32.gmra.mxu0 %v1083
    %v1402 = vpop.f32.mrf.mxu0
    %v1403 = vadd.f32 %v1383, %v1402
    %1404 = vdwg.mxu0
    %v1405 = vadd.f32 %v710, %v1403
    %v1406 = vsel %vm677, %v1405, 0.0
    %1407 = vadd.xlane.f32.xlu0 %v1406
    %v1408 = vpop.xlane.xlu0 %1407
    %v1409 = vmul.f32 %v1408, %v687
    %v1410 = vsub.f32 %v1405, %v1409
    %v1411 = vmul.f32 %v1410, %v1410
    %v1412 = vsel %vm677, %v1411, 0.0
    %1413 = vadd.xlane.f32.xlu0 %v1412
    %v1414 = vpop.xlane.xlu0 %1413
    %v1415 = vmul.f32 %v1414, %v687
    %v1416 = vadd.f32 %v1415, 1e-05
    %v1417 = vrsqrt.pop %v1416
    %v1418 = vmul.f32 %v1417, %v1416
    %v1419 = vmul.f32 %v1418, %v1417
    %v1420 = vmul.f32 0.5, %v1419
    %v1421 = vsub.f32 1.5, %v1420
    %v1422 = vmul.f32 %v1417, %v1421
    %vm1423 = vweird.f32 %v1416
    %vm1424 = vweird.f32 %v1417
    %vm1425 = vmor %vm1423, %vm1424
    %v1426 = vsel %vm1425, %v1417, %v1422
    %v1427 = vmul.f32 %v1410, %v1426
    %v1428 = vperm.slane %v648, 4
    %v1429 = vmul.f32 %v1427, %v1428
    %v1430 = vperm.slane %v648, 5
    %v1431 = vadd.f32 %v1429, %v1430
    %s1432 = scalar_lea.vmem %s1, 16
    %v1433 = vld [vmem:[%s1432] sm:$0xf]
    %v1434 = vld [vmem:[%s1432 + $0x4] sm:$0xf]
    %v1435 = vld [vmem:[%s1432 + $0x8] sm:$0xf]
    %v1436 = vld [vmem:[%s1432 + $0xc] sm:$0xf]
    %v1437 = vunpack.c.l.bf16 %v1433
    %v1438 = vunpack.c.l.bf16 %v1434
    %v1439 = vunpack.c.l.bf16 %v1435
    %v1440 = vunpack.c.l.bf16 %v1436
    %s1441 = scalar_lea.vmem %s3, 256
    %v1442 = vld [vmem:[%s1441] sm:$0xff]
    %v1443 = vld [vmem:[%s1441 + $0x8] sm:$0xff]
    %v1444 = vld [vmem:[%s1441 + $0x10] sm:$0xff]
    %v1445 = vld [vmem:[%s1441 + $0x18] sm:$0xff]
    %v1446 = vld [vmem:[%s1441 + $0x20] sm:$0xff]
    %v1447 = vld [vmem:[%s1441 + $0x28] sm:$0xff]
    %v1448 = vld [vmem:[%s1441 + $0x30] sm:$0xff]
    %v1449 = vld [vmem:[%s1441 + $0x38] sm:$0xff]
    %v1450 = vld [vmem:[%s1441 + $0x40] sm:$0xff]
    %v1451 = vld [vmem:[%s1441 + $0x48] sm:$0xff]
    %v1452 = vld [vmem:[%s1441 + $0x50] sm:$0xff]
    %v1453 = vld [vmem:[%s1441 + $0x58] sm:$0xff]
    %v1454 = vld [vmem:[%s1441 + $0x60] sm:$0xff]
    %v1455 = vld [vmem:[%s1441 + $0x68] sm:$0xff]
    %v1456 = vld [vmem:[%s1441 + $0x70] sm:$0xff]
    %v1457 = vld [vmem:[%s1441 + $0x78] sm:$0xff]
    %v1458 = vld [vmem:[%s1441 + $0x80] sm:$0xff]
    %v1459 = vld [vmem:[%s1441 + $0x88] sm:$0xff]
    %v1460 = vld [vmem:[%s1441 + $0x90] sm:$0xff]
    %v1461 = vld [vmem:[%s1441 + $0x98] sm:$0xff]
    %v1462 = vld [vmem:[%s1441 + $0xa0] sm:$0xff]
    %v1463 = vld [vmem:[%s1441 + $0xa8] sm:$0xff]
    %v1464 = vld [vmem:[%s1441 + $0xb0] sm:$0xff]
    %v1465 = vld [vmem:[%s1441 + $0xb8] sm:$0xff]
    %v1466 = vld [vmem:[%s1441 + $0xc0] sm:$0xff]
    %v1467 = vld [vmem:[%s1441 + $0xc8] sm:$0xff]
    %v1468 = vld [vmem:[%s1441 + $0xd0] sm:$0xff]
    %v1469 = vld [vmem:[%s1441 + $0xd8] sm:$0xff]
    %v1470 = vld [vmem:[%s1441 + $0xe0] sm:$0xff]
    %v1471 = vld [vmem:[%s1441 + $0xe8] sm:$0xff]
    %v1472 = vld [vmem:[%s1441 + $0xf0] sm:$0xff]
    %v1473 = vld [vmem:[%s1441 + $0xf8] sm:$0xff]
    %v1474 = vunpack.c.l.bf16 %v1442
    %v1475 = vunpack.c.h.bf16 %v1442
    %v1476 = vunpack.c.l.bf16 %v1443
    %v1477 = vunpack.c.h.bf16 %v1443
    %v1478 = vunpack.c.l.bf16 %v1444
    %v1479 = vunpack.c.h.bf16 %v1444
    %v1480 = vunpack.c.l.bf16 %v1445
    %v1481 = vunpack.c.h.bf16 %v1445
    %v1482 = vunpack.c.l.bf16 %v1446
    %v1483 = vunpack.c.h.bf16 %v1446
    %v1484 = vunpack.c.l.bf16 %v1447
    %v1485 = vunpack.c.h.bf16 %v1447
    %v1486 = vunpack.c.l.bf16 %v1448
    %v1487 = vunpack.c.h.bf16 %v1448
    %v1488 = vunpack.c.l.bf16 %v1449
    %v1489 = vunpack.c.h.bf16 %v1449
    %v1490 = vunpack.c.l.bf16 %v1450
    %v1491 = vunpack.c.h.bf16 %v1450
    %v1492 = vunpack.c.l.bf16 %v1451
    %v1493 = vunpack.c.h.bf16 %v1451
    %v1494 = vunpack.c.l.bf16 %v1452
    %v1495 = vunpack.c.h.bf16 %v1452
    %v1496 = vunpack.c.l.bf16 %v1453
    %v1497 = vunpack.c.h.bf16 %v1453
    %v1498 = vunpack.c.l.bf16 %v1454
    %v1499 = vunpack.c.h.bf16 %v1454
    %v1500 = vunpack.c.l.bf16 %v1455
    %v1501 = vunpack.c.h.bf16 %v1455
    %v1502 = vunpack.c.l.bf16 %v1456
    %v1503 = vunpack.c.h.bf16 %v1456
    %v1504 = vunpack.c.l.bf16 %v1457
    %v1505 = vunpack.c.h.bf16 %v1457
    %v1506 = vunpack.c.l.bf16 %v1458
    %v1507 = vunpack.c.h.bf16 %v1458
    %v1508 = vunpack.c.l.bf16 %v1459
    %v1509 = vunpack.c.h.bf16 %v1459
    %v1510 = vunpack.c.l.bf16 %v1460
    %v1511 = vunpack.c.h.bf16 %v1460
    %v1512 = vunpack.c.l.bf16 %v1461
    %v1513 = vunpack.c.h.bf16 %v1461
    %v1514 = vunpack.c.l.bf16 %v1462
    %v1515 = vunpack.c.h.bf16 %v1462
    %v1516 = vunpack.c.l.bf16 %v1463
    %v1517 = vunpack.c.h.bf16 %v1463
    %v1518 = vunpack.c.l.bf16 %v1464
    %v1519 = vunpack.c.h.bf16 %v1464
    %v1520 = vunpack.c.l.bf16 %v1465
    %v1521 = vunpack.c.h.bf16 %v1465
    %v1522 = vunpack.c.l.bf16 %v1466
    %v1523 = vunpack.c.h.bf16 %v1466
    %v1524 = vunpack.c.l.bf16 %v1467
    %v1525 = vunpack.c.h.bf16 %v1467
    %v1526 = vunpack.c.l.bf16 %v1468
    %v1527 = vunpack.c.h.bf16 %v1468
    %v1528 = vunpack.c.l.bf16 %v1469
    %v1529 = vunpack.c.h.bf16 %v1469
    %v1530 = vunpack.c.l.bf16 %v1470
    %v1531 = vunpack.c.h.bf16 %v1470
    %v1532 = vunpack.c.l.bf16 %v1471
    %v1533 = vunpack.c.h.bf16 %v1471
    %v1534 = vunpack.c.l.bf16 %v1472
    %v1535 = vunpack.c.h.bf16 %v1472
    %v1536 = vunpack.c.l.bf16 %v1473
    %v1537 = vunpack.c.h.bf16 %v1473
    %s1538 = scalar_lea.vmem %s5, 1024
    %v1539 = vld [vmem:[%s1538] sm:$0xf]
    %v1540 = vld [vmem:[%s1538 + $0x4] sm:$0xf]
    %v1541 = vld [vmem:[%s1538 + $0x8] sm:$0xf]
    %v1542 = vld [vmem:[%s1538 + $0xc] sm:$0xf]
    %v1543 = vld [vmem:[%s1538 + $0x10] sm:$0xf]
    %v1544 = vld [vmem:[%s1538 + $0x14] sm:$0xf]
    %v1545 = vld [vmem:[%s1538 + $0x18] sm:$0xf]
    %v1546 = vld [vmem:[%s1538 + $0x1c] sm:$0xf]
    %v1547 = vld [vmem:[%s1538 + $0x20] sm:$0xf]
    %v1548 = vld [vmem:[%s1538 + $0x24] sm:$0xf]
    %v1549 = vld [vmem:[%s1538 + $0x28] sm:$0xf]
    %v1550 = vld [vmem:[%s1538 + $0x2c] sm:$0xf]
    %v1551 = vld [vmem:[%s1538 + $0x30] sm:$0xf]
    %v1552 = vld [vmem:[%s1538 + $0x34] sm:$0xf]
    %v1553 = vld [vmem:[%s1538 + $0x38] sm:$0xf]
    %v1554 = vld [vmem:[%s1538 + $0x3c] sm:$0xf]
    %v1555 = vld [vmem:[%s1538 + $0x40] sm:$0xf]
    %v1556 = vld [vmem:[%s1538 + $0x44] sm:$0xf]
    %v1557 = vld [vmem:[%s1538 + $0x48] sm:$0xf]
    %v1558 = vld [vmem:[%s1538 + $0x4c] sm:$0xf]
    %v1559 = vld [vmem:[%s1538 + $0x50] sm:$0xf]
    %v1560 = vld [vmem:[%s1538 + $0x54] sm:$0xf]
    %v1561 = vld [vmem:[%s1538 + $0x58] sm:$0xf]
    %v1562 = vld [vmem:[%s1538 + $0x5c] sm:$0xf]
    %v1563 = vld [vmem:[%s1538 + $0x60] sm:$0xf]
    %v1564 = vld [vmem:[%s1538 + $0x64] sm:$0xf]
    %v1565 = vld [vmem:[%s1538 + $0x68] sm:$0xf]
    %v1566 = vld [vmem:[%s1538 + $0x6c] sm:$0xf]
    %v1567 = vld [vmem:[%s1538 + $0x70] sm:$0xf]
    %v1568 = vld [vmem:[%s1538 + $0x74] sm:$0xf]
    %v1569 = vld [vmem:[%s1538 + $0x78] sm:$0xf]
    %v1570 = vld [vmem:[%s1538 + $0x7c] sm:$0xf]
    %v1571 = vld [vmem:[%s1538 + $0x80] sm:$0xf]
    %v1572 = vld [vmem:[%s1538 + $0x84] sm:$0xf]
    %v1573 = vld [vmem:[%s1538 + $0x88] sm:$0xf]
    %v1574 = vld [vmem:[%s1538 + $0x8c] sm:$0xf]
    %v1575 = vld [vmem:[%s1538 + $0x90] sm:$0xf]
    %v1576 = vld [vmem:[%s1538 + $0x94] sm:$0xf]
    %v1577 = vld [vmem:[%s1538 + $0x98] sm:$0xf]
    %v1578 = vld [vmem:[%s1538 + $0x9c] sm:$0xf]
    %v1579 = vld [vmem:[%s1538 + $0xa0] sm:$0xf]
    %v1580 = vld [vmem:[%s1538 + $0xa4] sm:$0xf]
    %v1581 = vld [vmem:[%s1538 + $0xa8] sm:$0xf]
    %v1582 = vld [vmem:[%s1538 + $0xac] sm:$0xf]
    %v1583 = vld [vmem:[%s1538 + $0xb0] sm:$0xf]
    %v1584 = vld [vmem:[%s1538 + $0xb4] sm:$0xf]
    %v1585 = vld [vmem:[%s1538 + $0xb8] sm:$0xf]
    %v1586 = vld [vmem:[%s1538 + $0xbc] sm:$0xf]
    %v1587 = vld [vmem:[%s1538 + $0xc0] sm:$0xf]
    %v1588 = vld [vmem:[%s1538 + $0xc4] sm:$0xf]
    %v1589 = vld [vmem:[%s1538 + $0xc8] sm:$0xf]
    %v1590 = vld [vmem:[%s1538 + $0xcc] sm:$0xf]
    %v1591 = vld [vmem:[%s1538 + $0xd0] sm:$0xf]
    %v1592 = vld [vmem:[%s1538 + $0xd4] sm:$0xf]
    %v1593 = vld [vmem:[%s1538 + $0xd8] sm:$0xf]
    %v1594 = vld [vmem:[%s1538 + $0xdc] sm:$0xf]
    %v1595 = vld [vmem:[%s1538 + $0xe0] sm:$0xf]
    %v1596 = vld [vmem:[%s1538 + $0xe4] sm:$0xf]
    %v1597 = vld [vmem:[%s1538 + $0xe8] sm:$0xf]
    %v1598 = vld [vmem:[%s1538 + $0xec] sm:$0xf]
    %v1599 = vld [vmem:[%s1538 + $0xf0] sm:$0xf]
    %v1600 = vld [vmem:[%s1538 + $0xf4] sm:$0xf]
    %v1601 = vld [vmem:[%s1538 + $0xf8] sm:$0xf]
    %v1602 = vld [vmem:[%s1538 + $0xfc] sm:$0xf]
    %v1603 = vld [vmem:[%s1538 + $0x100] sm:$0xf]
    %v1604 = vld [vmem:[%s1538 + $0x104] sm:$0xf]
    %v1605 = vld [vmem:[%s1538 + $0x108] sm:$0xf]
    %v1606 = vld [vmem:[%s1538 + $0x10c] sm:$0xf]
    %v1607 = vld [vmem:[%s1538 + $0x110] sm:$0xf]
    %v1608 = vld [vmem:[%s1538 + $0x114] sm:$0xf]
    %v1609 = vld [vmem:[%s1538 + $0x118] sm:$0xf]
    %v1610 = vld [vmem:[%s1538 + $0x11c] sm:$0xf]
    %v1611 = vld [vmem:[%s1538 + $0x120] sm:$0xf]
    %v1612 = vld [vmem:[%s1538 + $0x124] sm:$0xf]
    %v1613 = vld [vmem:[%s1538 + $0x128] sm:$0xf]
    %v1614 = vld [vmem:[%s1538 + $0x12c] sm:$0xf]
    %v1615 = vld [vmem:[%s1538 + $0x130] sm:$0xf]
    %v1616 = vld [vmem:[%s1538 + $0x134] sm:$0xf]
    %v1617 = vld [vmem:[%s1538 + $0x138] sm:$0xf]
    %v1618 = vld [vmem:[%s1538 + $0x13c] sm:$0xf]
    %v1619 = vld [vmem:[%s1538 + $0x140] sm:$0xf]
    %v1620 = vld [vmem:[%s1538 + $0x144] sm:$0xf]
    %v1621 = vld [vmem:[%s1538 + $0x148] sm:$0xf]
    %v1622 = vld [vmem:[%s1538 + $0x14c] sm:$0xf]
    %v1623 = vld [vmem:[%s1538 + $0x150] sm:$0xf]
    %v1624 = vld [vmem:[%s1538 + $0x154] sm:$0xf]
    %v1625 = vld [vmem:[%s1538 + $0x158] sm:$0xf]
    %v1626 = vld [vmem:[%s1538 + $0x15c] sm:$0xf]
    %v1627 = vld [vmem:[%s1538 + $0x160] sm:$0xf]
    %v1628 = vld [vmem:[%s1538 + $0x164] sm:$0xf]
    %v1629 = vld [vmem:[%s1538 + $0x168] sm:$0xf]
    %v1630 = vld [vmem:[%s1538 + $0x16c] sm:$0xf]
    %v1631 = vld [vmem:[%s1538 + $0x170] sm:$0xf]
    %v1632 = vld [vmem:[%s1538 + $0x174] sm:$0xf]
    %v1633 = vld [vmem:[%s1538 + $0x178] sm:$0xf]
    %v1634 = vld [vmem:[%s1538 + $0x17c] sm:$0xf]
    %v1635 = vld [vmem:[%s1538 + $0x180] sm:$0xf]
    %v1636 = vld [vmem:[%s1538 + $0x184] sm:$0xf]
    %v1637 = vld [vmem:[%s1538 + $0x188] sm:$0xf]
    %v1638 = vld [vmem:[%s1538 + $0x18c] sm:$0xf]
    %v1639 = vld [vmem:[%s1538 + $0x190] sm:$0xf]
    %v1640 = vld [vmem:[%s1538 + $0x194] sm:$0xf]
    %v1641 = vld [vmem:[%s1538 + $0x198] sm:$0xf]
    %v1642 = vld [vmem:[%s1538 + $0x19c] sm:$0xf]
    %v1643 = vld [vmem:[%s1538 + $0x1a0] sm:$0xf]
    %v1644 = vld [vmem:[%s1538 + $0x1a4] sm:$0xf]
    %v1645 = vld [vmem:[%s1538 + $0x1a8] sm:$0xf]
    %v1646 = vld [vmem:[%s1538 + $0x1ac] sm:$0xf]
    %v1647 = vld [vmem:[%s1538 + $0x1b0] sm:$0xf]
    %v1648 = vld [vmem:[%s1538 + $0x1b4] sm:$0xf]
    %v1649 = vld [vmem:[%s1538 + $0x1b8] sm:$0xf]
    %v1650 = vld [vmem:[%s1538 + $0x1bc] sm:$0xf]
    %v1651 = vld [vmem:[%s1538 + $0x1c0] sm:$0xf]
    %v1652 = vld [vmem:[%s1538 + $0x1c4] sm:$0xf]
    %v1653 = vld [vmem:[%s1538 + $0x1c8] sm:$0xf]
    %v1654 = vld [vmem:[%s1538 + $0x1cc] sm:$0xf]
    %v1655 = vld [vmem:[%s1538 + $0x1d0] sm:$0xf]
    %v1656 = vld [vmem:[%s1538 + $0x1d4] sm:$0xf]
    %v1657 = vld [vmem:[%s1538 + $0x1d8] sm:$0xf]
    %v1658 = vld [vmem:[%s1538 + $0x1dc] sm:$0xf]
    %v1659 = vld [vmem:[%s1538 + $0x1e0] sm:$0xf]
    %v1660 = vld [vmem:[%s1538 + $0x1e4] sm:$0xf]
    %v1661 = vld [vmem:[%s1538 + $0x1e8] sm:$0xf]
    %v1662 = vld [vmem:[%s1538 + $0x1ec] sm:$0xf]
    %v1663 = vld [vmem:[%s1538 + $0x1f0] sm:$0xf]
    %v1664 = vld [vmem:[%s1538 + $0x1f4] sm:$0xf]
    %v1665 = vld [vmem:[%s1538 + $0x1f8] sm:$0xf]
    %v1666 = vld [vmem:[%s1538 + $0x1fc] sm:$0xf]
    %v1667 = vld [vmem:[%s1538 + $0x200] sm:$0xf]
    %v1668 = vld [vmem:[%s1538 + $0x204] sm:$0xf]
    %v1669 = vld [vmem:[%s1538 + $0x208] sm:$0xf]
    %v1670 = vld [vmem:[%s1538 + $0x20c] sm:$0xf]
    %v1671 = vld [vmem:[%s1538 + $0x210] sm:$0xf]
    %v1672 = vld [vmem:[%s1538 + $0x214] sm:$0xf]
    %v1673 = vld [vmem:[%s1538 + $0x218] sm:$0xf]
    %v1674 = vld [vmem:[%s1538 + $0x21c] sm:$0xf]
    %v1675 = vld [vmem:[%s1538 + $0x220] sm:$0xf]
    %v1676 = vld [vmem:[%s1538 + $0x224] sm:$0xf]
    %v1677 = vld [vmem:[%s1538 + $0x228] sm:$0xf]
    %v1678 = vld [vmem:[%s1538 + $0x22c] sm:$0xf]
    %v1679 = vld [vmem:[%s1538 + $0x230] sm:$0xf]
    %v1680 = vld [vmem:[%s1538 + $0x234] sm:$0xf]
    %v1681 = vld [vmem:[%s1538 + $0x238] sm:$0xf]
    %v1682 = vld [vmem:[%s1538 + $0x23c] sm:$0xf]
    %v1683 = vld [vmem:[%s1538 + $0x240] sm:$0xf]
    %v1684 = vld [vmem:[%s1538 + $0x244] sm:$0xf]
    %v1685 = vld [vmem:[%s1538 + $0x248] sm:$0xf]
    %v1686 = vld [vmem:[%s1538 + $0x24c] sm:$0xf]
    %v1687 = vld [vmem:[%s1538 + $0x250] sm:$0xf]
    %v1688 = vld [vmem:[%s1538 + $0x254] sm:$0xf]
    %v1689 = vld [vmem:[%s1538 + $0x258] sm:$0xf]
    %v1690 = vld [vmem:[%s1538 + $0x25c] sm:$0xf]
    %v1691 = vld [vmem:[%s1538 + $0x260] sm:$0xf]
    %v1692 = vld [vmem:[%s1538 + $0x264] sm:$0xf]
    %v1693 = vld [vmem:[%s1538 + $0x268] sm:$0xf]
    %v1694 = vld [vmem:[%s1538 + $0x26c] sm:$0xf]
    %v1695 = vld [vmem:[%s1538 + $0x270] sm:$0xf]
    %v1696 = vld [vmem:[%s1538 + $0x274] sm:$0xf]
    %v1697 = vld [vmem:[%s1538 + $0x278] sm:$0xf]
    %v1698 = vld [vmem:[%s1538 + $0x27c] sm:$0xf]
    %v1699 = vld [vmem:[%s1538 + $0x280] sm:$0xf]
    %v1700 = vld [vmem:[%s1538 + $0x284] sm:$0xf]
    %v1701 = vld [vmem:[%s1538 + $0x288] sm:$0xf]
    %v1702 = vld [vmem:[%s1538 + $0x28c] sm:$0xf]
    %v1703 = vld [vmem:[%s1538 + $0x290] sm:$0xf]
    %v1704 = vld [vmem:[%s1538 + $0x294] sm:$0xf]
    %v1705 = vld [vmem:[%s1538 + $0x298] sm:$0xf]
    %v1706 = vld [vmem:[%s1538 + $0x29c] sm:$0xf]
    %v1707 = vld [vmem:[%s1538 + $0x2a0] sm:$0xf]
    %v1708 = vld [vmem:[%s1538 + $0x2a4] sm:$0xf]
    %v1709 = vld [vmem:[%s1538 + $0x2a8] sm:$0xf]
    %v1710 = vld [vmem:[%s1538 + $0x2ac] sm:$0xf]
    %v1711 = vld [vmem:[%s1538 + $0x2b0] sm:$0xf]
    %v1712 = vld [vmem:[%s1538 + $0x2b4] sm:$0xf]
    %v1713 = vld [vmem:[%s1538 + $0x2b8] sm:$0xf]
    %v1714 = vld [vmem:[%s1538 + $0x2bc] sm:$0xf]
    %v1715 = vld [vmem:[%s1538 + $0x2c0] sm:$0xf]
    %v1716 = vld [vmem:[%s1538 + $0x2c4] sm:$0xf]
    %v1717 = vld [vmem:[%s1538 + $0x2c8] sm:$0xf]
    %v1718 = vld [vmem:[%s1538 + $0x2cc] sm:$0xf]
    %v1719 = vld [vmem:[%s1538 + $0x2d0] sm:$0xf]
    %v1720 = vld [vmem:[%s1538 + $0x2d4] sm:$0xf]
    %v1721 = vld [vmem:[%s1538 + $0x2d8] sm:$0xf]
    %v1722 = vld [vmem:[%s1538 + $0x2dc] sm:$0xf]
    %v1723 = vld [vmem:[%s1538 + $0x2e0] sm:$0xf]
    %v1724 = vld [vmem:[%s1538 + $0x2e4] sm:$0xf]
    %v1725 = vld [vmem:[%s1538 + $0x2e8] sm:$0xf]
    %v1726 = vld [vmem:[%s1538 + $0x2ec] sm:$0xf]
    %v1727 = vld [vmem:[%s1538 + $0x2f0] sm:$0xf]
    %v1728 = vld [vmem:[%s1538 + $0x2f4] sm:$0xf]
    %v1729 = vld [vmem:[%s1538 + $0x2f8] sm:$0xf]
    %v1730 = vld [vmem:[%s1538 + $0x2fc] sm:$0xf]
    %v1731 = vld [vmem:[%s1538 + $0x300] sm:$0xf]
    %v1732 = vld [vmem:[%s1538 + $0x304] sm:$0xf]
    %v1733 = vld [vmem:[%s1538 + $0x308] sm:$0xf]
    %v1734 = vld [vmem:[%s1538 + $0x30c] sm:$0xf]
    %v1735 = vld [vmem:[%s1538 + $0x310] sm:$0xf]
    %v1736 = vld [vmem:[%s1538 + $0x314] sm:$0xf]
    %v1737 = vld [vmem:[%s1538 + $0x318] sm:$0xf]
    %v1738 = vld [vmem:[%s1538 + $0x31c] sm:$0xf]
    %v1739 = vld [vmem:[%s1538 + $0x320] sm:$0xf]
    %v1740 = vld [vmem:[%s1538 + $0x324] sm:$0xf]
    %v1741 = vld [vmem:[%s1538 + $0x328] sm:$0xf]
    %v1742 = vld [vmem:[%s1538 + $0x32c] sm:$0xf]
    %v1743 = vld [vmem:[%s1538 + $0x330] sm:$0xf]
    %v1744 = vld [vmem:[%s1538 + $0x334] sm:$0xf]
    %v1745 = vld [vmem:[%s1538 + $0x338] sm:$0xf]
    %v1746 = vld [vmem:[%s1538 + $0x33c] sm:$0xf]
    %v1747 = vld [vmem:[%s1538 + $0x340] sm:$0xf]
    %v1748 = vld [vmem:[%s1538 + $0x344] sm:$0xf]
    %v1749 = vld [vmem:[%s1538 + $0x348] sm:$0xf]
    %v1750 = vld [vmem:[%s1538 + $0x34c] sm:$0xf]
    %v1751 = vld [vmem:[%s1538 + $0x350] sm:$0xf]
    %v1752 = vld [vmem:[%s1538 + $0x354] sm:$0xf]
    %v1753 = vld [vmem:[%s1538 + $0x358] sm:$0xf]
    %v1754 = vld [vmem:[%s1538 + $0x35c] sm:$0xf]
    %v1755 = vld [vmem:[%s1538 + $0x360] sm:$0xf]
    %v1756 = vld [vmem:[%s1538 + $0x364] sm:$0xf]
    %v1757 = vld [vmem:[%s1538 + $0x368] sm:$0xf]
    %v1758 = vld [vmem:[%s1538 + $0x36c] sm:$0xf]
    %v1759 = vld [vmem:[%s1538 + $0x370] sm:$0xf]
    %v1760 = vld [vmem:[%s1538 + $0x374] sm:$0xf]
    %v1761 = vld [vmem:[%s1538 + $0x378] sm:$0xf]
    %v1762 = vld [vmem:[%s1538 + $0x37c] sm:$0xf]
    %v1763 = vld [vmem:[%s1538 + $0x380] sm:$0xf]
    %v1764 = vld [vmem:[%s1538 + $0x384] sm:$0xf]
    %v1765 = vld [vmem:[%s1538 + $0x388] sm:$0xf]
    %v1766 = vld [vmem:[%s1538 + $0x38c] sm:$0xf]
    %v1767 = vld [vmem:[%s1538 + $0x390] sm:$0xf]
    %v1768 = vld [vmem:[%s1538 + $0x394] sm:$0xf]
    %v1769 = vld [vmem:[%s1538 + $0x398] sm:$0xf]
    %v1770 = vld [vmem:[%s1538 + $0x39c] sm:$0xf]
    %v1771 = vld [vmem:[%s1538 + $0x3a0] sm:$0xf]
    %v1772 = vld [vmem:[%s1538 + $0x3a4] sm:$0xf]
    %v1773 = vld [vmem:[%s1538 + $0x3a8] sm:$0xf]
    %v1774 = vld [vmem:[%s1538 + $0x3ac] sm:$0xf]
    %v1775 = vld [vmem:[%s1538 + $0x3b0] sm:$0xf]
    %v1776 = vld [vmem:[%s1538 + $0x3b4] sm:$0xf]
    %v1777 = vld [vmem:[%s1538 + $0x3b8] sm:$0xf]
    %v1778 = vld [vmem:[%s1538 + $0x3bc] sm:$0xf]
    %v1779 = vld [vmem:[%s1538 + $0x3c0] sm:$0xf]
    %v1780 = vld [vmem:[%s1538 + $0x3c4] sm:$0xf]
    %v1781 = vld [vmem:[%s1538 + $0x3c8] sm:$0xf]
    %v1782 = vld [vmem:[%s1538 + $0x3cc] sm:$0xf]
    %v1783 = vld [vmem:[%s1538 + $0x3d0] sm:$0xf]
    %v1784 = vld [vmem:[%s1538 + $0x3d4] sm:$0xf]
    %v1785 = vld [vmem:[%s1538 + $0x3d8] sm:$0xf]
    %v1786 = vld [vmem:[%s1538 + $0x3dc] sm:$0xf]
    %v1787 = vld [vmem:[%s1538 + $0x3e0] sm:$0xf]
    %v1788 = vld [vmem:[%s1538 + $0x3e4] sm:$0xf]
    %v1789 = vld [vmem:[%s1538 + $0x3e8] sm:$0xf]
    %v1790 = vld [vmem:[%s1538 + $0x3ec] sm:$0xf]
    %v1791 = vld [vmem:[%s1538 + $0x3f0] sm:$0xf]
    %v1792 = vld [vmem:[%s1538 + $0x3f4] sm:$0xf]
    %v1793 = vld [vmem:[%s1538 + $0x3f8] sm:$0xf]
    %v1794 = vld [vmem:[%s1538 + $0x3fc] sm:$0xf]
    %v1795 = vunpack.c.l.bf16 %v1539
    %v1796 = vunpack.c.l.bf16 %v1540
    %v1797 = vunpack.c.l.bf16 %v1541
    %v1798 = vunpack.c.l.bf16 %v1542
    %v1799 = vunpack.c.l.bf16 %v1543
    %v1800 = vunpack.c.l.bf16 %v1544
    %v1801 = vunpack.c.l.bf16 %v1545
    %v1802 = vunpack.c.l.bf16 %v1546
    %v1803 = vunpack.c.l.bf16 %v1547
    %v1804 = vunpack.c.l.bf16 %v1548
    %v1805 = vunpack.c.l.bf16 %v1549
    %v1806 = vunpack.c.l.bf16 %v1550
    %v1807 = vunpack.c.l.bf16 %v1551
    %v1808 = vunpack.c.l.bf16 %v1552
    %v1809 = vunpack.c.l.bf16 %v1553
    %v1810 = vunpack.c.l.bf16 %v1554
    %v1811 = vunpack.c.l.bf16 %v1555
    %v1812 = vunpack.c.l.bf16 %v1556
    %v1813 = vunpack.c.l.bf16 %v1557
    %v1814 = vunpack.c.l.bf16 %v1558
    %v1815 = vunpack.c.l.bf16 %v1559
    %v1816 = vunpack.c.l.bf16 %v1560
    %v1817 = vunpack.c.l.bf16 %v1561
    %v1818 = vunpack.c.l.bf16 %v1562
    %v1819 = vunpack.c.l.bf16 %v1563
    %v1820 = vunpack.c.l.bf16 %v1564
    %v1821 = vunpack.c.l.bf16 %v1565
    %v1822 = vunpack.c.l.bf16 %v1566
    %v1823 = vunpack.c.l.bf16 %v1567
    %v1824 = vunpack.c.l.bf16 %v1568
    %v1825 = vunpack.c.l.bf16 %v1569
    %v1826 = vunpack.c.l.bf16 %v1570
    %v1827 = vunpack.c.l.bf16 %v1571
    %v1828 = vunpack.c.l.bf16 %v1572
    %v1829 = vunpack.c.l.bf16 %v1573
    %v1830 = vunpack.c.l.bf16 %v1574
    %v1831 = vunpack.c.l.bf16 %v1575
    %v1832 = vunpack.c.l.bf16 %v1576
    %v1833 = vunpack.c.l.bf16 %v1577
    %v1834 = vunpack.c.l.bf16 %v1578
    %v1835 = vunpack.c.l.bf16 %v1579
    %v1836 = vunpack.c.l.bf16 %v1580
    %v1837 = vunpack.c.l.bf16 %v1581
    %v1838 = vunpack.c.l.bf16 %v1582
    %v1839 = vunpack.c.l.bf16 %v1583
    %v1840 = vunpack.c.l.bf16 %v1584
    %v1841 = vunpack.c.l.bf16 %v1585
    %v1842 = vunpack.c.l.bf16 %v1586
    %v1843 = vunpack.c.l.bf16 %v1587
    %v1844 = vunpack.c.l.bf16 %v1588
    %v1845 = vunpack.c.l.bf16 %v1589
    %v1846 = vunpack.c.l.bf16 %v1590
    %v1847 = vunpack.c.l.bf16 %v1591
    %v1848 = vunpack.c.l.bf16 %v1592
    %v1849 = vunpack.c.l.bf16 %v1593
    %v1850 = vunpack.c.l.bf16 %v1594
    %v1851 = vunpack.c.l.bf16 %v1595
    %v1852 = vunpack.c.l.bf16 %v1596
    %v1853 = vunpack.c.l.bf16 %v1597
    %v1854 = vunpack.c.l.bf16 %v1598
    %v1855 = vunpack.c.l.bf16 %v1599
    %v1856 = vunpack.c.l.bf16 %v1600
    %v1857 = vunpack.c.l.bf16 %v1601
    %v1858 = vunpack.c.l.bf16 %v1602
    %v1859 = vunpack.c.l.bf16 %v1603
    %v1860 = vunpack.c.l.bf16 %v1604
    %v1861 = vunpack.c.l.bf16 %v1605
    %v1862 = vunpack.c.l.bf16 %v1606
    %v1863 = vunpack.c.l.bf16 %v1607
    %v1864 = vunpack.c.l.bf16 %v1608
    %v1865 = vunpack.c.l.bf16 %v1609
    %v1866 = vunpack.c.l.bf16 %v1610
    %v1867 = vunpack.c.l.bf16 %v1611
    %v1868 = vunpack.c.l.bf16 %v1612
    %v1869 = vunpack.c.l.bf16 %v1613
    %v1870 = vunpack.c.l.bf16 %v1614
    %v1871 = vunpack.c.l.bf16 %v1615
    %v1872 = vunpack.c.l.bf16 %v1616
    %v1873 = vunpack.c.l.bf16 %v1617
    %v1874 = vunpack.c.l.bf16 %v1618
    %v1875 = vunpack.c.l.bf16 %v1619
    %v1876 = vunpack.c.l.bf16 %v1620
    %v1877 = vunpack.c.l.bf16 %v1621
    %v1878 = vunpack.c.l.bf16 %v1622
    %v1879 = vunpack.c.l.bf16 %v1623
    %v1880 = vunpack.c.l.bf16 %v1624
    %v1881 = vunpack.c.l.bf16 %v1625
    %v1882 = vunpack.c.l.bf16 %v1626
    %v1883 = vunpack.c.l.bf16 %v1627
    %v1884 = vunpack.c.l.bf16 %v1628
    %v1885 = vunpack.c.l.bf16 %v1629
    %v1886 = vunpack.c.l.bf16 %v1630
    %v1887 = vunpack.c.l.bf16 %v1631
    %v1888 = vunpack.c.l.bf16 %v1632
    %v1889 = vunpack.c.l.bf16 %v1633
    %v1890 = vunpack.c.l.bf16 %v1634
    %v1891 = vunpack.c.l.bf16 %v1635
    %v1892 = vunpack.c.l.bf16 %v1636
    %v1893 = vunpack.c.l.bf16 %v1637
    %v1894 = vunpack.c.l.bf16 %v1638
    %v1895 = vunpack.c.l.bf16 %v1639
    %v1896 = vunpack.c.l.bf16 %v1640
    %v1897 = vunpack.c.l.bf16 %v1641
    %v1898 = vunpack.c.l.bf16 %v1642
    %v1899 = vunpack.c.l.bf16 %v1643
    %v1900 = vunpack.c.l.bf16 %v1644
    %v1901 = vunpack.c.l.bf16 %v1645
    %v1902 = vunpack.c.l.bf16 %v1646
    %v1903 = vunpack.c.l.bf16 %v1647
    %v1904 = vunpack.c.l.bf16 %v1648
    %v1905 = vunpack.c.l.bf16 %v1649
    %v1906 = vunpack.c.l.bf16 %v1650
    %v1907 = vunpack.c.l.bf16 %v1651
    %v1908 = vunpack.c.l.bf16 %v1652
    %v1909 = vunpack.c.l.bf16 %v1653
    %v1910 = vunpack.c.l.bf16 %v1654
    %v1911 = vunpack.c.l.bf16 %v1655
    %v1912 = vunpack.c.l.bf16 %v1656
    %v1913 = vunpack.c.l.bf16 %v1657
    %v1914 = vunpack.c.l.bf16 %v1658
    %v1915 = vunpack.c.l.bf16 %v1659
    %v1916 = vunpack.c.l.bf16 %v1660
    %v1917 = vunpack.c.l.bf16 %v1661
    %v1918 = vunpack.c.l.bf16 %v1662
    %v1919 = vunpack.c.l.bf16 %v1663
    %v1920 = vunpack.c.l.bf16 %v1664
    %v1921 = vunpack.c.l.bf16 %v1665
    %v1922 = vunpack.c.l.bf16 %v1666
    %v1923 = vunpack.c.l.bf16 %v1667
    %v1924 = vunpack.c.l.bf16 %v1668
    %v1925 = vunpack.c.l.bf16 %v1669
    %v1926 = vunpack.c.l.bf16 %v1670
    %v1927 = vunpack.c.l.bf16 %v1671
    %v1928 = vunpack.c.l.bf16 %v1672
    %v1929 = vunpack.c.l.bf16 %v1673
    %v1930 = vunpack.c.l.bf16 %v1674
    %v1931 = vunpack.c.l.bf16 %v1675
    %v1932 = vunpack.c.l.bf16 %v1676
    %v1933 = vunpack.c.l.bf16 %v1677
    %v1934 = vunpack.c.l.bf16 %v1678
    %v1935 = vunpack.c.l.bf16 %v1679
    %v1936 = vunpack.c.l.bf16 %v1680
    %v1937 = vunpack.c.l.bf16 %v1681
    %v1938 = vunpack.c.l.bf16 %v1682
    %v1939 = vunpack.c.l.bf16 %v1683
    %v1940 = vunpack.c.l.bf16 %v1684
    %v1941 = vunpack.c.l.bf16 %v1685
    %v1942 = vunpack.c.l.bf16 %v1686
    %v1943 = vunpack.c.l.bf16 %v1687
    %v1944 = vunpack.c.l.bf16 %v1688
    %v1945 = vunpack.c.l.bf16 %v1689
    %v1946 = vunpack.c.l.bf16 %v1690
    %v1947 = vunpack.c.l.bf16 %v1691
    %v1948 = vunpack.c.l.bf16 %v1692
    %v1949 = vunpack.c.l.bf16 %v1693
    %v1950 = vunpack.c.l.bf16 %v1694
    %v1951 = vunpack.c.l.bf16 %v1695
    %v1952 = vunpack.c.l.bf16 %v1696
    %v1953 = vunpack.c.l.bf16 %v1697
    %v1954 = vunpack.c.l.bf16 %v1698
    %v1955 = vunpack.c.l.bf16 %v1699
    %v1956 = vunpack.c.l.bf16 %v1700
    %v1957 = vunpack.c.l.bf16 %v1701
    %v1958 = vunpack.c.l.bf16 %v1702
    %v1959 = vunpack.c.l.bf16 %v1703
    %v1960 = vunpack.c.l.bf16 %v1704
    %v1961 = vunpack.c.l.bf16 %v1705
    %v1962 = vunpack.c.l.bf16 %v1706
    %v1963 = vunpack.c.l.bf16 %v1707
    %v1964 = vunpack.c.l.bf16 %v1708
    %v1965 = vunpack.c.l.bf16 %v1709
    %v1966 = vunpack.c.l.bf16 %v1710
    %v1967 = vunpack.c.l.bf16 %v1711
    %v1968 = vunpack.c.l.bf16 %v1712
    %v1969 = vunpack.c.l.bf16 %v1713
    %v1970 = vunpack.c.l.bf16 %v1714
    %v1971 = vunpack.c.l.bf16 %v1715
    %v1972 = vunpack.c.l.bf16 %v1716
    %v1973 = vunpack.c.l.bf16 %v1717
    %v1974 = vunpack.c.l.bf16 %v1718
    %v1975 = vunpack.c.l.bf16 %v1719
    %v1976 = vunpack.c.l.bf16 %v1720
    %v1977 = vunpack.c.l.bf16 %v1721
    %v1978 = vunpack.c.l.bf16 %v1722
    %v1979 = vunpack.c.l.bf16 %v1723
    %v1980 = vunpack.c.l.bf16 %v1724
    %v1981 = vunpack.c.l.bf16 %v1725
    %v1982 = vunpack.c.l.bf16 %v1726
    %v1983 = vunpack.c.l.bf16 %v1727
    %v1984 = vunpack.c.l.bf16 %v1728
    %v1985 = vunpack.c.l.bf16 %v1729
    %v1986 = vunpack.c.l.bf16 %v1730
    %v1987 = vunpack.c.l.bf16 %v1731
    %v1988 = vunpack.c.l.bf16 %v1732
    %v1989 = vunpack.c.l.bf16 %v1733
    %v1990 = vunpack.c.l.bf16 %v1734
    %v1991 = vunpack.c.l.bf16 %v1735
    %v1992 = vunpack.c.l.bf16 %v1736
    %v1993 = vunpack.c.l.bf16 %v1737
    %v1994 = vunpack.c.l.bf16 %v1738
    %v1995 = vunpack.c.l.bf16 %v1739
    %v1996 = vunpack.c.l.bf16 %v1740
    %v1997 = vunpack.c.l.bf16 %v1741
    %v1998 = vunpack.c.l.bf16 %v1742
    %v1999 = vunpack.c.l.bf16 %v1743
    %v2000 = vunpack.c.l.bf16 %v1744
    %v2001 = vunpack.c.l.bf16 %v1745
    %v2002 = vunpack.c.l.bf16 %v1746
    %v2003 = vunpack.c.l.bf16 %v1747
    %v2004 = vunpack.c.l.bf16 %v1748
    %v2005 = vunpack.c.l.bf16 %v1749
    %v2006 = vunpack.c.l.bf16 %v1750
    %v2007 = vunpack.c.l.bf16 %v1751
    %v2008 = vunpack.c.l.bf16 %v1752
    %v2009 = vunpack.c.l.bf16 %v1753
    %v2010 = vunpack.c.l.bf16 %v1754
    %v2011 = vunpack.c.l.bf16 %v1755
    %v2012 = vunpack.c.l.bf16 %v1756
    %v2013 = vunpack.c.l.bf16 %v1757
    %v2014 = vunpack.c.l.bf16 %v1758
    %v2015 = vunpack.c.l.bf16 %v1759
    %v2016 = vunpack.c.l.bf16 %v1760
    %v2017 = vunpack.c.l.bf16 %v1761
    %v2018 = vunpack.c.l.bf16 %v1762
    %v2019 = vunpack.c.l.bf16 %v1763
    %v2020 = vunpack.c.l.bf16 %v1764
    %v2021 = vunpack.c.l.bf16 %v1765
    %v2022 = vunpack.c.l.bf16 %v1766
    %v2023 = vunpack.c.l.bf16 %v1767
    %v2024 = vunpack.c.l.bf16 %v1768
    %v2025 = vunpack.c.l.bf16 %v1769
    %v2026 = vunpack.c.l.bf16 %v1770
    %v2027 = vunpack.c.l.bf16 %v1771
    %v2028 = vunpack.c.l.bf16 %v1772
    %v2029 = vunpack.c.l.bf16 %v1773
    %v2030 = vunpack.c.l.bf16 %v1774
    %v2031 = vunpack.c.l.bf16 %v1775
    %v2032 = vunpack.c.l.bf16 %v1776
    %v2033 = vunpack.c.l.bf16 %v1777
    %v2034 = vunpack.c.l.bf16 %v1778
    %v2035 = vunpack.c.l.bf16 %v1779
    %v2036 = vunpack.c.l.bf16 %v1780
    %v2037 = vunpack.c.l.bf16 %v1781
    %v2038 = vunpack.c.l.bf16 %v1782
    %v2039 = vunpack.c.l.bf16 %v1783
    %v2040 = vunpack.c.l.bf16 %v1784
    %v2041 = vunpack.c.l.bf16 %v1785
    %v2042 = vunpack.c.l.bf16 %v1786
    %v2043 = vunpack.c.l.bf16 %v1787
    %v2044 = vunpack.c.l.bf16 %v1788
    %v2045 = vunpack.c.l.bf16 %v1789
    %v2046 = vunpack.c.l.bf16 %v1790
    %v2047 = vunpack.c.l.bf16 %v1791
    %v2048 = vunpack.c.l.bf16 %v1792
    %v2049 = vunpack.c.l.bf16 %v1793
    %v2050 = vunpack.c.l.bf16 %v1794
    %s2051 = scalar_lea.vmem %s2, 8
    %v2052 = vld [vmem:[%s2051] sm:$0xff]
    %s2053 = scalar_lea.vmem %s4, 16
    %v2054 = vld [vmem:[%s2053] sm:$0xff]
    %v2055 = vld [vmem:[%s2053 + $0x8] sm:$0xff]
    %v2056 = vperm.slane %v2052, 0
    %v2058 = vsel %vm652, %v1431, 0
    %2060 = vmatpush.msra.mxu0 0.0
    %2061 = vmatpush.msra.mxu0 0.0
    %2062 = vmatpush.msra.mxu0 0.0
    %2063 = vmatpush.msra.mxu0 0.0
    %2064 = vmatpush.msra.mxu0 0.0
    %2065 = vmatpush.msra.mxu0 0.0
    %2066 = vmatpush.msra.mxu0 0.0
    %2067 = vmatpush.msra.mxu0 0.0
    %2068 = vmatpush.msra.mxu0 0.0
    %2069 = vmatpush.msra.mxu0 0.0
    %2070 = vmatpush.msra.mxu0 0.0
    %2071 = vmatpush.msra.mxu0 0.0
    %2072 = vmatpush.msra.mxu0 %v1440
    %2073 = vmatpush.msra.mxu0 %v1439
    %2074 = vmatpush.msra.mxu0 %v1438
    %2075 = vmatpush.msra.mxu0 %v1437
    %2076 = vmatmul.f32.gmra.mxu0 %v2058
    %v2077 = vpop.f32.mrf.mxu0
    %v2078 = vadd.f32 %v2056, %v2077
    %2079 = vdwg.mxu0
    %v2080 = vadd.f32 %v1431, %v2078
    %v2081 = vsel %vm677, %v2080, 0.0
    %2082 = vadd.xlane.f32.xlu0 %v2081
    %v2083 = vpop.xlane.xlu0 %2082
    %v2084 = vmul.f32 %v2083, %v687
    %v2085 = vsub.f32 %v2080, %v2084
    %v2086 = vmul.f32 %v2085, %v2085
    %v2087 = vsel %vm677, %v2086, 0.0
    %2088 = vadd.xlane.f32.xlu0 %v2087
    %v2089 = vpop.xlane.xlu0 %2088
    %v2090 = vmul.f32 %v2089, %v687
    %v2091 = vadd.f32 %v2090, 1e-05
    %v2092 = vrsqrt.pop %v2091
    %v2093 = vmul.f32 %v2092, %v2091
    %v2094 = vmul.f32 %v2093, %v2092
    %v2095 = vmul.f32 0.5, %v2094
    %v2096 = vsub.f32 1.5, %v2095
    %v2097 = vmul.f32 %v2092, %v2096
    %vm2098 = vweird.f32 %v2091
    %vm2099 = vweird.f32 %v2092
    %vm2100 = vmor %vm2098, %vm2099
    %v2101 = vsel %vm2100, %v2092, %v2097
    %v2102 = vmul.f32 %v2085, %v2101
    %v2103 = vperm.slane %v2052, 1
    %v2104 = vmul.f32 %v2102, %v2103
    %v2105 = vperm.slane %v2052, 2
    %v2106 = vadd.f32 %v2104, %v2105
    %v2109 = vperm.slane %v2054, 0
    %v2110 = vperm.slane %v2054, 1
    %v2111 = vperm.slane %v2054, 2
    %v2112 = vperm.slane %v2054, 3
    %v2113 = vperm.slane %v2054, 4
    %v2114 = vperm.slane %v2054, 5
    %v2115 = vperm.slane %v2054, 6
    %v2116 = vperm.slane %v2054, 7
    %v2117 = vperm.slane %v2055, 0
    %v2118 = vperm.slane %v2055, 1
    %v2119 = vperm.slane %v2055, 2
    %v2120 = vperm.slane %v2055, 3
    %v2121 = vperm.slane %v2055, 4
    %v2122 = vperm.slane %v2055, 5
    %v2123 = vperm.slane %v2055, 6
    %v2124 = vperm.slane %v2055, 7
    %v2142 = vsel %vm652, %v2106, 0
    %2144 = vmatpush.msra.mxu0 0.0
    %2145 = vmatpush.msra.mxu0 0.0
    %2146 = vmatpush.msra.mxu0 0.0
    %2147 = vmatpush.msra.mxu0 0.0
    %2148 = vmatpush.msra.mxu0 0.0
    %2149 = vmatpush.msra.mxu0 0.0
    %2150 = vmatpush.msra.mxu0 0.0
    %2151 = vmatpush.msra.mxu0 0.0
    %2152 = vmatpush.msra.mxu0 0.0
    %2153 = vmatpush.msra.mxu0 0.0
    %2154 = vmatpush.msra.mxu0 0.0
    %2155 = vmatpush.msra.mxu0 0.0
    %2156 = vmatpush.msra.mxu0 %v1522
    %2157 = vmatpush.msra.mxu0 %v1506
    %2158 = vmatpush.msra.mxu0 %v1490
    %2159 = vmatpush.msra.mxu0 %v1474
    %2160 = vmatmul.f32.gmra.mxu0 %v2142
    %v2161 = vpop.f32.mrf.mxu0
    %v2162 = vadd.f32 %v2109, %v2161
    %2163 = vdwg.mxu0
    %2164 = vmatpush.msra.mxu0 0.0
    %2165 = vmatpush.msra.mxu0 0.0
    %2166 = vmatpush.msra.mxu0 0.0
    %2167 = vmatpush.msra.mxu0 0.0
    %2168 = vmatpush.msra.mxu0 0.0
    %2169 = vmatpush.msra.mxu0 0.0
    %2170 = vmatpush.msra.mxu0 0.0
    %2171 = vmatpush.msra.mxu0 0.0
    %2172 = vmatpush.msra.mxu0 0.0
    %2173 = vmatpush.msra.mxu0 0.0
    %2174 = vmatpush.msra.mxu0 0.0
    %2175 = vmatpush.msra.mxu0 0.0
    %2176 = vmatpush.msra.mxu0 %v1523
    %2177 = vmatpush.msra.mxu0 %v1507
    %2178 = vmatpush.msra.mxu0 %v1491
    %2179 = vmatpush.msra.mxu0 %v1475
    %2180 = vmatmul.f32.gmra.mxu0 %v2142
    %v2181 = vpop.f32.mrf.mxu0
    %v2182 = vadd.f32 %v2110, %v2181
    %2183 = vdwg.mxu0
    %2184 = vmatpush.msra.mxu0 0.0
    %2185 = vmatpush.msra.mxu0 0.0
    %2186 = vmatpush.msra.mxu0 0.0
    %2187 = vmatpush.msra.mxu0 0.0
    %2188 = vmatpush.msra.mxu0 0.0
    %2189 = vmatpush.msra.mxu0 0.0
    %2190 = vmatpush.msra.mxu0 0.0
    %2191 = vmatpush.msra.mxu0 0.0
    %2192 = vmatpush.msra.mxu0 0.0
    %2193 = vmatpush.msra.mxu0 0.0
    %2194 = vmatpush.msra.mxu0 0.0
    %2195 = vmatpush.msra.mxu0 0.0
    %2196 = vmatpush.msra.mxu0 %v1524
    %2197 = vmatpush.msra.mxu0 %v1508
    %2198 = vmatpush.msra.mxu0 %v1492
    %2199 = vmatpush.msra.mxu0 %v1476
    %2200 = vmatmul.f32.gmra.mxu0 %v2142
    %v2201 = vpop.f32.mrf.mxu0
    %v2202 = vadd.f32 %v2111, %v2201
    %2203 = vdwg.mxu0
    %2204 = vmatpush.msra.mxu0 0.0
    %2205 = vmatpush.msra.mxu0 0.0
    %2206 = vmatpush.msra.mxu0 0.0
    %2207 = vmatpush.msra.mxu0 0.0
    %2208 = vmatpush.msra.mxu0 0.0
    %2209 = vmatpush.msra.mxu0 0.0
    %2210 = vmatpush.msra.mxu0 0.0
    %2211 = vmatpush.msra.mxu0 0.0
    %2212 = vmatpush.msra.mxu0 0.0
    %2213 = vmatpush.msra.mxu0 0.0
    %2214 = vmatpush.msra.mxu0 0.0
    %2215 = vmatpush.msra.mxu0 0.0
    %2216 = vmatpush.msra.mxu0 %v1525
    %2217 = vmatpush.msra.mxu0 %v1509
    %2218 = vmatpush.msra.mxu0 %v1493
    %2219 = vmatpush.msra.mxu0 %v1477
    %2220 = vmatmul.f32.gmra.mxu0 %v2142
    %v2221 = vpop.f32.mrf.mxu0
    %v2222 = vadd.f32 %v2112, %v2221
    %2223 = vdwg.mxu0
    %2224 = vmatpush.msra.mxu0 0.0
    %2225 = vmatpush.msra.mxu0 0.0
    %2226 = vmatpush.msra.mxu0 0.0
    %2227 = vmatpush.msra.mxu0 0.0
    %2228 = vmatpush.msra.mxu0 0.0
    %2229 = vmatpush.msra.mxu0 0.0
    %2230 = vmatpush.msra.mxu0 0.0
    %2231 = vmatpush.msra.mxu0 0.0
    %2232 = vmatpush.msra.mxu0 0.0
    %2233 = vmatpush.msra.mxu0 0.0
    %2234 = vmatpush.msra.mxu0 0.0
    %2235 = vmatpush.msra.mxu0 0.0
    %2236 = vmatpush.msra.mxu0 %v1526
    %2237 = vmatpush.msra.mxu0 %v1510
    %2238 = vmatpush.msra.mxu0 %v1494
    %2239 = vmatpush.msra.mxu0 %v1478
    %2240 = vmatmul.f32.gmra.mxu0 %v2142
    %v2241 = vpop.f32.mrf.mxu0
    %v2242 = vadd.f32 %v2113, %v2241
    %2243 = vdwg.mxu0
    %2244 = vmatpush.msra.mxu0 0.0
    %2245 = vmatpush.msra.mxu0 0.0
    %2246 = vmatpush.msra.mxu0 0.0
    %2247 = vmatpush.msra.mxu0 0.0
    %2248 = vmatpush.msra.mxu0 0.0
    %2249 = vmatpush.msra.mxu0 0.0
    %2250 = vmatpush.msra.mxu0 0.0
    %2251 = vmatpush.msra.mxu0 0.0
    %2252 = vmatpush.msra.mxu0 0.0
    %2253 = vmatpush.msra.mxu0 0.0
    %2254 = vmatpush.msra.mxu0 0.0
    %2255 = vmatpush.msra.mxu0 0.0
    %2256 = vmatpush.msra.mxu0 %v1527
    %2257 = vmatpush.msra.mxu0 %v1511
    %2258 = vmatpush.msra.mxu0 %v1495
    %2259 = vmatpush.msra.mxu0 %v1479
    %2260 = vmatmul.f32.gmra.mxu0 %v2142
    %v2261 = vpop.f32.mrf.mxu0
    %v2262 = vadd.f32 %v2114, %v2261
    %2263 = vdwg.mxu0
    %2264 = vmatpush.msra.mxu0 0.0
    %2265 = vmatpush.msra.mxu0 0.0
    %2266 = vmatpush.msra.mxu0 0.0
    %2267 = vmatpush.msra.mxu0 0.0
    %2268 = vmatpush.msra.mxu0 0.0
    %2269 = vmatpush.msra.mxu0 0.0
    %2270 = vmatpush.msra.mxu0 0.0
    %2271 = vmatpush.msra.mxu0 0.0
    %2272 = vmatpush.msra.mxu0 0.0
    %2273 = vmatpush.msra.mxu0 0.0
    %2274 = vmatpush.msra.mxu0 0.0
    %2275 = vmatpush.msra.mxu0 0.0
    %2276 = vmatpush.msra.mxu0 %v1528
    %2277 = vmatpush.msra.mxu0 %v1512
    %2278 = vmatpush.msra.mxu0 %v1496
    %2279 = vmatpush.msra.mxu0 %v1480
    %2280 = vmatmul.f32.gmra.mxu0 %v2142
    %v2281 = vpop.f32.mrf.mxu0
    %v2282 = vadd.f32 %v2115, %v2281
    %2283 = vdwg.mxu0
    %2284 = vmatpush.msra.mxu0 0.0
    %2285 = vmatpush.msra.mxu0 0.0
    %2286 = vmatpush.msra.mxu0 0.0
    %2287 = vmatpush.msra.mxu0 0.0
    %2288 = vmatpush.msra.mxu0 0.0
    %2289 = vmatpush.msra.mxu0 0.0
    %2290 = vmatpush.msra.mxu0 0.0
    %2291 = vmatpush.msra.mxu0 0.0
    %2292 = vmatpush.msra.mxu0 0.0
    %2293 = vmatpush.msra.mxu0 0.0
    %2294 = vmatpush.msra.mxu0 0.0
    %2295 = vmatpush.msra.mxu0 0.0
    %2296 = vmatpush.msra.mxu0 %v1529
    %2297 = vmatpush.msra.mxu0 %v1513
    %2298 = vmatpush.msra.mxu0 %v1497
    %2299 = vmatpush.msra.mxu0 %v1481
    %2300 = vmatmul.f32.gmra.mxu0 %v2142
    %v2301 = vpop.f32.mrf.mxu0
    %v2302 = vadd.f32 %v2116, %v2301
    %2303 = vdwg.mxu0
    %2304 = vmatpush.msra.mxu0 0.0
    %2305 = vmatpush.msra.mxu0 0.0
    %2306 = vmatpush.msra.mxu0 0.0
    %2307 = vmatpush.msra.mxu0 0.0
    %2308 = vmatpush.msra.mxu0 0.0
    %2309 = vmatpush.msra.mxu0 0.0
    %2310 = vmatpush.msra.mxu0 0.0
    %2311 = vmatpush.msra.mxu0 0.0
    %2312 = vmatpush.msra.mxu0 0.0
    %2313 = vmatpush.msra.mxu0 0.0
    %2314 = vmatpush.msra.mxu0 0.0
    %2315 = vmatpush.msra.mxu0 0.0
    %2316 = vmatpush.msra.mxu0 %v1530
    %2317 = vmatpush.msra.mxu0 %v1514
    %2318 = vmatpush.msra.mxu0 %v1498
    %2319 = vmatpush.msra.mxu0 %v1482
    %2320 = vmatmul.f32.gmra.mxu0 %v2142
    %v2321 = vpop.f32.mrf.mxu0
    %v2322 = vadd.f32 %v2117, %v2321
    %2323 = vdwg.mxu0
    %2324 = vmatpush.msra.mxu0 0.0
    %2325 = vmatpush.msra.mxu0 0.0
    %2326 = vmatpush.msra.mxu0 0.0
    %2327 = vmatpush.msra.mxu0 0.0
    %2328 = vmatpush.msra.mxu0 0.0
    %2329 = vmatpush.msra.mxu0 0.0
    %2330 = vmatpush.msra.mxu0 0.0
    %2331 = vmatpush.msra.mxu0 0.0
    %2332 = vmatpush.msra.mxu0 0.0
    %2333 = vmatpush.msra.mxu0 0.0
    %2334 = vmatpush.msra.mxu0 0.0
    %2335 = vmatpush.msra.mxu0 0.0
    %2336 = vmatpush.msra.mxu0 %v1531
    %2337 = vmatpush.msra.mxu0 %v1515
    %2338 = vmatpush.msra.mxu0 %v1499
    %2339 = vmatpush.msra.mxu0 %v1483
    %2340 = vmatmul.f32.gmra.mxu0 %v2142
    %v2341 = vpop.f32.mrf.mxu0
    %v2342 = vadd.f32 %v2118, %v2341
    %2343 = vdwg.mxu0
    %2344 = vmatpush.msra.mxu0 0.0
    %2345 = vmatpush.msra.mxu0 0.0
    %2346 = vmatpush.msra.mxu0 0.0
    %2347 = vmatpush.msra.mxu0 0.0
    %2348 = vmatpush.msra.mxu0 0.0
    %2349 = vmatpush.msra.mxu0 0.0
    %2350 = vmatpush.msra.mxu0 0.0
    %2351 = vmatpush.msra.mxu0 0.0
    %2352 = vmatpush.msra.mxu0 0.0
    %2353 = vmatpush.msra.mxu0 0.0
    %2354 = vmatpush.msra.mxu0 0.0
    %2355 = vmatpush.msra.mxu0 0.0
    %2356 = vmatpush.msra.mxu0 %v1532
    %2357 = vmatpush.msra.mxu0 %v1516
    %2358 = vmatpush.msra.mxu0 %v1500
    %2359 = vmatpush.msra.mxu0 %v1484
    %2360 = vmatmul.f32.gmra.mxu0 %v2142
    %v2361 = vpop.f32.mrf.mxu0
    %v2362 = vadd.f32 %v2119, %v2361
    %2363 = vdwg.mxu0
    %2364 = vmatpush.msra.mxu0 0.0
    %2365 = vmatpush.msra.mxu0 0.0
    %2366 = vmatpush.msra.mxu0 0.0
    %2367 = vmatpush.msra.mxu0 0.0
    %2368 = vmatpush.msra.mxu0 0.0
    %2369 = vmatpush.msra.mxu0 0.0
    %2370 = vmatpush.msra.mxu0 0.0
    %2371 = vmatpush.msra.mxu0 0.0
    %2372 = vmatpush.msra.mxu0 0.0
    %2373 = vmatpush.msra.mxu0 0.0
    %2374 = vmatpush.msra.mxu0 0.0
    %2375 = vmatpush.msra.mxu0 0.0
    %2376 = vmatpush.msra.mxu0 %v1533
    %2377 = vmatpush.msra.mxu0 %v1517
    %2378 = vmatpush.msra.mxu0 %v1501
    %2379 = vmatpush.msra.mxu0 %v1485
    %2380 = vmatmul.f32.gmra.mxu0 %v2142
    %v2381 = vpop.f32.mrf.mxu0
    %v2382 = vadd.f32 %v2120, %v2381
    %2383 = vdwg.mxu0
    %2384 = vmatpush.msra.mxu0 0.0
    %2385 = vmatpush.msra.mxu0 0.0
    %2386 = vmatpush.msra.mxu0 0.0
    %2387 = vmatpush.msra.mxu0 0.0
    %2388 = vmatpush.msra.mxu0 0.0
    %2389 = vmatpush.msra.mxu0 0.0
    %2390 = vmatpush.msra.mxu0 0.0
    %2391 = vmatpush.msra.mxu0 0.0
    %2392 = vmatpush.msra.mxu0 0.0
    %2393 = vmatpush.msra.mxu0 0.0
    %2394 = vmatpush.msra.mxu0 0.0
    %2395 = vmatpush.msra.mxu0 0.0
    %2396 = vmatpush.msra.mxu0 %v1534
    %2397 = vmatpush.msra.mxu0 %v1518
    %2398 = vmatpush.msra.mxu0 %v1502
    %2399 = vmatpush.msra.mxu0 %v1486
    %2400 = vmatmul.f32.gmra.mxu0 %v2142
    %v2401 = vpop.f32.mrf.mxu0
    %v2402 = vadd.f32 %v2121, %v2401
    %2403 = vdwg.mxu0
    %2404 = vmatpush.msra.mxu0 0.0
    %2405 = vmatpush.msra.mxu0 0.0
    %2406 = vmatpush.msra.mxu0 0.0
    %2407 = vmatpush.msra.mxu0 0.0
    %2408 = vmatpush.msra.mxu0 0.0
    %2409 = vmatpush.msra.mxu0 0.0
    %2410 = vmatpush.msra.mxu0 0.0
    %2411 = vmatpush.msra.mxu0 0.0
    %2412 = vmatpush.msra.mxu0 0.0
    %2413 = vmatpush.msra.mxu0 0.0
    %2414 = vmatpush.msra.mxu0 0.0
    %2415 = vmatpush.msra.mxu0 0.0
    %2416 = vmatpush.msra.mxu0 %v1535
    %2417 = vmatpush.msra.mxu0 %v1519
    %2418 = vmatpush.msra.mxu0 %v1503
    %2419 = vmatpush.msra.mxu0 %v1487
    %2420 = vmatmul.f32.gmra.mxu0 %v2142
    %v2421 = vpop.f32.mrf.mxu0
    %v2422 = vadd.f32 %v2122, %v2421
    %2423 = vdwg.mxu0
    %2424 = vmatpush.msra.mxu0 0.0
    %2425 = vmatpush.msra.mxu0 0.0
    %2426 = vmatpush.msra.mxu0 0.0
    %2427 = vmatpush.msra.mxu0 0.0
    %2428 = vmatpush.msra.mxu0 0.0
    %2429 = vmatpush.msra.mxu0 0.0
    %2430 = vmatpush.msra.mxu0 0.0
    %2431 = vmatpush.msra.mxu0 0.0
    %2432 = vmatpush.msra.mxu0 0.0
    %2433 = vmatpush.msra.mxu0 0.0
    %2434 = vmatpush.msra.mxu0 0.0
    %2435 = vmatpush.msra.mxu0 0.0
    %2436 = vmatpush.msra.mxu0 %v1536
    %2437 = vmatpush.msra.mxu0 %v1520
    %2438 = vmatpush.msra.mxu0 %v1504
    %2439 = vmatpush.msra.mxu0 %v1488
    %2440 = vmatmul.f32.gmra.mxu0 %v2142
    %v2441 = vpop.f32.mrf.mxu0
    %v2442 = vadd.f32 %v2123, %v2441
    %2443 = vdwg.mxu0
    %2444 = vmatpush.msra.mxu0 0.0
    %2445 = vmatpush.msra.mxu0 0.0
    %2446 = vmatpush.msra.mxu0 0.0
    %2447 = vmatpush.msra.mxu0 0.0
    %2448 = vmatpush.msra.mxu0 0.0
    %2449 = vmatpush.msra.mxu0 0.0
    %2450 = vmatpush.msra.mxu0 0.0
    %2451 = vmatpush.msra.mxu0 0.0
    %2452 = vmatpush.msra.mxu0 0.0
    %2453 = vmatpush.msra.mxu0 0.0
    %2454 = vmatpush.msra.mxu0 0.0
    %2455 = vmatpush.msra.mxu0 0.0
    %2456 = vmatpush.msra.mxu0 %v1537
    %2457 = vmatpush.msra.mxu0 %v1521
    %2458 = vmatpush.msra.mxu0 %v1505
    %2459 = vmatpush.msra.mxu0 %v1489
    %2460 = vmatmul.f32.gmra.mxu0 %v2142
    %v2461 = vpop.f32.mrf.mxu0
    %v2462 = vadd.f32 %v2124, %v2461
    %2463 = vdwg.mxu0
    %v2464 = vmax.f32 %v2162, 0.0
    %v2465 = vmax.f32 %v2182, 0.0
    %v2466 = vmax.f32 %v2202, 0.0
    %v2467 = vmax.f32 %v2222, 0.0
    %v2468 = vmax.f32 %v2242, 0.0
    %v2469 = vmax.f32 %v2262, 0.0
    %v2470 = vmax.f32 %v2282, 0.0
    %v2471 = vmax.f32 %v2302, 0.0
    %v2472 = vmax.f32 %v2322, 0.0
    %v2473 = vmax.f32 %v2342, 0.0
    %v2474 = vmax.f32 %v2362, 0.0
    %v2475 = vmax.f32 %v2382, 0.0
    %v2476 = vmax.f32 %v2402, 0.0
    %v2477 = vmax.f32 %v2422, 0.0
    %v2478 = vmax.f32 %v2442, 0.0
    %v2479 = vmax.f32 %v2462, 0.0
    %v2480 = vperm.slane %v2052, 3
    %2481 = vmatpush.msra.mxu0 %v1810
    %2482 = vmatpush.msra.mxu0 %v1809
    %2483 = vmatpush.msra.mxu0 %v1808
    %2484 = vmatpush.msra.mxu0 %v1807
    %2485 = vmatpush.msra.mxu0 %v1806
    %2486 = vmatpush.msra.mxu0 %v1805
    %2487 = vmatpush.msra.mxu0 %v1804
    %2488 = vmatpush.msra.mxu0 %v1803
    %2489 = vmatpush.msra.mxu0 %v1802
    %2490 = vmatpush.msra.mxu0 %v1801
    %2491 = vmatpush.msra.mxu0 %v1800
    %2492 = vmatpush.msra.mxu0 %v1799
    %2493 = vmatpush.msra.mxu0 %v1798
    %2494 = vmatpush.msra.mxu0 %v1797
    %2495 = vmatpush.msra.mxu0 %v1796
    %2496 = vmatpush.msra.mxu0 %v1795
    %2497 = vmatmul.f32.gmra.mxu0 %v2464
    %v2498 = vpop.f32.mrf.mxu0
    %v2499 = vadd.f32 %v2480, %v2498
    %2500 = vdwg.mxu0
    %2501 = vmatpush.msra.mxu0 %v1826
    %2502 = vmatpush.msra.mxu0 %v1825
    %2503 = vmatpush.msra.mxu0 %v1824
    %2504 = vmatpush.msra.mxu0 %v1823
    %2505 = vmatpush.msra.mxu0 %v1822
    %2506 = vmatpush.msra.mxu0 %v1821
    %2507 = vmatpush.msra.mxu0 %v1820
    %2508 = vmatpush.msra.mxu0 %v1819
    %2509 = vmatpush.msra.mxu0 %v1818
    %2510 = vmatpush.msra.mxu0 %v1817
    %2511 = vmatpush.msra.mxu0 %v1816
    %2512 = vmatpush.msra.mxu0 %v1815
    %2513 = vmatpush.msra.mxu0 %v1814
    %2514 = vmatpush.msra.mxu0 %v1813
    %2515 = vmatpush.msra.mxu0 %v1812
    %2516 = vmatpush.msra.mxu0 %v1811
    %2517 = vmatmul.f32.gmra.mxu0 %v2465
    %v2518 = vpop.f32.mrf.mxu0
    %v2519 = vadd.f32 %v2499, %v2518
    %2520 = vdwg.mxu0
    %2521 = vmatpush.msra.mxu0 %v1842
    %2522 = vmatpush.msra.mxu0 %v1841
    %2523 = vmatpush.msra.mxu0 %v1840
    %2524 = vmatpush.msra.mxu0 %v1839
    %2525 = vmatpush.msra.mxu0 %v1838
    %2526 = vmatpush.msra.mxu0 %v1837
    %2527 = vmatpush.msra.mxu0 %v1836
    %2528 = vmatpush.msra.mxu0 %v1835
    %2529 = vmatpush.msra.mxu0 %v1834
    %2530 = vmatpush.msra.mxu0 %v1833
    %2531 = vmatpush.msra.mxu0 %v1832
    %2532 = vmatpush.msra.mxu0 %v1831
    %2533 = vmatpush.msra.mxu0 %v1830
    %2534 = vmatpush.msra.mxu0 %v1829
    %2535 = vmatpush.msra.mxu0 %v1828
    %2536 = vmatpush.msra.mxu0 %v1827
    %2537 = vmatmul.f32.gmra.mxu0 %v2466
    %v2538 = vpop.f32.mrf.mxu0
    %v2539 = vadd.f32 %v2519, %v2538
    %2540 = vdwg.mxu0
    %2541 = vmatpush.msra.mxu0 %v1858
    %2542 = vmatpush.msra.mxu0 %v1857
    %2543 = vmatpush.msra.mxu0 %v1856
    %2544 = vmatpush.msra.mxu0 %v1855
    %2545 = vmatpush.msra.mxu0 %v1854
    %2546 = vmatpush.msra.mxu0 %v1853
    %2547 = vmatpush.msra.mxu0 %v1852
    %2548 = vmatpush.msra.mxu0 %v1851
    %2549 = vmatpush.msra.mxu0 %v1850
    %2550 = vmatpush.msra.mxu0 %v1849
    %2551 = vmatpush.msra.mxu0 %v1848
    %2552 = vmatpush.msra.mxu0 %v1847
    %2553 = vmatpush.msra.mxu0 %v1846
    %2554 = vmatpush.msra.mxu0 %v1845
    %2555 = vmatpush.msra.mxu0 %v1844
    %2556 = vmatpush.msra.mxu0 %v1843
    %2557 = vmatmul.f32.gmra.mxu0 %v2467
    %v2558 = vpop.f32.mrf.mxu0
    %v2559 = vadd.f32 %v2539, %v2558
    %2560 = vdwg.mxu0
    %2561 = vmatpush.msra.mxu0 %v1874
    %2562 = vmatpush.msra.mxu0 %v1873
    %2563 = vmatpush.msra.mxu0 %v1872
    %2564 = vmatpush.msra.mxu0 %v1871
    %2565 = vmatpush.msra.mxu0 %v1870
    %2566 = vmatpush.msra.mxu0 %v1869
    %2567 = vmatpush.msra.mxu0 %v1868
    %2568 = vmatpush.msra.mxu0 %v1867
    %2569 = vmatpush.msra.mxu0 %v1866
    %2570 = vmatpush.msra.mxu0 %v1865
    %2571 = vmatpush.msra.mxu0 %v1864
    %2572 = vmatpush.msra.mxu0 %v1863
    %2573 = vmatpush.msra.mxu0 %v1862
    %2574 = vmatpush.msra.mxu0 %v1861
    %2575 = vmatpush.msra.mxu0 %v1860
    %2576 = vmatpush.msra.mxu0 %v1859
    %2577 = vmatmul.f32.gmra.mxu0 %v2468
    %v2578 = vpop.f32.mrf.mxu0
    %v2579 = vadd.f32 %v2559, %v2578
    %2580 = vdwg.mxu0
    %2581 = vmatpush.msra.mxu0 %v1890
    %2582 = vmatpush.msra.mxu0 %v1889
    %2583 = vmatpush.msra.mxu0 %v1888
    %2584 = vmatpush.msra.mxu0 %v1887
    %2585 = vmatpush.msra.mxu0 %v1886
    %2586 = vmatpush.msra.mxu0 %v1885
    %2587 = vmatpush.msra.mxu0 %v1884
    %2588 = vmatpush.msra.mxu0 %v1883
    %2589 = vmatpush.msra.mxu0 %v1882
    %2590 = vmatpush.msra.mxu0 %v1881
    %2591 = vmatpush.msra.mxu0 %v1880
    %2592 = vmatpush.msra.mxu0 %v1879
    %2593 = vmatpush.msra.mxu0 %v1878
    %2594 = vmatpush.msra.mxu0 %v1877
    %2595 = vmatpush.msra.mxu0 %v1876
    %2596 = vmatpush.msra.mxu0 %v1875
    %2597 = vmatmul.f32.gmra.mxu0 %v2469
    %v2598 = vpop.f32.mrf.mxu0
    %v2599 = vadd.f32 %v2579, %v2598
    %2600 = vdwg.mxu0
    %2601 = vmatpush.msra.mxu0 %v1906
    %2602 = vmatpush.msra.mxu0 %v1905
    %2603 = vmatpush.msra.mxu0 %v1904
    %2604 = vmatpush.msra.mxu0 %v1903
    %2605 = vmatpush.msra.mxu0 %v1902
    %2606 = vmatpush.msra.mxu0 %v1901
    %2607 = vmatpush.msra.mxu0 %v1900
    %2608 = vmatpush.msra.mxu0 %v1899
    %2609 = vmatpush.msra.mxu0 %v1898
    %2610 = vmatpush.msra.mxu0 %v1897
    %2611 = vmatpush.msra.mxu0 %v1896
    %2612 = vmatpush.msra.mxu0 %v1895
    %2613 = vmatpush.msra.mxu0 %v1894
    %2614 = vmatpush.msra.mxu0 %v1893
    %2615 = vmatpush.msra.mxu0 %v1892
    %2616 = vmatpush.msra.mxu0 %v1891
    %2617 = vmatmul.f32.gmra.mxu0 %v2470
    %v2618 = vpop.f32.mrf.mxu0
    %v2619 = vadd.f32 %v2599, %v2618
    %2620 = vdwg.mxu0
    %2621 = vmatpush.msra.mxu0 %v1922
    %2622 = vmatpush.msra.mxu0 %v1921
    %2623 = vmatpush.msra.mxu0 %v1920
    %2624 = vmatpush.msra.mxu0 %v1919
    %2625 = vmatpush.msra.mxu0 %v1918
    %2626 = vmatpush.msra.mxu0 %v1917
    %2627 = vmatpush.msra.mxu0 %v1916
    %2628 = vmatpush.msra.mxu0 %v1915
    %2629 = vmatpush.msra.mxu0 %v1914
    %2630 = vmatpush.msra.mxu0 %v1913
    %2631 = vmatpush.msra.mxu0 %v1912
    %2632 = vmatpush.msra.mxu0 %v1911
    %2633 = vmatpush.msra.mxu0 %v1910
    %2634 = vmatpush.msra.mxu0 %v1909
    %2635 = vmatpush.msra.mxu0 %v1908
    %2636 = vmatpush.msra.mxu0 %v1907
    %2637 = vmatmul.f32.gmra.mxu0 %v2471
    %v2638 = vpop.f32.mrf.mxu0
    %v2639 = vadd.f32 %v2619, %v2638
    %2640 = vdwg.mxu0
    %2641 = vmatpush.msra.mxu0 %v1938
    %2642 = vmatpush.msra.mxu0 %v1937
    %2643 = vmatpush.msra.mxu0 %v1936
    %2644 = vmatpush.msra.mxu0 %v1935
    %2645 = vmatpush.msra.mxu0 %v1934
    %2646 = vmatpush.msra.mxu0 %v1933
    %2647 = vmatpush.msra.mxu0 %v1932
    %2648 = vmatpush.msra.mxu0 %v1931
    %2649 = vmatpush.msra.mxu0 %v1930
    %2650 = vmatpush.msra.mxu0 %v1929
    %2651 = vmatpush.msra.mxu0 %v1928
    %2652 = vmatpush.msra.mxu0 %v1927
    %2653 = vmatpush.msra.mxu0 %v1926
    %2654 = vmatpush.msra.mxu0 %v1925
    %2655 = vmatpush.msra.mxu0 %v1924
    %2656 = vmatpush.msra.mxu0 %v1923
    %2657 = vmatmul.f32.gmra.mxu0 %v2472
    %v2658 = vpop.f32.mrf.mxu0
    %v2659 = vadd.f32 %v2639, %v2658
    %2660 = vdwg.mxu0
    %2661 = vmatpush.msra.mxu0 %v1954
    %2662 = vmatpush.msra.mxu0 %v1953
    %2663 = vmatpush.msra.mxu0 %v1952
    %2664 = vmatpush.msra.mxu0 %v1951
    %2665 = vmatpush.msra.mxu0 %v1950
    %2666 = vmatpush.msra.mxu0 %v1949
    %2667 = vmatpush.msra.mxu0 %v1948
    %2668 = vmatpush.msra.mxu0 %v1947
    %2669 = vmatpush.msra.mxu0 %v1946
    %2670 = vmatpush.msra.mxu0 %v1945
    %2671 = vmatpush.msra.mxu0 %v1944
    %2672 = vmatpush.msra.mxu0 %v1943
    %2673 = vmatpush.msra.mxu0 %v1942
    %2674 = vmatpush.msra.mxu0 %v1941
    %2675 = vmatpush.msra.mxu0 %v1940
    %2676 = vmatpush.msra.mxu0 %v1939
    %2677 = vmatmul.f32.gmra.mxu0 %v2473
    %v2678 = vpop.f32.mrf.mxu0
    %v2679 = vadd.f32 %v2659, %v2678
    %2680 = vdwg.mxu0
    %2681 = vmatpush.msra.mxu0 %v1970
    %2682 = vmatpush.msra.mxu0 %v1969
    %2683 = vmatpush.msra.mxu0 %v1968
    %2684 = vmatpush.msra.mxu0 %v1967
    %2685 = vmatpush.msra.mxu0 %v1966
    %2686 = vmatpush.msra.mxu0 %v1965
    %2687 = vmatpush.msra.mxu0 %v1964
    %2688 = vmatpush.msra.mxu0 %v1963
    %2689 = vmatpush.msra.mxu0 %v1962
    %2690 = vmatpush.msra.mxu0 %v1961
    %2691 = vmatpush.msra.mxu0 %v1960
    %2692 = vmatpush.msra.mxu0 %v1959
    %2693 = vmatpush.msra.mxu0 %v1958
    %2694 = vmatpush.msra.mxu0 %v1957
    %2695 = vmatpush.msra.mxu0 %v1956
    %2696 = vmatpush.msra.mxu0 %v1955
    %2697 = vmatmul.f32.gmra.mxu0 %v2474
    %v2698 = vpop.f32.mrf.mxu0
    %v2699 = vadd.f32 %v2679, %v2698
    %2700 = vdwg.mxu0
    %2701 = vmatpush.msra.mxu0 %v1986
    %2702 = vmatpush.msra.mxu0 %v1985
    %2703 = vmatpush.msra.mxu0 %v1984
    %2704 = vmatpush.msra.mxu0 %v1983
    %2705 = vmatpush.msra.mxu0 %v1982
    %2706 = vmatpush.msra.mxu0 %v1981
    %2707 = vmatpush.msra.mxu0 %v1980
    %2708 = vmatpush.msra.mxu0 %v1979
    %2709 = vmatpush.msra.mxu0 %v1978
    %2710 = vmatpush.msra.mxu0 %v1977
    %2711 = vmatpush.msra.mxu0 %v1976
    %2712 = vmatpush.msra.mxu0 %v1975
    %2713 = vmatpush.msra.mxu0 %v1974
    %2714 = vmatpush.msra.mxu0 %v1973
    %2715 = vmatpush.msra.mxu0 %v1972
    %2716 = vmatpush.msra.mxu0 %v1971
    %2717 = vmatmul.f32.gmra.mxu0 %v2475
    %v2718 = vpop.f32.mrf.mxu0
    %v2719 = vadd.f32 %v2699, %v2718
    %2720 = vdwg.mxu0
    %2721 = vmatpush.msra.mxu0 %v2002
    %2722 = vmatpush.msra.mxu0 %v2001
    %2723 = vmatpush.msra.mxu0 %v2000
    %2724 = vmatpush.msra.mxu0 %v1999
    %2725 = vmatpush.msra.mxu0 %v1998
    %2726 = vmatpush.msra.mxu0 %v1997
    %2727 = vmatpush.msra.mxu0 %v1996
    %2728 = vmatpush.msra.mxu0 %v1995
    %2729 = vmatpush.msra.mxu0 %v1994
    %2730 = vmatpush.msra.mxu0 %v1993
    %2731 = vmatpush.msra.mxu0 %v1992
    %2732 = vmatpush.msra.mxu0 %v1991
    %2733 = vmatpush.msra.mxu0 %v1990
    %2734 = vmatpush.msra.mxu0 %v1989
    %2735 = vmatpush.msra.mxu0 %v1988
    %2736 = vmatpush.msra.mxu0 %v1987
    %2737 = vmatmul.f32.gmra.mxu0 %v2476
    %v2738 = vpop.f32.mrf.mxu0
    %v2739 = vadd.f32 %v2719, %v2738
    %2740 = vdwg.mxu0
    %2741 = vmatpush.msra.mxu0 %v2018
    %2742 = vmatpush.msra.mxu0 %v2017
    %2743 = vmatpush.msra.mxu0 %v2016
    %2744 = vmatpush.msra.mxu0 %v2015
    %2745 = vmatpush.msra.mxu0 %v2014
    %2746 = vmatpush.msra.mxu0 %v2013
    %2747 = vmatpush.msra.mxu0 %v2012
    %2748 = vmatpush.msra.mxu0 %v2011
    %2749 = vmatpush.msra.mxu0 %v2010
    %2750 = vmatpush.msra.mxu0 %v2009
    %2751 = vmatpush.msra.mxu0 %v2008
    %2752 = vmatpush.msra.mxu0 %v2007
    %2753 = vmatpush.msra.mxu0 %v2006
    %2754 = vmatpush.msra.mxu0 %v2005
    %2755 = vmatpush.msra.mxu0 %v2004
    %2756 = vmatpush.msra.mxu0 %v2003
    %2757 = vmatmul.f32.gmra.mxu0 %v2477
    %v2758 = vpop.f32.mrf.mxu0
    %v2759 = vadd.f32 %v2739, %v2758
    %2760 = vdwg.mxu0
    %2761 = vmatpush.msra.mxu0 %v2034
    %2762 = vmatpush.msra.mxu0 %v2033
    %2763 = vmatpush.msra.mxu0 %v2032
    %2764 = vmatpush.msra.mxu0 %v2031
    %2765 = vmatpush.msra.mxu0 %v2030
    %2766 = vmatpush.msra.mxu0 %v2029
    %2767 = vmatpush.msra.mxu0 %v2028
    %2768 = vmatpush.msra.mxu0 %v2027
    %2769 = vmatpush.msra.mxu0 %v2026
    %2770 = vmatpush.msra.mxu0 %v2025
    %2771 = vmatpush.msra.mxu0 %v2024
    %2772 = vmatpush.msra.mxu0 %v2023
    %2773 = vmatpush.msra.mxu0 %v2022
    %2774 = vmatpush.msra.mxu0 %v2021
    %2775 = vmatpush.msra.mxu0 %v2020
    %2776 = vmatpush.msra.mxu0 %v2019
    %2777 = vmatmul.f32.gmra.mxu0 %v2478
    %v2778 = vpop.f32.mrf.mxu0
    %v2779 = vadd.f32 %v2759, %v2778
    %2780 = vdwg.mxu0
    %2781 = vmatpush.msra.mxu0 %v2050
    %2782 = vmatpush.msra.mxu0 %v2049
    %2783 = vmatpush.msra.mxu0 %v2048
    %2784 = vmatpush.msra.mxu0 %v2047
    %2785 = vmatpush.msra.mxu0 %v2046
    %2786 = vmatpush.msra.mxu0 %v2045
    %2787 = vmatpush.msra.mxu0 %v2044
    %2788 = vmatpush.msra.mxu0 %v2043
    %2789 = vmatpush.msra.mxu0 %v2042
    %2790 = vmatpush.msra.mxu0 %v2041
    %2791 = vmatpush.msra.mxu0 %v2040
    %2792 = vmatpush.msra.mxu0 %v2039
    %2793 = vmatpush.msra.mxu0 %v2038
    %2794 = vmatpush.msra.mxu0 %v2037
    %2795 = vmatpush.msra.mxu0 %v2036
    %2796 = vmatpush.msra.mxu0 %v2035
    %2797 = vmatmul.f32.gmra.mxu0 %v2479
    %v2798 = vpop.f32.mrf.mxu0
    %v2799 = vadd.f32 %v2779, %v2798
    %2800 = vdwg.mxu0
    %v2801 = vadd.f32 %v2106, %v2799
    %v2802 = vsel %vm677, %v2801, 0.0
    %2803 = vadd.xlane.f32.xlu0 %v2802
    %v2804 = vpop.xlane.xlu0 %2803
    %v2805 = vmul.f32 %v2804, %v687
    %v2806 = vsub.f32 %v2801, %v2805
    %v2807 = vmul.f32 %v2806, %v2806
    %v2808 = vsel %vm677, %v2807, 0.0
    %2809 = vadd.xlane.f32.xlu0 %v2808
    %v2810 = vpop.xlane.xlu0 %2809
    %v2811 = vmul.f32 %v2810, %v687
    %v2812 = vadd.f32 %v2811, 1e-05
    %v2813 = vrsqrt.pop %v2812
    %v2814 = vmul.f32 %v2813, %v2812
    %v2815 = vmul.f32 %v2814, %v2813
    %v2816 = vmul.f32 0.5, %v2815
    %v2817 = vsub.f32 1.5, %v2816
    %v2818 = vmul.f32 %v2813, %v2817
    %vm2819 = vweird.f32 %v2812
    %vm2820 = vweird.f32 %v2813
    %vm2821 = vmor %vm2819, %vm2820
    %v2822 = vsel %vm2821, %v2813, %v2818
    %v2823 = vmul.f32 %v2806, %v2822
    %v2824 = vperm.slane %v2052, 4
    %v2825 = vmul.f32 %v2823, %v2824
    %v2826 = vperm.slane %v2052, 5
    %v2827 = vadd.f32 %v2825, %v2826
    %2828 = vst.msk [vmem:[#allocation2] sm:$0x3] %vm677, %v2827
    // Predicated region
    $region30: #{tpu_custom_call.1} parent=1 // pred_check
      %p2829 = pneg %p24
    $region31: #{tpu_custom_call.1} parent=1 // pred_check_branch
      %2831 = sbr.rel (%p2829) target = $region33
    $region32: #{tpu_custom_call.1} parent=1 // pred_region
      %2832 = vst.msk [vmem:[#allocation3] sm:$0x3] %vm677, %v2827
    $region33: #{tpu_custom_call.1} parent=1 // pred_fallthru
      _
    // Predicated region
    $region34: #{tpu_custom_call.1} parent=1 // pred_check
      _
    $region35: #{tpu_custom_call.1} parent=1 // pred_check_branch
      %2834 = sbr.rel (0) target = $region37
    $region36: #{tpu_custom_call.1} parent=1 // pred_region
      %2836 = vsyncadd [#allocation4], 0
      %s2838 = sshll.u32 [#allocation3], 4
      %s2839 = int_to_ptr.vmem [resolvable:$true] %s2838
      %s2840 = sshll.u32 %s6, 4
      %s2841 = int_to_ptr.hbm [resolvable:$true] %s2840
      %2843 = dma.vmem_to_hbm [thread:$0]  %s2839, 32, %s2841, [#allocation4]
    $region37: #{tpu_custom_call.1} parent=1 // pred_fallthru
      _
    // Predicated region
    $region38: #{tpu_custom_call.1} parent=1 // pred_check
      _
    $region39: #{tpu_custom_call.1} parent=1 // pred_check_branch
      %2845 = sbr.rel (0) target = $region41
    $region40: #{tpu_custom_call.1} parent=1 // pred_region
      %2847 = dma.done [#allocation4], 32
    $region41: #{tpu_custom_call.1} parent=1 // pred_fallthru
      _
    %2848 = vsyncpa [#allocation4], 1

</llo_original>
